<compile_context>
chip_gen: v5e
topology: v5e:2x2
jax: 0.10.0
libtpu: 0.0.40
codegen_flags: <defaults>
</compile_context>

<pallas_src>
import functools

import jax
import jax.numpy as jnp
from jax.experimental import pallas as pl
from jax.experimental.pallas import tpu as pltpu


def lstm_kernel(xf_ref, wih1_ref, b1_ref, whh1_ref, wih2_ref, whh2_ref,
                b2_ref, wfc_ref, bfc_ref, out_ref, xproj_ref, *, Bp, T, Hp):
    G = 4 * Hp

    # Layer-1 input projection for ALL timesteps in one matmul (bias folded),
    # staged through VMEM scratch so only one timestep slice is live in vregs.
    # xf rows are ordered (t, b): row r = t*Bp + b  (8-sublane aligned).
    xproj_ref[...] = (jnp.dot(xf_ref[...], wih1_ref[...],
                              preferred_element_type=jnp.float32)
                      + b1_ref[...])                      # (T*Bp, 4Hp)

    # Hoisted bias broadcast (4 vregs; JAX does not CSE broadcast_in_dim).
    b2 = jnp.broadcast_to(b2_ref[...], (Bp, G))

    def sigmoid(x):
        # Single-EUP form of the logistic sigmoid (exact identity).
        return 0.5 * jnp.tanh(0.5 * x) + 0.5

    def gates_to_hc(gates, c):
        # Gate blocks start at 128-lane boundaries -> clean vreg slices.
        i_g = sigmoid(gates[:, 0 * Hp:1 * Hp])
        f_g = sigmoid(gates[:, 1 * Hp:2 * Hp])
        g_g = jnp.tanh(gates[:, 2 * Hp:3 * Hp])
        o_g = sigmoid(gates[:, 3 * Hp:4 * Hp])
        c_new = f_g * c + i_g * g_g
        h_new = o_g * jnp.tanh(c_new)
        return h_new, c_new

    z = jnp.zeros((Bp, Hp), jnp.float32)
    h1, c1, h2, c2 = z, z, z, z

    # Statically unrolled recurrence (T is a small compile-time constant).
    # (Switch to lax.fori_loop(..., unroll=...) if T grows beyond ~16.)
    for t in range(T):
        # Both recurrent matmuls depend only on previous-step state: issue
        # them back-to-back before any nonlinearity.  Weights are read from
        # their refs per dot (no hoisted whole-weight values live in vregs).
        r1 = jnp.dot(h1.astype(jnp.bfloat16), whh1_ref[...],
                     preferred_element_type=jnp.float32)   # (Bp, 4Hp)
        r2 = jnp.dot(h2.astype(jnp.bfloat16), whh2_ref[...],
                     preferred_element_type=jnp.float32)   # (Bp, 4Hp)

        # Layer 1: input part precomputed; static, 8-aligned timestep slice.
        g1 = xproj_ref[t * Bp:(t + 1) * Bp, :] + r1
        h1, c1 = gates_to_hc(g1, c1)

        # Layer 2: only the K=128 h1_new projection sits behind layer-1 EUPs.
        g2 = (jnp.dot(h1.astype(jnp.bfloat16), wih2_ref[...],
                      preferred_element_type=jnp.float32)
              + r2 + b2)
        h2, c2 = gates_to_hc(g2, c2)

    # Lane-dense FC head: (Bp, 128) output (column 0 is the real logit).
    out_ref[...] = (jnp.dot(h2, wfc_ref[...],
                            preferred_element_type=jnp.float32)
                    + bfc_ref[...])


def lstm_forward(x, packed):
    B, T, I = x.shape
    Hp = packed["whh1p"].shape[0]
    G = 4 * Hp
    Bp = 8                                   # f32 sublane width

    # Pad batch to Bp rows, then flatten time-major: row = t*Bp + b, so every
    # timestep slice is (8,128)-tile aligned inside the kernel.
    xp = jnp.zeros((Bp, T, I), jnp.float32).at[:B].set(x)
    xf = jnp.transpose(xp, (1, 0, 2)).reshape(T * Bp, I)

    full = lambda shape: pl.BlockSpec(shape, lambda i: tuple(0 for _ in shape))
    kernel = functools.partial(lstm_kernel, Bp=Bp, T=T, Hp=Hp)

    out_p = pl.pallas_call(
        kernel,
        out_shape=jax.ShapeDtypeStruct((Bp, Hp), jnp.float32),
        grid_spec=pltpu.PrefetchScalarGridSpec(
            num_scalar_prefetch=0,
            grid=(1,),                       # whole problem in one invocation
            in_specs=[
                full((T * Bp, I)),           # xf        (f32)
                full((I, G)),                # wih1p     (f32, bias folded at use)
                full((1, G)),                # b1p       (f32)
                full((Hp, G)),               # whh1p     (bf16)
                full((Hp, G)),               # wih2p     (bf16)
                full((Hp, G)),               # whh2p     (bf16)
                full((1, G)),                # b2p       (f32)
                full((Hp, Hp)),              # wfcp      (f32, lane-dense)
                full((1, Hp)),               # bfcp      (f32)
            ],
            out_specs=pl.BlockSpec((Bp, Hp), lambda i: (0, 0)),
            scratch_shapes=[pltpu.VMEM((T * Bp, G), jnp.float32)],  # xproj
        ),
        compiler_params=pltpu.CompilerParams(
            dimension_semantics=("arbitrary",)),
    )(xf, packed["wih1p"], packed["b1p"], packed["whh1p"], packed["wih2p"],
      packed["whh2p"], packed["b2p"], packed["wfcp"], packed["bfcp"])

    return out_p[:B, :1]


# ----------------------------- parameter prep ------------------------------

def _pad_gate_cols(w_t, H, Hp):
    """(in_dim, 4H) [i,f,g,o] -> (in_dim, 4Hp) with gate k at cols k*Hp..k*Hp+H."""
    out = jnp.zeros((w_t.shape[0], 4 * Hp), jnp.float32)
    for k in range(4):
        out = out.at[:, k * Hp:k * Hp + H].set(w_t[:, k * H:(k + 1) * H])
    return out


def _pad_rows(w, H, Hp):
    """Zero-pad the input (row) dim H -> Hp."""
    return jnp.zeros((Hp,) + w.shape[1:], jnp.float32).at[:H].set(w)


def init_params(key, input_size, hidden_size, Hp=128):
    """PyTorch-style U(-1/sqrt(H), 1/sqrt(H)) init; returns (raw, packed)."""
    H = hidden_size
    bound = H ** -0.5
    ks = jax.random.split(key, 10)
    u = lambda k, shape: jax.random.uniform(k, shape, jnp.float32, -bound, bound)

    # Raw PyTorch-layout params (gate order [i, f, g, o]).
    wih1 = u(ks[0], (4 * H, input_size))
    whh1 = u(ks[1], (4 * H, H))
    b1 = u(ks[2], (4 * H,)) + u(ks[3], (4 * H,))    # b_ih + b_hh
    wih2 = u(ks[4], (4 * H, H))
    whh2 = u(ks[5], (4 * H, H))
    b2 = u(ks[6], (4 * H,)) + u(ks[7], (4 * H,))
    wfc = u(ks[8], (1, H))
    bfc = u(ks[9], (1,))

    raw = dict(wih1=wih1, whh1=whh1, b1=b1, wih2=wih2, whh2=whh2, b2=b2,
               wfc=wfc, bfc=bfc)

    # Packed / padded kernel layouts: transpose to (in, 4H), pad gate blocks
    # to 128 lanes, pad hidden input dims to Hp.  Recurrent weights in bf16.
    wih1p = _pad_gate_cols(wih1.T, H, Hp)                                # (I, 4Hp) f32
    b1p = _pad_gate_cols(b1.reshape(1, 4 * H), H, Hp)                    # (1, 4Hp) f32
    whh1p = _pad_rows(_pad_gate_cols(whh1.T, H, Hp), H, Hp).astype(jnp.bfloat16)
    wih2p = _pad_rows(_pad_gate_cols(wih2.T, H, Hp), H, Hp).astype(jnp.bfloat16)
    whh2p = _pad_rows(_pad_gate_cols(whh2.T, H, Hp), H, Hp).astype(jnp.bfloat16)
    b2p = _pad_gate_cols(b2.reshape(1, 4 * H), H, Hp)                    # (1, 4Hp) f32
    wfcp = jnp.zeros((Hp, Hp), jnp.float32).at[:H, 0].set(wfc[0, :])     # lane-dense
    bfcp = jnp.zeros((1, Hp), jnp.float32).at[0, 0].set(bfc[0])

    packed = dict(wih1p=wih1p, b1p=b1p, whh1p=whh1p, wih2p=wih2p,
                  whh2p=whh2p, b2p=b2p, wfcp=wfcp, bfcp=bfcp)
    return raw, packed


# ------------------------------- reference ---------------------------------

def lstm_ref(x, p, H):
    """Pure-JAX f32 reference matching the PyTorch module's forward."""
    B, T, I = x.shape

    def cell(x_t, h, c, w_ih, w_hh, b):
        gates = x_t @ w_ih.T + h @ w_hh.T + b
        i_g = jax.nn.sigmoid(gates[:, 0 * H:1 * H])
        f_g = jax.nn.sigmoid(gates[:, 1 * H:2 * H])
        g_g = jnp.tanh(gates[:, 2 * H:3 * H])
        o_g = jax.nn.sigmoid(gates[:, 3 * H:4 * H])
        c_new = f_g * c + i_g * g_g
        h_new = o_g * jnp.tanh(c_new)
        return h_new, c_new

    h1 = c1 = h2 = c2 = jnp.zeros((B, H), jnp.float32)
    for t in range(T):
        h1, c1 = cell(x[:, t, :], h1, c1, p["wih1"], p["whh1"], p["b1"])
        h2, c2 = cell(h1, h2, c2, p["wih2"], p["whh2"], p["b2"])
    return h2 @ p["wfc"].T + p["bfc"]


if __name__ == "__main__":
    input_size = 14
    hidden_size = 50
    batch = 2
    seq = 8

    key = jax.random.PRNGKey(0)
    kx, kp = jax.random.split(key)
    x = jax.random.normal(kx, (batch, seq, input_size), jnp.float32)
    raw, packed = init_params(kp, input_size, hidden_size)

    out = jax.block_until_ready(lstm_forward(x, packed))
    ref = jax.block_until_ready(lstm_ref(x, raw, hidden_size))

    assert out.shape == (batch, 1)
    # Tolerance accommodates bf16 recurrent-weight quantization compounding
    # over the 8-step recurrence (observed error ~1e-3; structural bugs >>1e-1).
    assert float(jnp.max(jnp.abs(out - ref))) < 2e-2, (out, ref)
    print("KERNEL_OK")
</pallas_src>

<mosaic_0001>
module attributes {stable_mosaic.version = 11 : i64} {
  func.func @lstm_kernel(%arg0: i32, %arg1: memref<64x14xf32, #tpu.memory_space<vmem>>, %arg2: memref<14x512xf32, #tpu.memory_space<vmem>>, %arg3: memref<1x512xf32, #tpu.memory_space<vmem>>, %arg4: memref<128x512xbf16, #tpu.memory_space<vmem>>, %arg5: memref<128x512xbf16, #tpu.memory_space<vmem>>, %arg6: memref<128x512xbf16, #tpu.memory_space<vmem>>, %arg7: memref<1x512xf32, #tpu.memory_space<vmem>>, %arg8: memref<128x128xf32, #tpu.memory_space<vmem>>, %arg9: memref<1x128xf32, #tpu.memory_space<vmem>>, %arg10: memref<8x128xf32, #tpu.memory_space<vmem>>, %arg11: memref<64x512xf32, #tpu.memory_space<vmem>>) attributes {dimension_semantics = [#tpu.dimension_semantics<arbitrary>], iteration_bounds = array<i64: 1>, scalar_prefetch = 0 : i64, scratch_operands = 1 : i64, tpu.core_type = #tpu.core_type<tc>, window_params = [{pipeline_mode = #tpu.pipeline_mode<synchronous>, transform_indices = @transform_0, window_bounds = array<i64: 64, 14>}, {pipeline_mode = #tpu.pipeline_mode<synchronous>, transform_indices = @transform_1, window_bounds = array<i64: 14, 512>}, {pipeline_mode = #tpu.pipeline_mode<synchronous>, transform_indices = @transform_2, window_bounds = array<i64: 1, 512>}, {pipeline_mode = #tpu.pipeline_mode<synchronous>, transform_indices = @transform_3, window_bounds = array<i64: 128, 512>}, {pipeline_mode = #tpu.pipeline_mode<synchronous>, transform_indices = @transform_4, window_bounds = array<i64: 128, 512>}, {pipeline_mode = #tpu.pipeline_mode<synchronous>, transform_indices = @transform_5, window_bounds = array<i64: 128, 512>}, {pipeline_mode = #tpu.pipeline_mode<synchronous>, transform_indices = @transform_6, window_bounds = array<i64: 1, 512>}, {pipeline_mode = #tpu.pipeline_mode<synchronous>, transform_indices = @transform_7, window_bounds = array<i64: 128, 128>}, {pipeline_mode = #tpu.pipeline_mode<synchronous>, transform_indices = @transform_8, window_bounds = array<i64: 1, 128>}, {pipeline_mode = #tpu.pipeline_mode<synchronous>, transform_indices = @transform_9, window_bounds = array<i64: 8, 128>}]} {
    %c0 = arith.constant 0 : index
    %c0_0 = arith.constant 0 : index
    %0 = vector.load %arg1[%c0, %c0_0] : memref<64x14xf32, #tpu.memory_space<vmem>>, vector<64x14xf32>
    %c0_1 = arith.constant 0 : index
    %c0_2 = arith.constant 0 : index
    %1 = vector.load %arg2[%c0_1, %c0_2] : memref<14x512xf32, #tpu.memory_space<vmem>>, vector<14x512xf32>
    %cst = arith.constant dense<0.000000e+00> : vector<64x512xf32>
    %2 = tpu.matmul %0, %1, %cst {dimension_numbers = #tpu.dot_dimension_numbers<[1], [0], [0], [1], [0, 0, 1, 1], [], []>} : vector<64x14xf32>, vector<14x512xf32>, vector<64x512xf32> -> vector<64x512xf32>
    %c0_3 = arith.constant 0 : index
    %c0_4 = arith.constant 0 : index
    %3 = vector.load %arg3[%c0_3, %c0_4] : memref<1x512xf32, #tpu.memory_space<vmem>>, vector<1x512xf32>
    %4 = vector.broadcast %3 : vector<1x512xf32> to vector<64x512xf32>
    %5 = arith.addf %2, %4 : vector<64x512xf32>
    %c0_5 = arith.constant 0 : index
    %c0_6 = arith.constant 0 : index
    %6 = vector.load %arg11[%c0_5, %c0_6] : memref<64x512xf32, #tpu.memory_space<vmem>>, vector<64x512xf32>
    tpu.vector_store %arg11[%c0_5, %c0_6], %5 {strides = array<i32>} : memref<64x512xf32, #tpu.memory_space<vmem>>, vector<64x512xf32>,
    %c0_7 = arith.constant 0 : index
    %c0_8 = arith.constant 0 : index
    %7 = vector.load %arg7[%c0_7, %c0_8] : memref<1x512xf32, #tpu.memory_space<vmem>>, vector<1x512xf32>
    %8 = vector.shape_cast %7 : vector<1x512xf32> to vector<1x512xf32>
    %9 = vector.broadcast %8 : vector<1x512xf32> to vector<8x512xf32>
    %cst_9 = arith.constant 0.000000e+00 : f32
    %10 = vector.broadcast %cst_9 : f32 to vector<8x128xf32>
    %11 = arith.truncf %10 : vector<8x128xf32> to vector<8x128xbf16>
    %c0_10 = arith.constant 0 : index
    %c0_11 = arith.constant 0 : index
    %12 = vector.load %arg4[%c0_10, %c0_11] : memref<128x512xbf16, #tpu.memory_space<vmem>>, vector<128x512xbf16>
    %cst_12 = arith.constant dense<0.000000e+00> : vector<8x512xf32>
    %13 = tpu.matmul %11, %12, %cst_12 {dimension_numbers = #tpu.dot_dimension_numbers<[1], [0], [0], [1], [0, 0, 1, 1], [], []>} : vector<8x128xbf16>, vector<128x512xbf16>, vector<8x512xf32> -> vector<8x512xf32>
    %14 = arith.truncf %10 : vector<8x128xf32> to vector<8x128xbf16>
    %c0_13 = arith.constant 0 : index
    %c0_14 = arith.constant 0 : index
    %15 = vector.load %arg6[%c0_13, %c0_14] : memref<128x512xbf16, #tpu.memory_space<vmem>>, vector<128x512xbf16>
    %cst_15 = arith.constant dense<0.000000e+00> : vector<8x512xf32>
    %16 = tpu.matmul %14, %15, %cst_15 {dimension_numbers = #tpu.dot_dimension_numbers<[1], [0], [0], [1], [0, 0, 1, 1], [], []>} : vector<8x128xbf16>, vector<128x512xbf16>, vector<8x512xf32> -> vector<8x512xf32>
    %c0_16 = arith.constant 0 : index
    %c0_17 = arith.constant 0 : index
    %17 = vector.load %arg11[%c0_16, %c0_17] : memref<64x512xf32, #tpu.memory_space<vmem>>, vector<8x512xf32>
    %18 = arith.addf %17, %13 : vector<8x512xf32>
    %19 = vector.extract_strided_slice %18 {offsets = [0, 0], sizes = [8, 128], strides = [1, 1]} : vector<8x512xf32> to vector<8x128xf32>
    %cst_18 = arith.constant 5.000000e-01 : f32
    %20 = vector.broadcast %cst_18 : f32 to vector<8x128xf32>
    %21 = arith.mulf %20, %19 : vector<8x128xf32>
    %22 = math.tanh %21 : vector<8x128xf32>
    %cst_19 = arith.constant 5.000000e-01 : f32
    %23 = vector.broadcast %cst_19 : f32 to vector<8x128xf32>
    %24 = arith.mulf %23, %22 : vector<8x128xf32>
    %cst_20 = arith.constant 5.000000e-01 : f32
    %25 = vector.broadcast %cst_20 : f32 to vector<8x128xf32>
    %26 = arith.addf %24, %25 : vector<8x128xf32>
    %27 = vector.extract_strided_slice %18 {offsets = [0, 128], sizes = [8, 128], strides = [1, 1]} : vector<8x512xf32> to vector<8x128xf32>
    %cst_21 = arith.constant 5.000000e-01 : f32
    %28 = vector.broadcast %cst_21 : f32 to vector<8x128xf32>
    %29 = arith.mulf %28, %27 : vector<8x128xf32>
    %30 = math.tanh %29 : vector<8x128xf32>
    %cst_22 = arith.constant 5.000000e-01 : f32
    %31 = vector.broadcast %cst_22 : f32 to vector<8x128xf32>
    %32 = arith.mulf %31, %30 : vector<8x128xf32>
    %cst_23 = arith.constant 5.000000e-01 : f32
    %33 = vector.broadcast %cst_23 : f32 to vector<8x128xf32>
    %34 = arith.addf %32, %33 : vector<8x128xf32>
    %35 = vector.extract_strided_slice %18 {offsets = [0, 256], sizes = [8, 128], strides = [1, 1]} : vector<8x512xf32> to vector<8x128xf32>
    %36 = math.tanh %35 : vector<8x128xf32>
    %37 = vector.extract_strided_slice %18 {offsets = [0, 384], sizes = [8, 128], strides = [1, 1]} : vector<8x512xf32> to vector<8x128xf32>
    %cst_24 = arith.constant 5.000000e-01 : f32
    %38 = vector.broadcast %cst_24 : f32 to vector<8x128xf32>
    %39 = arith.mulf %38, %37 : vector<8x128xf32>
    %40 = math.tanh %39 : vector<8x128xf32>
    %cst_25 = arith.constant 5.000000e-01 : f32
    %41 = vector.broadcast %cst_25 : f32 to vector<8x128xf32>
    %42 = arith.mulf %41, %40 : vector<8x128xf32>
    %cst_26 = arith.constant 5.000000e-01 : f32
    %43 = vector.broadcast %cst_26 : f32 to vector<8x128xf32>
    %44 = arith.addf %42, %43 : vector<8x128xf32>
    %45 = arith.mulf %34, %10 : vector<8x128xf32>
    %46 = arith.mulf %26, %36 : vector<8x128xf32>
    %47 = arith.addf %45, %46 : vector<8x128xf32>
    %48 = math.tanh %47 : vector<8x128xf32>
    %49 = arith.mulf %44, %48 : vector<8x128xf32>
    %50 = arith.truncf %49 : vector<8x128xf32> to vector<8x128xbf16>
    %c0_27 = arith.constant 0 : index
    %c0_28 = arith.constant 0 : index
    %51 = vector.load %arg5[%c0_27, %c0_28] : memref<128x512xbf16, #tpu.memory_space<vmem>>, vector<128x512xbf16>
    %cst_29 = arith.constant dense<0.000000e+00> : vector<8x512xf32>
    %52 = tpu.matmul %50, %51, %cst_29 {dimension_numbers = #tpu.dot_dimension_numbers<[1], [0], [0], [1], [0, 0, 1, 1], [], []>} : vector<8x128xbf16>, vector<128x512xbf16>, vector<8x512xf32> -> vector<8x512xf32>
    %53 = arith.addf %52, %16 : vector<8x512xf32>
    %54 = arith.addf %53, %9 : vector<8x512xf32>
    %55 = vector.extract_strided_slice %54 {offsets = [0, 0], sizes = [8, 128], strides = [1, 1]} : vector<8x512xf32> to vector<8x128xf32>
    %cst_30 = arith.constant 5.000000e-01 : f32
    %56 = vector.broadcast %cst_30 : f32 to vector<8x128xf32>
    %57 = arith.mulf %56, %55 : vector<8x128xf32>
    %58 = math.tanh %57 : vector<8x128xf32>
    %cst_31 = arith.constant 5.000000e-01 : f32
    %59 = vector.broadcast %cst_31 : f32 to vector<8x128xf32>
    %60 = arith.mulf %59, %58 : vector<8x128xf32>
    %cst_32 = arith.constant 5.000000e-01 : f32
    %61 = vector.broadcast %cst_32 : f32 to vector<8x128xf32>
    %62 = arith.addf %60, %61 : vector<8x128xf32>
    %63 = vector.extract_strided_slice %54 {offsets = [0, 128], sizes = [8, 128], strides = [1, 1]} : vector<8x512xf32> to vector<8x128xf32>
    %cst_33 = arith.constant 5.000000e-01 : f32
    %64 = vector.broadcast %cst_33 : f32 to vector<8x128xf32>
    %65 = arith.mulf %64, %63 : vector<8x128xf32>
    %66 = math.tanh %65 : vector<8x128xf32>
    %cst_34 = arith.constant 5.000000e-01 : f32
    %67 = vector.broadcast %cst_34 : f32 to vector<8x128xf32>
    %68 = arith.mulf %67, %66 : vector<8x128xf32>
    %cst_35 = arith.constant 5.000000e-01 : f32
    %69 = vector.broadcast %cst_35 : f32 to vector<8x128xf32>
    %70 = arith.addf %68, %69 : vector<8x128xf32>
    %71 = vector.extract_strided_slice %54 {offsets = [0, 256], sizes = [8, 128], strides = [1, 1]} : vector<8x512xf32> to vector<8x128xf32>
    %72 = math.tanh %71 : vector<8x128xf32>
    %73 = vector.extract_strided_slice %54 {offsets = [0, 384], sizes = [8, 128], strides = [1, 1]} : vector<8x512xf32> to vector<8x128xf32>
    %cst_36 = arith.constant 5.000000e-01 : f32
    %74 = vector.broadcast %cst_36 : f32 to vector<8x128xf32>
    %75 = arith.mulf %74, %73 : vector<8x128xf32>
    %76 = math.tanh %75 : vector<8x128xf32>
    %cst_37 = arith.constant 5.000000e-01 : f32
    %77 = vector.broadcast %cst_37 : f32 to vector<8x128xf32>
    %78 = arith.mulf %77, %76 : vector<8x128xf32>
    %cst_38 = arith.constant 5.000000e-01 : f32
    %79 = vector.broadcast %cst_38 : f32 to vector<8x128xf32>
    %80 = arith.addf %78, %79 : vector<8x128xf32>
    %81 = arith.mulf %70, %10 : vector<8x128xf32>
    %82 = arith.mulf %62, %72 : vector<8x128xf32>
    %83 = arith.addf %81, %82 : vector<8x128xf32>
    %84 = math.tanh %83 : vector<8x128xf32>
    %85 = arith.mulf %80, %84 : vector<8x128xf32>
    %86 = arith.truncf %49 : vector<8x128xf32> to vector<8x128xbf16>
    %c0_39 = arith.constant 0 : index
    %c0_40 = arith.constant 0 : index
    %87 = vector.load %arg4[%c0_39, %c0_40] : memref<128x512xbf16, #tpu.memory_space<vmem>>, vector<128x512xbf16>
    %cst_41 = arith.constant dense<0.000000e+00> : vector<8x512xf32>
    %88 = tpu.matmul %86, %87, %cst_41 {dimension_numbers = #tpu.dot_dimension_numbers<[1], [0], [0], [1], [0, 0, 1, 1], [], []>} : vector<8x128xbf16>, vector<128x512xbf16>, vector<8x512xf32> -> vector<8x512xf32>
    %89 = arith.truncf %85 : vector<8x128xf32> to vector<8x128xbf16>
    %c0_42 = arith.constant 0 : index
    %c0_43 = arith.constant 0 : index
    %90 = vector.load %arg6[%c0_42, %c0_43] : memref<128x512xbf16, #tpu.memory_space<vmem>>, vector<128x512xbf16>
    %cst_44 = arith.constant dense<0.000000e+00> : vector<8x512xf32>
    %91 = tpu.matmul %89, %90, %cst_44 {dimension_numbers = #tpu.dot_dimension_numbers<[1], [0], [0], [1], [0, 0, 1, 1], [], []>} : vector<8x128xbf16>, vector<128x512xbf16>, vector<8x512xf32> -> vector<8x512xf32>
    %c8 = arith.constant 8 : index
    %c0_45 = arith.constant 0 : index
    %92 = vector.load %arg11[%c8, %c0_45] : memref<64x512xf32, #tpu.memory_space<vmem>>, vector<8x512xf32>
    %93 = arith.addf %92, %88 : vector<8x512xf32>
    %94 = vector.extract_strided_slice %93 {offsets = [0, 0], sizes = [8, 128], strides = [1, 1]} : vector<8x512xf32> to vector<8x128xf32>
    %cst_46 = arith.constant 5.000000e-01 : f32
    %95 = vector.broadcast %cst_46 : f32 to vector<8x128xf32>
    %96 = arith.mulf %95, %94 : vector<8x128xf32>
    %97 = math.tanh %96 : vector<8x128xf32>
    %cst_47 = arith.constant 5.000000e-01 : f32
    %98 = vector.broadcast %cst_47 : f32 to vector<8x128xf32>
    %99 = arith.mulf %98, %97 : vector<8x128xf32>
    %cst_48 = arith.constant 5.000000e-01 : f32
    %100 = vector.broadcast %cst_48 : f32 to vector<8x128xf32>
    %101 = arith.addf %99, %100 : vector<8x128xf32>
    %102 = vector.extract_strided_slice %93 {offsets = [0, 128], sizes = [8, 128], strides = [1, 1]} : vector<8x512xf32> to vector<8x128xf32>
    %cst_49 = arith.constant 5.000000e-01 : f32
    %103 = vector.broadcast %cst_49 : f32 to vector<8x128xf32>
    %104 = arith.mulf %103, %102 : vector<8x128xf32>
    %105 = math.tanh %104 : vector<8x128xf32>
    %cst_50 = arith.constant 5.000000e-01 : f32
    %106 = vector.broadcast %cst_50 : f32 to vector<8x128xf32>
    %107 = arith.mulf %106, %105 : vector<8x128xf32>
    %cst_51 = arith.constant 5.000000e-01 : f32
    %108 = vector.broadcast %cst_51 : f32 to vector<8x128xf32>
    %109 = arith.addf %107, %108 : vector<8x128xf32>
    %110 = vector.extract_strided_slice %93 {offsets = [0, 256], sizes = [8, 128], strides = [1, 1]} : vector<8x512xf32> to vector<8x128xf32>
    %111 = math.tanh %110 : vector<8x128xf32>
    %112 = vector.extract_strided_slice %93 {offsets = [0, 384], sizes = [8, 128], strides = [1, 1]} : vector<8x512xf32> to vector<8x128xf32>
    %cst_52 = arith.constant 5.000000e-01 : f32
    %113 = vector.broadcast %cst_52 : f32 to vector<8x128xf32>
    %114 = arith.mulf %113, %112 : vector<8x128xf32>
    %115 = math.tanh %114 : vector<8x128xf32>
    %cst_53 = arith.constant 5.000000e-01 : f32
    %116 = vector.broadcast %cst_53 : f32 to vector<8x128xf32>
    %117 = arith.mulf %116, %115 : vector<8x128xf32>
    %cst_54 = arith.constant 5.000000e-01 : f32
    %118 = vector.broadcast %cst_54 : f32 to vector<8x128xf32>
    %119 = arith.addf %117, %118 : vector<8x128xf32>
    %120 = arith.mulf %109, %47 : vector<8x128xf32>
    %121 = arith.mulf %101, %111 : vector<8x128xf32>
    %122 = arith.addf %120, %121 : vector<8x128xf32>
    %123 = math.tanh %122 : vector<8x128xf32>
    %124 = arith.mulf %119, %123 : vector<8x128xf32>
    %125 = arith.truncf %124 : vector<8x128xf32> to vector<8x128xbf16>
    %c0_55 = arith.constant 0 : index
    %c0_56 = arith.constant 0 : index
    %126 = vector.load %arg5[%c0_55, %c0_56] : memref<128x512xbf16, #tpu.memory_space<vmem>>, vector<128x512xbf16>
    %cst_57 = arith.constant dense<0.000000e+00> : vector<8x512xf32>
    %127 = tpu.matmul %125, %126, %cst_57 {dimension_numbers = #tpu.dot_dimension_numbers<[1], [0], [0], [1], [0, 0, 1, 1], [], []>} : vector<8x128xbf16>, vector<128x512xbf16>, vector<8x512xf32> -> vector<8x512xf32>
    %128 = arith.addf %127, %91 : vector<8x512xf32>
    %129 = arith.addf %128, %9 : vector<8x512xf32>
    %130 = vector.extract_strided_slice %129 {offsets = [0, 0], sizes = [8, 128], strides = [1, 1]} : vector<8x512xf32> to vector<8x128xf32>
    %cst_58 = arith.constant 5.000000e-01 : f32
    %131 = vector.broadcast %cst_58 : f32 to vector<8x128xf32>
    %132 = arith.mulf %131, %130 : vector<8x128xf32>
    %133 = math.tanh %132 : vector<8x128xf32>
    %cst_59 = arith.constant 5.000000e-01 : f32
    %134 = vector.broadcast %cst_59 : f32 to vector<8x128xf32>
    %135 = arith.mulf %134, %133 : vector<8x128xf32>
    %cst_60 = arith.constant 5.000000e-01 : f32
    %136 = vector.broadcast %cst_60 : f32 to vector<8x128xf32>
    %137 = arith.addf %135, %136 : vector<8x128xf32>
    %138 = vector.extract_strided_slice %129 {offsets = [0, 128], sizes = [8, 128], strides = [1, 1]} : vector<8x512xf32> to vector<8x128xf32>
    %cst_61 = arith.constant 5.000000e-01 : f32
    %139 = vector.broadcast %cst_61 : f32 to vector<8x128xf32>
    %140 = arith.mulf %139, %138 : vector<8x128xf32>
    %141 = math.tanh %140 : vector<8x128xf32>
    %cst_62 = arith.constant 5.000000e-01 : f32
    %142 = vector.broadcast %cst_62 : f32 to vector<8x128xf32>
    %143 = arith.mulf %142, %141 : vector<8x128xf32>
    %cst_63 = arith.constant 5.000000e-01 : f32
    %144 = vector.broadcast %cst_63 : f32 to vector<8x128xf32>
    %145 = arith.addf %143, %144 : vector<8x128xf32>
    %146 = vector.extract_strided_slice %129 {offsets = [0, 256], sizes = [8, 128], strides = [1, 1]} : vector<8x512xf32> to vector<8x128xf32>
    %147 = math.tanh %146 : vector<8x128xf32>
    %148 = vector.extract_strided_slice %129 {offsets = [0, 384], sizes = [8, 128], strides = [1, 1]} : vector<8x512xf32> to vector<8x128xf32>
    %cst_64 = arith.constant 5.000000e-01 : f32
    %149 = vector.broadcast %cst_64 : f32 to vector<8x128xf32>
    %150 = arith.mulf %149, %148 : vector<8x128xf32>
    %151 = math.tanh %150 : vector<8x128xf32>
    %cst_65 = arith.constant 5.000000e-01 : f32
    %152 = vector.broadcast %cst_65 : f32 to vector<8x128xf32>
    %153 = arith.mulf %152, %151 : vector<8x128xf32>
    %cst_66 = arith.constant 5.000000e-01 : f32
    %154 = vector.broadcast %cst_66 : f32 to vector<8x128xf32>
    %155 = arith.addf %153, %154 : vector<8x128xf32>
    %156 = arith.mulf %145, %83 : vector<8x128xf32>
    %157 = arith.mulf %137, %147 : vector<8x128xf32>
    %158 = arith.addf %156, %157 : vector<8x128xf32>
    %159 = math.tanh %158 : vector<8x128xf32>
    %160 = arith.mulf %155, %159 : vector<8x128xf32>
    %161 = arith.truncf %124 : vector<8x128xf32> to vector<8x128xbf16>
    %c0_67 = arith.constant 0 : index
    %c0_68 = arith.constant 0 : index
    %162 = vector.load %arg4[%c0_67, %c0_68] : memref<128x512xbf16, #tpu.memory_space<vmem>>, vector<128x512xbf16>
    %cst_69 = arith.constant dense<0.000000e+00> : vector<8x512xf32>
    %163 = tpu.matmul %161, %162, %cst_69 {dimension_numbers = #tpu.dot_dimension_numbers<[1], [0], [0], [1], [0, 0, 1, 1], [], []>} : vector<8x128xbf16>, vector<128x512xbf16>, vector<8x512xf32> -> vector<8x512xf32>
    %164 = arith.truncf %160 : vector<8x128xf32> to vector<8x128xbf16>
    %c0_70 = arith.constant 0 : index
    %c0_71 = arith.constant 0 : index
    %165 = vector.load %arg6[%c0_70, %c0_71] : memref<128x512xbf16, #tpu.memory_space<vmem>>, vector<128x512xbf16>
    %cst_72 = arith.constant dense<0.000000e+00> : vector<8x512xf32>
    %166 = tpu.matmul %164, %165, %cst_72 {dimension_numbers = #tpu.dot_dimension_numbers<[1], [0], [0], [1], [0, 0, 1, 1], [], []>} : vector<8x128xbf16>, vector<128x512xbf16>, vector<8x512xf32> -> vector<8x512xf32>
    %c16 = arith.constant 16 : index
    %c0_73 = arith.constant 0 : index
    %167 = vector.load %arg11[%c16, %c0_73] : memref<64x512xf32, #tpu.memory_space<vmem>>, vector<8x512xf32>
    %168 = arith.addf %167, %163 : vector<8x512xf32>
    %169 = vector.extract_strided_slice %168 {offsets = [0, 0], sizes = [8, 128], strides = [1, 1]} : vector<8x512xf32> to vector<8x128xf32>
    %cst_74 = arith.constant 5.000000e-01 : f32
    %170 = vector.broadcast %cst_74 : f32 to vector<8x128xf32>
    %171 = arith.mulf %170, %169 : vector<8x128xf32>
    %172 = math.tanh %171 : vector<8x128xf32>
    %cst_75 = arith.constant 5.000000e-01 : f32
    %173 = vector.broadcast %cst_75 : f32 to vector<8x128xf32>
    %174 = arith.mulf %173, %172 : vector<8x128xf32>
    %cst_76 = arith.constant 5.000000e-01 : f32
    %175 = vector.broadcast %cst_76 : f32 to vector<8x128xf32>
    %176 = arith.addf %174, %175 : vector<8x128xf32>
    %177 = vector.extract_strided_slice %168 {offsets = [0, 128], sizes = [8, 128], strides = [1, 1]} : vector<8x512xf32> to vector<8x128xf32>
    %cst_77 = arith.constant 5.000000e-01 : f32
    %178 = vector.broadcast %cst_77 : f32 to vector<8x128xf32>
    %179 = arith.mulf %178, %177 : vector<8x128xf32>
    %180 = math.tanh %179 : vector<8x128xf32>
    %cst_78 = arith.constant 5.000000e-01 : f32
    %181 = vector.broadcast %cst_78 : f32 to vector<8x128xf32>
    %182 = arith.mulf %181, %180 : vector<8x128xf32>
    %cst_79 = arith.constant 5.000000e-01 : f32
    %183 = vector.broadcast %cst_79 : f32 to vector<8x128xf32>
    %184 = arith.addf %182, %183 : vector<8x128xf32>
    %185 = vector.extract_strided_slice %168 {offsets = [0, 256], sizes = [8, 128], strides = [1, 1]} : vector<8x512xf32> to vector<8x128xf32>
    %186 = math.tanh %185 : vector<8x128xf32>
    %187 = vector.extract_strided_slice %168 {offsets = [0, 384], sizes = [8, 128], strides = [1, 1]} : vector<8x512xf32> to vector<8x128xf32>
    %cst_80 = arith.constant 5.000000e-01 : f32
    %188 = vector.broadcast %cst_80 : f32 to vector<8x128xf32>
    %189 = arith.mulf %188, %187 : vector<8x128xf32>
    %190 = math.tanh %189 : vector<8x128xf32>
    %cst_81 = arith.constant 5.000000e-01 : f32
    %191 = vector.broadcast %cst_81 : f32 to vector<8x128xf32>
    %192 = arith.mulf %191, %190 : vector<8x128xf32>
    %cst_82 = arith.constant 5.000000e-01 : f32
    %193 = vector.broadcast %cst_82 : f32 to vector<8x128xf32>
    %194 = arith.addf %192, %193 : vector<8x128xf32>
    %195 = arith.mulf %184, %122 : vector<8x128xf32>
    %196 = arith.mulf %176, %186 : vector<8x128xf32>
    %197 = arith.addf %195, %196 : vector<8x128xf32>
    %198 = math.tanh %197 : vector<8x128xf32>
    %199 = arith.mulf %194, %198 : vector<8x128xf32>
    %200 = arith.truncf %199 : vector<8x128xf32> to vector<8x128xbf16>
    %c0_83 = arith.constant 0 : index
    %c0_84 = arith.constant 0 : index
    %201 = vector.load %arg5[%c0_83, %c0_84] : memref<128x512xbf16, #tpu.memory_space<vmem>>, vector<128x512xbf16>
    %cst_85 = arith.constant dense<0.000000e+00> : vector<8x512xf32>
    %202 = tpu.matmul %200, %201, %cst_85 {dimension_numbers = #tpu.dot_dimension_numbers<[1], [0], [0], [1], [0, 0, 1, 1], [], []>} : vector<8x128xbf16>, vector<128x512xbf16>, vector<8x512xf32> -> vector<8x512xf32>
    %203 = arith.addf %202, %166 : vector<8x512xf32>
    %204 = arith.addf %203, %9 : vector<8x512xf32>
    %205 = vector.extract_strided_slice %204 {offsets = [0, 0], sizes = [8, 128], strides = [1, 1]} : vector<8x512xf32> to vector<8x128xf32>
    %cst_86 = arith.constant 5.000000e-01 : f32
    %206 = vector.broadcast %cst_86 : f32 to vector<8x128xf32>
    %207 = arith.mulf %206, %205 : vector<8x128xf32>
    %208 = math.tanh %207 : vector<8x128xf32>
    %cst_87 = arith.constant 5.000000e-01 : f32
    %209 = vector.broadcast %cst_87 : f32 to vector<8x128xf32>
    %210 = arith.mulf %209, %208 : vector<8x128xf32>
    %cst_88 = arith.constant 5.000000e-01 : f32
    %211 = vector.broadcast %cst_88 : f32 to vector<8x128xf32>
    %212 = arith.addf %210, %211 : vector<8x128xf32>
    %213 = vector.extract_strided_slice %204 {offsets = [0, 128], sizes = [8, 128], strides = [1, 1]} : vector<8x512xf32> to vector<8x128xf32>
    %cst_89 = arith.constant 5.000000e-01 : f32
    %214 = vector.broadcast %cst_89 : f32 to vector<8x128xf32>
    %215 = arith.mulf %214, %213 : vector<8x128xf32>
    %216 = math.tanh %215 : vector<8x128xf32>
    %cst_90 = arith.constant 5.000000e-01 : f32
    %217 = vector.broadcast %cst_90 : f32 to vector<8x128xf32>
    %218 = arith.mulf %217, %216 : vector<8x128xf32>
    %cst_91 = arith.constant 5.000000e-01 : f32
    %219 = vector.broadcast %cst_91 : f32 to vector<8x128xf32>
    %220 = arith.addf %218, %219 : vector<8x128xf32>
    %221 = vector.extract_strided_slice %204 {offsets = [0, 256], sizes = [8, 128], strides = [1, 1]} : vector<8x512xf32> to vector<8x128xf32>
    %222 = math.tanh %221 : vector<8x128xf32>
    %223 = vector.extract_strided_slice %204 {offsets = [0, 384], sizes = [8, 128], strides = [1, 1]} : vector<8x512xf32> to vector<8x128xf32>
    %cst_92 = arith.constant 5.000000e-01 : f32
    %224 = vector.broadcast %cst_92 : f32 to vector<8x128xf32>
    %225 = arith.mulf %224, %223 : vector<8x128xf32>
    %226 = math.tanh %225 : vector<8x128xf32>
    %cst_93 = arith.constant 5.000000e-01 : f32
    %227 = vector.broadcast %cst_93 : f32 to vector<8x128xf32>
    %228 = arith.mulf %227, %226 : vector<8x128xf32>
    %cst_94 = arith.constant 5.000000e-01 : f32
    %229 = vector.broadcast %cst_94 : f32 to vector<8x128xf32>
    %230 = arith.addf %228, %229 : vector<8x128xf32>
    %231 = arith.mulf %220, %158 : vector<8x128xf32>
    %232 = arith.mulf %212, %222 : vector<8x128xf32>
    %233 = arith.addf %231, %232 : vector<8x128xf32>
    %234 = math.tanh %233 : vector<8x128xf32>
    %235 = arith.mulf %230, %234 : vector<8x128xf32>
    %236 = arith.truncf %199 : vector<8x128xf32> to vector<8x128xbf16>
    %c0_95 = arith.constant 0 : index
    %c0_96 = arith.constant 0 : index
    %237 = vector.load %arg4[%c0_95, %c0_96] : memref<128x512xbf16, #tpu.memory_space<vmem>>, vector<128x512xbf16>
    %cst_97 = arith.constant dense<0.000000e+00> : vector<8x512xf32>
    %238 = tpu.matmul %236, %237, %cst_97 {dimension_numbers = #tpu.dot_dimension_numbers<[1], [0], [0], [1], [0, 0, 1, 1], [], []>} : vector<8x128xbf16>, vector<128x512xbf16>, vector<8x512xf32> -> vector<8x512xf32>
    %239 = arith.truncf %235 : vector<8x128xf32> to vector<8x128xbf16>
    %c0_98 = arith.constant 0 : index
    %c0_99 = arith.constant 0 : index
    %240 = vector.load %arg6[%c0_98, %c0_99] : memref<128x512xbf16, #tpu.memory_space<vmem>>, vector<128x512xbf16>
    %cst_100 = arith.constant dense<0.000000e+00> : vector<8x512xf32>
    %241 = tpu.matmul %239, %240, %cst_100 {dimension_numbers = #tpu.dot_dimension_numbers<[1], [0], [0], [1], [0, 0, 1, 1], [], []>} : vector<8x128xbf16>, vector<128x512xbf16>, vector<8x512xf32> -> vector<8x512xf32>
    %c24 = arith.constant 24 : index
    %c0_101 = arith.constant 0 : index
    %242 = vector.load %arg11[%c24, %c0_101] : memref<64x512xf32, #tpu.memory_space<vmem>>, vector<8x512xf32>
    %243 = arith.addf %242, %238 : vector<8x512xf32>
    %244 = vector.extract_strided_slice %243 {offsets = [0, 0], sizes = [8, 128], strides = [1, 1]} : vector<8x512xf32> to vector<8x128xf32>
    %cst_102 = arith.constant 5.000000e-01 : f32
    %245 = vector.broadcast %cst_102 : f32 to vector<8x128xf32>
    %246 = arith.mulf %245, %244 : vector<8x128xf32>
    %247 = math.tanh %246 : vector<8x128xf32>
    %cst_103 = arith.constant 5.000000e-01 : f32
    %248 = vector.broadcast %cst_103 : f32 to vector<8x128xf32>
    %249 = arith.mulf %248, %247 : vector<8x128xf32>
    %cst_104 = arith.constant 5.000000e-01 : f32
    %250 = vector.broadcast %cst_104 : f32 to vector<8x128xf32>
    %251 = arith.addf %249, %250 : vector<8x128xf32>
    %252 = vector.extract_strided_slice %243 {offsets = [0, 128], sizes = [8, 128], strides = [1, 1]} : vector<8x512xf32> to vector<8x128xf32>
    %cst_105 = arith.constant 5.000000e-01 : f32
    %253 = vector.broadcast %cst_105 : f32 to vector<8x128xf32>
    %254 = arith.mulf %253, %252 : vector<8x128xf32>
    %255 = math.tanh %254 : vector<8x128xf32>
    %cst_106 = arith.constant 5.000000e-01 : f32
    %256 = vector.broadcast %cst_106 : f32 to vector<8x128xf32>
    %257 = arith.mulf %256, %255 : vector<8x128xf32>
    %cst_107 = arith.constant 5.000000e-01 : f32
    %258 = vector.broadcast %cst_107 : f32 to vector<8x128xf32>
    %259 = arith.addf %257, %258 : vector<8x128xf32>
    %260 = vector.extract_strided_slice %243 {offsets = [0, 256], sizes = [8, 128], strides = [1, 1]} : vector<8x512xf32> to vector<8x128xf32>
    %261 = math.tanh %260 : vector<8x128xf32>
    %262 = vector.extract_strided_slice %243 {offsets = [0, 384], sizes = [8, 128], strides = [1, 1]} : vector<8x512xf32> to vector<8x128xf32>
    %cst_108 = arith.constant 5.000000e-01 : f32
    %263 = vector.broadcast %cst_108 : f32 to vector<8x128xf32>
    %264 = arith.mulf %263, %262 : vector<8x128xf32>
    %265 = math.tanh %264 : vector<8x128xf32>
    %cst_109 = arith.constant 5.000000e-01 : f32
    %266 = vector.broadcast %cst_109 : f32 to vector<8x128xf32>
    %267 = arith.mulf %266, %265 : vector<8x128xf32>
    %cst_110 = arith.constant 5.000000e-01 : f32
    %268 = vector.broadcast %cst_110 : f32 to vector<8x128xf32>
    %269 = arith.addf %267, %268 : vector<8x128xf32>
    %270 = arith.mulf %259, %197 : vector<8x128xf32>
    %271 = arith.mulf %251, %261 : vector<8x128xf32>
    %272 = arith.addf %270, %271 : vector<8x128xf32>
    %273 = math.tanh %272 : vector<8x128xf32>
    %274 = arith.mulf %269, %273 : vector<8x128xf32>
    %275 = arith.truncf %274 : vector<8x128xf32> to vector<8x128xbf16>
    %c0_111 = arith.constant 0 : index
    %c0_112 = arith.constant 0 : index
    %276 = vector.load %arg5[%c0_111, %c0_112] : memref<128x512xbf16, #tpu.memory_space<vmem>>, vector<128x512xbf16>
    %cst_113 = arith.constant dense<0.000000e+00> : vector<8x512xf32>
    %277 = tpu.matmul %275, %276, %cst_113 {dimension_numbers = #tpu.dot_dimension_numbers<[1], [0], [0], [1], [0, 0, 1, 1], [], []>} : vector<8x128xbf16>, vector<128x512xbf16>, vector<8x512xf32> -> vector<8x512xf32>
    %278 = arith.addf %277, %241 : vector<8x512xf32>
    %279 = arith.addf %278, %9 : vector<8x512xf32>
    %280 = vector.extract_strided_slice %279 {offsets = [0, 0], sizes = [8, 128], strides = [1, 1]} : vector<8x512xf32> to vector<8x128xf32>
    %cst_114 = arith.constant 5.000000e-01 : f32
    %281 = vector.broadcast %cst_114 : f32 to vector<8x128xf32>
    %282 = arith.mulf %281, %280 : vector<8x128xf32>
    %283 = math.tanh %282 : vector<8x128xf32>
    %cst_115 = arith.constant 5.000000e-01 : f32
    %284 = vector.broadcast %cst_115 : f32 to vector<8x128xf32>
    %285 = arith.mulf %284, %283 : vector<8x128xf32>
    %cst_116 = arith.constant 5.000000e-01 : f32
    %286 = vector.broadcast %cst_116 : f32 to vector<8x128xf32>
    %287 = arith.addf %285, %286 : vector<8x128xf32>
    %288 = vector.extract_strided_slice %279 {offsets = [0, 128], sizes = [8, 128], strides = [1, 1]} : vector<8x512xf32> to vector<8x128xf32>
    %cst_117 = arith.constant 5.000000e-01 : f32
    %289 = vector.broadcast %cst_117 : f32 to vector<8x128xf32>
    %290 = arith.mulf %289, %288 : vector<8x128xf32>
    %291 = math.tanh %290 : vector<8x128xf32>
    %cst_118 = arith.constant 5.000000e-01 : f32
    %292 = vector.broadcast %cst_118 : f32 to vector<8x128xf32>
    %293 = arith.mulf %292, %291 : vector<8x128xf32>
    %cst_119 = arith.constant 5.000000e-01 : f32
    %294 = vector.broadcast %cst_119 : f32 to vector<8x128xf32>
    %295 = arith.addf %293, %294 : vector<8x128xf32>
    %296 = vector.extract_strided_slice %279 {offsets = [0, 256], sizes = [8, 128], strides = [1, 1]} : vector<8x512xf32> to vector<8x128xf32>
    %297 = math.tanh %296 : vector<8x128xf32>
    %298 = vector.extract_strided_slice %279 {offsets = [0, 384], sizes = [8, 128], strides = [1, 1]} : vector<8x512xf32> to vector<8x128xf32>
    %cst_120 = arith.constant 5.000000e-01 : f32
    %299 = vector.broadcast %cst_120 : f32 to vector<8x128xf32>
    %300 = arith.mulf %299, %298 : vector<8x128xf32>
    %301 = math.tanh %300 : vector<8x128xf32>
    %cst_121 = arith.constant 5.000000e-01 : f32
    %302 = vector.broadcast %cst_121 : f32 to vector<8x128xf32>
    %303 = arith.mulf %302, %301 : vector<8x128xf32>
    %cst_122 = arith.constant 5.000000e-01 : f32
    %304 = vector.broadcast %cst_122 : f32 to vector<8x128xf32>
    %305 = arith.addf %303, %304 : vector<8x128xf32>
    %306 = arith.mulf %295, %233 : vector<8x128xf32>
    %307 = arith.mulf %287, %297 : vector<8x128xf32>
    %308 = arith.addf %306, %307 : vector<8x128xf32>
    %309 = math.tanh %308 : vector<8x128xf32>
    %310 = arith.mulf %305, %309 : vector<8x128xf32>
    %311 = arith.truncf %274 : vector<8x128xf32> to vector<8x128xbf16>
    %c0_123 = arith.constant 0 : index
    %c0_124 = arith.constant 0 : index
    %312 = vector.load %arg4[%c0_123, %c0_124] : memref<128x512xbf16, #tpu.memory_space<vmem>>, vector<128x512xbf16>
    %cst_125 = arith.constant dense<0.000000e+00> : vector<8x512xf32>
    %313 = tpu.matmul %311, %312, %cst_125 {dimension_numbers = #tpu.dot_dimension_numbers<[1], [0], [0], [1], [0, 0, 1, 1], [], []>} : vector<8x128xbf16>, vector<128x512xbf16>, vector<8x512xf32> -> vector<8x512xf32>
    %314 = arith.truncf %310 : vector<8x128xf32> to vector<8x128xbf16>
    %c0_126 = arith.constant 0 : index
    %c0_127 = arith.constant 0 : index
    %315 = vector.load %arg6[%c0_126, %c0_127] : memref<128x512xbf16, #tpu.memory_space<vmem>>, vector<128x512xbf16>
    %cst_128 = arith.constant dense<0.000000e+00> : vector<8x512xf32>
    %316 = tpu.matmul %314, %315, %cst_128 {dimension_numbers = #tpu.dot_dimension_numbers<[1], [0], [0], [1], [0, 0, 1, 1], [], []>} : vector<8x128xbf16>, vector<128x512xbf16>, vector<8x512xf32> -> vector<8x512xf32>
    %c32 = arith.constant 32 : index
    %c0_129 = arith.constant 0 : index
    %317 = vector.load %arg11[%c32, %c0_129] : memref<64x512xf32, #tpu.memory_space<vmem>>, vector<8x512xf32>
    %318 = arith.addf %317, %313 : vector<8x512xf32>
    %319 = vector.extract_strided_slice %318 {offsets = [0, 0], sizes = [8, 128], strides = [1, 1]} : vector<8x512xf32> to vector<8x128xf32>
    %cst_130 = arith.constant 5.000000e-01 : f32
    %320 = vector.broadcast %cst_130 : f32 to vector<8x128xf32>
    %321 = arith.mulf %320, %319 : vector<8x128xf32>
    %322 = math.tanh %321 : vector<8x128xf32>
    %cst_131 = arith.constant 5.000000e-01 : f32
    %323 = vector.broadcast %cst_131 : f32 to vector<8x128xf32>
    %324 = arith.mulf %323, %322 : vector<8x128xf32>
    %cst_132 = arith.constant 5.000000e-01 : f32
    %325 = vector.broadcast %cst_132 : f32 to vector<8x128xf32>
    %326 = arith.addf %324, %325 : vector<8x128xf32>
    %327 = vector.extract_strided_slice %318 {offsets = [0, 128], sizes = [8, 128], strides = [1, 1]} : vector<8x512xf32> to vector<8x128xf32>
    %cst_133 = arith.constant 5.000000e-01 : f32
    %328 = vector.broadcast %cst_133 : f32 to vector<8x128xf32>
    %329 = arith.mulf %328, %327 : vector<8x128xf32>
    %330 = math.tanh %329 : vector<8x128xf32>
    %cst_134 = arith.constant 5.000000e-01 : f32
    %331 = vector.broadcast %cst_134 : f32 to vector<8x128xf32>
    %332 = arith.mulf %331, %330 : vector<8x128xf32>
    %cst_135 = arith.constant 5.000000e-01 : f32
    %333 = vector.broadcast %cst_135 : f32 to vector<8x128xf32>
    %334 = arith.addf %332, %333 : vector<8x128xf32>
    %335 = vector.extract_strided_slice %318 {offsets = [0, 256], sizes = [8, 128], strides = [1, 1]} : vector<8x512xf32> to vector<8x128xf32>
    %336 = math.tanh %335 : vector<8x128xf32>
    %337 = vector.extract_strided_slice %318 {offsets = [0, 384], sizes = [8, 128], strides = [1, 1]} : vector<8x512xf32> to vector<8x128xf32>
    %cst_136 = arith.constant 5.000000e-01 : f32
    %338 = vector.broadcast %cst_136 : f32 to vector<8x128xf32>
    %339 = arith.mulf %338, %337 : vector<8x128xf32>
    %340 = math.tanh %339 : vector<8x128xf32>
    %cst_137 = arith.constant 5.000000e-01 : f32
    %341 = vector.broadcast %cst_137 : f32 to vector<8x128xf32>
    %342 = arith.mulf %341, %340 : vector<8x128xf32>
    %cst_138 = arith.constant 5.000000e-01 : f32
    %343 = vector.broadcast %cst_138 : f32 to vector<8x128xf32>
    %344 = arith.addf %342, %343 : vector<8x128xf32>
    %345 = arith.mulf %334, %272 : vector<8x128xf32>
    %346 = arith.mulf %326, %336 : vector<8x128xf32>
    %347 = arith.addf %345, %346 : vector<8x128xf32>
    %348 = math.tanh %347 : vector<8x128xf32>
    %349 = arith.mulf %344, %348 : vector<8x128xf32>
    %350 = arith.truncf %349 : vector<8x128xf32> to vector<8x128xbf16>
    %c0_139 = arith.constant 0 : index
    %c0_140 = arith.constant 0 : index
    %351 = vector.load %arg5[%c0_139, %c0_140] : memref<128x512xbf16, #tpu.memory_space<vmem>>, vector<128x512xbf16>
    %cst_141 = arith.constant dense<0.000000e+00> : vector<8x512xf32>
    %352 = tpu.matmul %350, %351, %cst_141 {dimension_numbers = #tpu.dot_dimension_numbers<[1], [0], [0], [1], [0, 0, 1, 1], [], []>} : vector<8x128xbf16>, vector<128x512xbf16>, vector<8x512xf32> -> vector<8x512xf32>
    %353 = arith.addf %352, %316 : vector<8x512xf32>
    %354 = arith.addf %353, %9 : vector<8x512xf32>
    %355 = vector.extract_strided_slice %354 {offsets = [0, 0], sizes = [8, 128], strides = [1, 1]} : vector<8x512xf32> to vector<8x128xf32>
    %cst_142 = arith.constant 5.000000e-01 : f32
    %356 = vector.broadcast %cst_142 : f32 to vector<8x128xf32>
    %357 = arith.mulf %356, %355 : vector<8x128xf32>
    %358 = math.tanh %357 : vector<8x128xf32>
    %cst_143 = arith.constant 5.000000e-01 : f32
    %359 = vector.broadcast %cst_143 : f32 to vector<8x128xf32>
    %360 = arith.mulf %359, %358 : vector<8x128xf32>
    %cst_144 = arith.constant 5.000000e-01 : f32
    %361 = vector.broadcast %cst_144 : f32 to vector<8x128xf32>
    %362 = arith.addf %360, %361 : vector<8x128xf32>
    %363 = vector.extract_strided_slice %354 {offsets = [0, 128], sizes = [8, 128], strides = [1, 1]} : vector<8x512xf32> to vector<8x128xf32>
    %cst_145 = arith.constant 5.000000e-01 : f32
    %364 = vector.broadcast %cst_145 : f32 to vector<8x128xf32>
    %365 = arith.mulf %364, %363 : vector<8x128xf32>
    %366 = math.tanh %365 : vector<8x128xf32>
    %cst_146 = arith.constant 5.000000e-01 : f32
    %367 = vector.broadcast %cst_146 : f32 to vector<8x128xf32>
    %368 = arith.mulf %367, %366 : vector<8x128xf32>
    %cst_147 = arith.constant 5.000000e-01 : f32
    %369 = vector.broadcast %cst_147 : f32 to vector<8x128xf32>
    %370 = arith.addf %368, %369 : vector<8x128xf32>
    %371 = vector.extract_strided_slice %354 {offsets = [0, 256], sizes = [8, 128], strides = [1, 1]} : vector<8x512xf32> to vector<8x128xf32>
    %372 = math.tanh %371 : vector<8x128xf32>
    %373 = vector.extract_strided_slice %354 {offsets = [0, 384], sizes = [8, 128], strides = [1, 1]} : vector<8x512xf32> to vector<8x128xf32>
    %cst_148 = arith.constant 5.000000e-01 : f32
    %374 = vector.broadcast %cst_148 : f32 to vector<8x128xf32>
    %375 = arith.mulf %374, %373 : vector<8x128xf32>
    %376 = math.tanh %375 : vector<8x128xf32>
    %cst_149 = arith.constant 5.000000e-01 : f32
    %377 = vector.broadcast %cst_149 : f32 to vector<8x128xf32>
    %378 = arith.mulf %377, %376 : vector<8x128xf32>
    %cst_150 = arith.constant 5.000000e-01 : f32
    %379 = vector.broadcast %cst_150 : f32 to vector<8x128xf32>
    %380 = arith.addf %378, %379 : vector<8x128xf32>
    %381 = arith.mulf %370, %308 : vector<8x128xf32>
    %382 = arith.mulf %362, %372 : vector<8x128xf32>
    %383 = arith.addf %381, %382 : vector<8x128xf32>
    %384 = math.tanh %383 : vector<8x128xf32>
    %385 = arith.mulf %380, %384 : vector<8x128xf32>
    %386 = arith.truncf %349 : vector<8x128xf32> to vector<8x128xbf16>
    %c0_151 = arith.constant 0 : index
    %c0_152 = arith.constant 0 : index
    %387 = vector.load %arg4[%c0_151, %c0_152] : memref<128x512xbf16, #tpu.memory_space<vmem>>, vector<128x512xbf16>
    %cst_153 = arith.constant dense<0.000000e+00> : vector<8x512xf32>
    %388 = tpu.matmul %386, %387, %cst_153 {dimension_numbers = #tpu.dot_dimension_numbers<[1], [0], [0], [1], [0, 0, 1, 1], [], []>} : vector<8x128xbf16>, vector<128x512xbf16>, vector<8x512xf32> -> vector<8x512xf32>
    %389 = arith.truncf %385 : vector<8x128xf32> to vector<8x128xbf16>
    %c0_154 = arith.constant 0 : index
    %c0_155 = arith.constant 0 : index
    %390 = vector.load %arg6[%c0_154, %c0_155] : memref<128x512xbf16, #tpu.memory_space<vmem>>, vector<128x512xbf16>
    %cst_156 = arith.constant dense<0.000000e+00> : vector<8x512xf32>
    %391 = tpu.matmul %389, %390, %cst_156 {dimension_numbers = #tpu.dot_dimension_numbers<[1], [0], [0], [1], [0, 0, 1, 1], [], []>} : vector<8x128xbf16>, vector<128x512xbf16>, vector<8x512xf32> -> vector<8x512xf32>
    %c40 = arith.constant 40 : index
    %c0_157 = arith.constant 0 : index
    %392 = vector.load %arg11[%c40, %c0_157] : memref<64x512xf32, #tpu.memory_space<vmem>>, vector<8x512xf32>
    %393 = arith.addf %392, %388 : vector<8x512xf32>
    %394 = vector.extract_strided_slice %393 {offsets = [0, 0], sizes = [8, 128], strides = [1, 1]} : vector<8x512xf32> to vector<8x128xf32>
    %cst_158 = arith.constant 5.000000e-01 : f32
    %395 = vector.broadcast %cst_158 : f32 to vector<8x128xf32>
    %396 = arith.mulf %395, %394 : vector<8x128xf32>
    %397 = math.tanh %396 : vector<8x128xf32>
    %cst_159 = arith.constant 5.000000e-01 : f32
    %398 = vector.broadcast %cst_159 : f32 to vector<8x128xf32>
    %399 = arith.mulf %398, %397 : vector<8x128xf32>
    %cst_160 = arith.constant 5.000000e-01 : f32
    %400 = vector.broadcast %cst_160 : f32 to vector<8x128xf32>
    %401 = arith.addf %399, %400 : vector<8x128xf32>
    %402 = vector.extract_strided_slice %393 {offsets = [0, 128], sizes = [8, 128], strides = [1, 1]} : vector<8x512xf32> to vector<8x128xf32>
    %cst_161 = arith.constant 5.000000e-01 : f32
    %403 = vector.broadcast %cst_161 : f32 to vector<8x128xf32>
    %404 = arith.mulf %403, %402 : vector<8x128xf32>
    %405 = math.tanh %404 : vector<8x128xf32>
    %cst_162 = arith.constant 5.000000e-01 : f32
    %406 = vector.broadcast %cst_162 : f32 to vector<8x128xf32>
    %407 = arith.mulf %406, %405 : vector<8x128xf32>
    %cst_163 = arith.constant 5.000000e-01 : f32
    %408 = vector.broadcast %cst_163 : f32 to vector<8x128xf32>
    %409 = arith.addf %407, %408 : vector<8x128xf32>
    %410 = vector.extract_strided_slice %393 {offsets = [0, 256], sizes = [8, 128], strides = [1, 1]} : vector<8x512xf32> to vector<8x128xf32>
    %411 = math.tanh %410 : vector<8x128xf32>
    %412 = vector.extract_strided_slice %393 {offsets = [0, 384], sizes = [8, 128], strides = [1, 1]} : vector<8x512xf32> to vector<8x128xf32>
    %cst_164 = arith.constant 5.000000e-01 : f32
    %413 = vector.broadcast %cst_164 : f32 to vector<8x128xf32>
    %414 = arith.mulf %413, %412 : vector<8x128xf32>
    %415 = math.tanh %414 : vector<8x128xf32>
    %cst_165 = arith.constant 5.000000e-01 : f32
    %416 = vector.broadcast %cst_165 : f32 to vector<8x128xf32>
    %417 = arith.mulf %416, %415 : vector<8x128xf32>
    %cst_166 = arith.constant 5.000000e-01 : f32
    %418 = vector.broadcast %cst_166 : f32 to vector<8x128xf32>
    %419 = arith.addf %417, %418 : vector<8x128xf32>
    %420 = arith.mulf %409, %347 : vector<8x128xf32>
    %421 = arith.mulf %401, %411 : vector<8x128xf32>
    %422 = arith.addf %420, %421 : vector<8x128xf32>
    %423 = math.tanh %422 : vector<8x128xf32>
    %424 = arith.mulf %419, %423 : vector<8x128xf32>
    %425 = arith.truncf %424 : vector<8x128xf32> to vector<8x128xbf16>
    %c0_167 = arith.constant 0 : index
    %c0_168 = arith.constant 0 : index
    %426 = vector.load %arg5[%c0_167, %c0_168] : memref<128x512xbf16, #tpu.memory_space<vmem>>, vector<128x512xbf16>
    %cst_169 = arith.constant dense<0.000000e+00> : vector<8x512xf32>
    %427 = tpu.matmul %425, %426, %cst_169 {dimension_numbers = #tpu.dot_dimension_numbers<[1], [0], [0], [1], [0, 0, 1, 1], [], []>} : vector<8x128xbf16>, vector<128x512xbf16>, vector<8x512xf32> -> vector<8x512xf32>
    %428 = arith.addf %427, %391 : vector<8x512xf32>
    %429 = arith.addf %428, %9 : vector<8x512xf32>
    %430 = vector.extract_strided_slice %429 {offsets = [0, 0], sizes = [8, 128], strides = [1, 1]} : vector<8x512xf32> to vector<8x128xf32>
    %cst_170 = arith.constant 5.000000e-01 : f32
    %431 = vector.broadcast %cst_170 : f32 to vector<8x128xf32>
    %432 = arith.mulf %431, %430 : vector<8x128xf32>
    %433 = math.tanh %432 : vector<8x128xf32>
    %cst_171 = arith.constant 5.000000e-01 : f32
    %434 = vector.broadcast %cst_171 : f32 to vector<8x128xf32>
    %435 = arith.mulf %434, %433 : vector<8x128xf32>
    %cst_172 = arith.constant 5.000000e-01 : f32
    %436 = vector.broadcast %cst_172 : f32 to vector<8x128xf32>
    %437 = arith.addf %435, %436 : vector<8x128xf32>
    %438 = vector.extract_strided_slice %429 {offsets = [0, 128], sizes = [8, 128], strides = [1, 1]} : vector<8x512xf32> to vector<8x128xf32>
    %cst_173 = arith.constant 5.000000e-01 : f32
    %439 = vector.broadcast %cst_173 : f32 to vector<8x128xf32>
    %440 = arith.mulf %439, %438 : vector<8x128xf32>
    %441 = math.tanh %440 : vector<8x128xf32>
    %cst_174 = arith.constant 5.000000e-01 : f32
    %442 = vector.broadcast %cst_174 : f32 to vector<8x128xf32>
    %443 = arith.mulf %442, %441 : vector<8x128xf32>
    %cst_175 = arith.constant 5.000000e-01 : f32
    %444 = vector.broadcast %cst_175 : f32 to vector<8x128xf32>
    %445 = arith.addf %443, %444 : vector<8x128xf32>
    %446 = vector.extract_strided_slice %429 {offsets = [0, 256], sizes = [8, 128], strides = [1, 1]} : vector<8x512xf32> to vector<8x128xf32>
    %447 = math.tanh %446 : vector<8x128xf32>
    %448 = vector.extract_strided_slice %429 {offsets = [0, 384], sizes = [8, 128], strides = [1, 1]} : vector<8x512xf32> to vector<8x128xf32>
    %cst_176 = arith.constant 5.000000e-01 : f32
    %449 = vector.broadcast %cst_176 : f32 to vector<8x128xf32>
    %450 = arith.mulf %449, %448 : vector<8x128xf32>
    %451 = math.tanh %450 : vector<8x128xf32>
    %cst_177 = arith.constant 5.000000e-01 : f32
    %452 = vector.broadcast %cst_177 : f32 to vector<8x128xf32>
    %453 = arith.mulf %452, %451 : vector<8x128xf32>
    %cst_178 = arith.constant 5.000000e-01 : f32
    %454 = vector.broadcast %cst_178 : f32 to vector<8x128xf32>
    %455 = arith.addf %453, %454 : vector<8x128xf32>
    %456 = arith.mulf %445, %383 : vector<8x128xf32>
    %457 = arith.mulf %437, %447 : vector<8x128xf32>
    %458 = arith.addf %456, %457 : vector<8x128xf32>
    %459 = math.tanh %458 : vector<8x128xf32>
    %460 = arith.mulf %455, %459 : vector<8x128xf32>
    %461 = arith.truncf %424 : vector<8x128xf32> to vector<8x128xbf16>
    %c0_179 = arith.constant 0 : index
    %c0_180 = arith.constant 0 : index
    %462 = vector.load %arg4[%c0_179, %c0_180] : memref<128x512xbf16, #tpu.memory_space<vmem>>, vector<128x512xbf16>
    %cst_181 = arith.constant dense<0.000000e+00> : vector<8x512xf32>
    %463 = tpu.matmul %461, %462, %cst_181 {dimension_numbers = #tpu.dot_dimension_numbers<[1], [0], [0], [1], [0, 0, 1, 1], [], []>} : vector<8x128xbf16>, vector<128x512xbf16>, vector<8x512xf32> -> vector<8x512xf32>
    %464 = arith.truncf %460 : vector<8x128xf32> to vector<8x128xbf16>
    %c0_182 = arith.constant 0 : index
    %c0_183 = arith.constant 0 : index
    %465 = vector.load %arg6[%c0_182, %c0_183] : memref<128x512xbf16, #tpu.memory_space<vmem>>, vector<128x512xbf16>
    %cst_184 = arith.constant dense<0.000000e+00> : vector<8x512xf32>
    %466 = tpu.matmul %464, %465, %cst_184 {dimension_numbers = #tpu.dot_dimension_numbers<[1], [0], [0], [1], [0, 0, 1, 1], [], []>} : vector<8x128xbf16>, vector<128x512xbf16>, vector<8x512xf32> -> vector<8x512xf32>
    %c48 = arith.constant 48 : index
    %c0_185 = arith.constant 0 : index
    %467 = vector.load %arg11[%c48, %c0_185] : memref<64x512xf32, #tpu.memory_space<vmem>>, vector<8x512xf32>
    %468 = arith.addf %467, %463 : vector<8x512xf32>
    %469 = vector.extract_strided_slice %468 {offsets = [0, 0], sizes = [8, 128], strides = [1, 1]} : vector<8x512xf32> to vector<8x128xf32>
    %cst_186 = arith.constant 5.000000e-01 : f32
    %470 = vector.broadcast %cst_186 : f32 to vector<8x128xf32>
    %471 = arith.mulf %470, %469 : vector<8x128xf32>
    %472 = math.tanh %471 : vector<8x128xf32>
    %cst_187 = arith.constant 5.000000e-01 : f32
    %473 = vector.broadcast %cst_187 : f32 to vector<8x128xf32>
    %474 = arith.mulf %473, %472 : vector<8x128xf32>
    %cst_188 = arith.constant 5.000000e-01 : f32
    %475 = vector.broadcast %cst_188 : f32 to vector<8x128xf32>
    %476 = arith.addf %474, %475 : vector<8x128xf32>
    %477 = vector.extract_strided_slice %468 {offsets = [0, 128], sizes = [8, 128], strides = [1, 1]} : vector<8x512xf32> to vector<8x128xf32>
    %cst_189 = arith.constant 5.000000e-01 : f32
    %478 = vector.broadcast %cst_189 : f32 to vector<8x128xf32>
    %479 = arith.mulf %478, %477 : vector<8x128xf32>
    %480 = math.tanh %479 : vector<8x128xf32>
    %cst_190 = arith.constant 5.000000e-01 : f32
    %481 = vector.broadcast %cst_190 : f32 to vector<8x128xf32>
    %482 = arith.mulf %481, %480 : vector<8x128xf32>
    %cst_191 = arith.constant 5.000000e-01 : f32
    %483 = vector.broadcast %cst_191 : f32 to vector<8x128xf32>
    %484 = arith.addf %482, %483 : vector<8x128xf32>
    %485 = vector.extract_strided_slice %468 {offsets = [0, 256], sizes = [8, 128], strides = [1, 1]} : vector<8x512xf32> to vector<8x128xf32>
    %486 = math.tanh %485 : vector<8x128xf32>
    %487 = vector.extract_strided_slice %468 {offsets = [0, 384], sizes = [8, 128], strides = [1, 1]} : vector<8x512xf32> to vector<8x128xf32>
    %cst_192 = arith.constant 5.000000e-01 : f32
    %488 = vector.broadcast %cst_192 : f32 to vector<8x128xf32>
    %489 = arith.mulf %488, %487 : vector<8x128xf32>
    %490 = math.tanh %489 : vector<8x128xf32>
    %cst_193 = arith.constant 5.000000e-01 : f32
    %491 = vector.broadcast %cst_193 : f32 to vector<8x128xf32>
    %492 = arith.mulf %491, %490 : vector<8x128xf32>
    %cst_194 = arith.constant 5.000000e-01 : f32
    %493 = vector.broadcast %cst_194 : f32 to vector<8x128xf32>
    %494 = arith.addf %492, %493 : vector<8x128xf32>
    %495 = arith.mulf %484, %422 : vector<8x128xf32>
    %496 = arith.mulf %476, %486 : vector<8x128xf32>
    %497 = arith.addf %495, %496 : vector<8x128xf32>
    %498 = math.tanh %497 : vector<8x128xf32>
    %499 = arith.mulf %494, %498 : vector<8x128xf32>
    %500 = arith.truncf %499 : vector<8x128xf32> to vector<8x128xbf16>
    %c0_195 = arith.constant 0 : index
    %c0_196 = arith.constant 0 : index
    %501 = vector.load %arg5[%c0_195, %c0_196] : memref<128x512xbf16, #tpu.memory_space<vmem>>, vector<128x512xbf16>
    %cst_197 = arith.constant dense<0.000000e+00> : vector<8x512xf32>
    %502 = tpu.matmul %500, %501, %cst_197 {dimension_numbers = #tpu.dot_dimension_numbers<[1], [0], [0], [1], [0, 0, 1, 1], [], []>} : vector<8x128xbf16>, vector<128x512xbf16>, vector<8x512xf32> -> vector<8x512xf32>
    %503 = arith.addf %502, %466 : vector<8x512xf32>
    %504 = arith.addf %503, %9 : vector<8x512xf32>
    %505 = vector.extract_strided_slice %504 {offsets = [0, 0], sizes = [8, 128], strides = [1, 1]} : vector<8x512xf32> to vector<8x128xf32>
    %cst_198 = arith.constant 5.000000e-01 : f32
    %506 = vector.broadcast %cst_198 : f32 to vector<8x128xf32>
    %507 = arith.mulf %506, %505 : vector<8x128xf32>
    %508 = math.tanh %507 : vector<8x128xf32>
    %cst_199 = arith.constant 5.000000e-01 : f32
    %509 = vector.broadcast %cst_199 : f32 to vector<8x128xf32>
    %510 = arith.mulf %509, %508 : vector<8x128xf32>
    %cst_200 = arith.constant 5.000000e-01 : f32
    %511 = vector.broadcast %cst_200 : f32 to vector<8x128xf32>
    %512 = arith.addf %510, %511 : vector<8x128xf32>
    %513 = vector.extract_strided_slice %504 {offsets = [0, 128], sizes = [8, 128], strides = [1, 1]} : vector<8x512xf32> to vector<8x128xf32>
    %cst_201 = arith.constant 5.000000e-01 : f32
    %514 = vector.broadcast %cst_201 : f32 to vector<8x128xf32>
    %515 = arith.mulf %514, %513 : vector<8x128xf32>
    %516 = math.tanh %515 : vector<8x128xf32>
    %cst_202 = arith.constant 5.000000e-01 : f32
    %517 = vector.broadcast %cst_202 : f32 to vector<8x128xf32>
    %518 = arith.mulf %517, %516 : vector<8x128xf32>
    %cst_203 = arith.constant 5.000000e-01 : f32
    %519 = vector.broadcast %cst_203 : f32 to vector<8x128xf32>
    %520 = arith.addf %518, %519 : vector<8x128xf32>
    %521 = vector.extract_strided_slice %504 {offsets = [0, 256], sizes = [8, 128], strides = [1, 1]} : vector<8x512xf32> to vector<8x128xf32>
    %522 = math.tanh %521 : vector<8x128xf32>
    %523 = vector.extract_strided_slice %504 {offsets = [0, 384], sizes = [8, 128], strides = [1, 1]} : vector<8x512xf32> to vector<8x128xf32>
    %cst_204 = arith.constant 5.000000e-01 : f32
    %524 = vector.broadcast %cst_204 : f32 to vector<8x128xf32>
    %525 = arith.mulf %524, %523 : vector<8x128xf32>
    %526 = math.tanh %525 : vector<8x128xf32>
    %cst_205 = arith.constant 5.000000e-01 : f32
    %527 = vector.broadcast %cst_205 : f32 to vector<8x128xf32>
    %528 = arith.mulf %527, %526 : vector<8x128xf32>
    %cst_206 = arith.constant 5.000000e-01 : f32
    %529 = vector.broadcast %cst_206 : f32 to vector<8x128xf32>
    %530 = arith.addf %528, %529 : vector<8x128xf32>
    %531 = arith.mulf %520, %458 : vector<8x128xf32>
    %532 = arith.mulf %512, %522 : vector<8x128xf32>
    %533 = arith.addf %531, %532 : vector<8x128xf32>
    %534 = math.tanh %533 : vector<8x128xf32>
    %535 = arith.mulf %530, %534 : vector<8x128xf32>
    %536 = arith.truncf %499 : vector<8x128xf32> to vector<8x128xbf16>
    %c0_207 = arith.constant 0 : index
    %c0_208 = arith.constant 0 : index
    %537 = vector.load %arg4[%c0_207, %c0_208] : memref<128x512xbf16, #tpu.memory_space<vmem>>, vector<128x512xbf16>
    %cst_209 = arith.constant dense<0.000000e+00> : vector<8x512xf32>
    %538 = tpu.matmul %536, %537, %cst_209 {dimension_numbers = #tpu.dot_dimension_numbers<[1], [0], [0], [1], [0, 0, 1, 1], [], []>} : vector<8x128xbf16>, vector<128x512xbf16>, vector<8x512xf32> -> vector<8x512xf32>
    %539 = arith.truncf %535 : vector<8x128xf32> to vector<8x128xbf16>
    %c0_210 = arith.constant 0 : index
    %c0_211 = arith.constant 0 : index
    %540 = vector.load %arg6[%c0_210, %c0_211] : memref<128x512xbf16, #tpu.memory_space<vmem>>, vector<128x512xbf16>
    %cst_212 = arith.constant dense<0.000000e+00> : vector<8x512xf32>
    %541 = tpu.matmul %539, %540, %cst_212 {dimension_numbers = #tpu.dot_dimension_numbers<[1], [0], [0], [1], [0, 0, 1, 1], [], []>} : vector<8x128xbf16>, vector<128x512xbf16>, vector<8x512xf32> -> vector<8x512xf32>
    %c56 = arith.constant 56 : index
    %c0_213 = arith.constant 0 : index
    %542 = vector.load %arg11[%c56, %c0_213] : memref<64x512xf32, #tpu.memory_space<vmem>>, vector<8x512xf32>
    %543 = arith.addf %542, %538 : vector<8x512xf32>
    %544 = vector.extract_strided_slice %543 {offsets = [0, 0], sizes = [8, 128], strides = [1, 1]} : vector<8x512xf32> to vector<8x128xf32>
    %cst_214 = arith.constant 5.000000e-01 : f32
    %545 = vector.broadcast %cst_214 : f32 to vector<8x128xf32>
    %546 = arith.mulf %545, %544 : vector<8x128xf32>
    %547 = math.tanh %546 : vector<8x128xf32>
    %cst_215 = arith.constant 5.000000e-01 : f32
    %548 = vector.broadcast %cst_215 : f32 to vector<8x128xf32>
    %549 = arith.mulf %548, %547 : vector<8x128xf32>
    %cst_216 = arith.constant 5.000000e-01 : f32
    %550 = vector.broadcast %cst_216 : f32 to vector<8x128xf32>
    %551 = arith.addf %549, %550 : vector<8x128xf32>
    %552 = vector.extract_strided_slice %543 {offsets = [0, 128], sizes = [8, 128], strides = [1, 1]} : vector<8x512xf32> to vector<8x128xf32>
    %cst_217 = arith.constant 5.000000e-01 : f32
    %553 = vector.broadcast %cst_217 : f32 to vector<8x128xf32>
    %554 = arith.mulf %553, %552 : vector<8x128xf32>
    %555 = math.tanh %554 : vector<8x128xf32>
    %cst_218 = arith.constant 5.000000e-01 : f32
    %556 = vector.broadcast %cst_218 : f32 to vector<8x128xf32>
    %557 = arith.mulf %556, %555 : vector<8x128xf32>
    %cst_219 = arith.constant 5.000000e-01 : f32
    %558 = vector.broadcast %cst_219 : f32 to vector<8x128xf32>
    %559 = arith.addf %557, %558 : vector<8x128xf32>
    %560 = vector.extract_strided_slice %543 {offsets = [0, 256], sizes = [8, 128], strides = [1, 1]} : vector<8x512xf32> to vector<8x128xf32>
    %561 = math.tanh %560 : vector<8x128xf32>
    %562 = vector.extract_strided_slice %543 {offsets = [0, 384], sizes = [8, 128], strides = [1, 1]} : vector<8x512xf32> to vector<8x128xf32>
    %cst_220 = arith.constant 5.000000e-01 : f32
    %563 = vector.broadcast %cst_220 : f32 to vector<8x128xf32>
    %564 = arith.mulf %563, %562 : vector<8x128xf32>
    %565 = math.tanh %564 : vector<8x128xf32>
    %cst_221 = arith.constant 5.000000e-01 : f32
    %566 = vector.broadcast %cst_221 : f32 to vector<8x128xf32>
    %567 = arith.mulf %566, %565 : vector<8x128xf32>
    %cst_222 = arith.constant 5.000000e-01 : f32
    %568 = vector.broadcast %cst_222 : f32 to vector<8x128xf32>
    %569 = arith.addf %567, %568 : vector<8x128xf32>
    %570 = arith.mulf %559, %497 : vector<8x128xf32>
    %571 = arith.mulf %551, %561 : vector<8x128xf32>
    %572 = arith.addf %570, %571 : vector<8x128xf32>
    %573 = math.tanh %572 : vector<8x128xf32>
    %574 = arith.mulf %569, %573 : vector<8x128xf32>
    %575 = arith.truncf %574 : vector<8x128xf32> to vector<8x128xbf16>
    %c0_223 = arith.constant 0 : index
    %c0_224 = arith.constant 0 : index
    %576 = vector.load %arg5[%c0_223, %c0_224] : memref<128x512xbf16, #tpu.memory_space<vmem>>, vector<128x512xbf16>
    %cst_225 = arith.constant dense<0.000000e+00> : vector<8x512xf32>
    %577 = tpu.matmul %575, %576, %cst_225 {dimension_numbers = #tpu.dot_dimension_numbers<[1], [0], [0], [1], [0, 0, 1, 1], [], []>} : vector<8x128xbf16>, vector<128x512xbf16>, vector<8x512xf32> -> vector<8x512xf32>
    %578 = arith.addf %577, %541 : vector<8x512xf32>
    %579 = arith.addf %578, %9 : vector<8x512xf32>
    %580 = vector.extract_strided_slice %579 {offsets = [0, 0], sizes = [8, 128], strides = [1, 1]} : vector<8x512xf32> to vector<8x128xf32>
    %cst_226 = arith.constant 5.000000e-01 : f32
    %581 = vector.broadcast %cst_226 : f32 to vector<8x128xf32>
    %582 = arith.mulf %581, %580 : vector<8x128xf32>
    %583 = math.tanh %582 : vector<8x128xf32>
    %cst_227 = arith.constant 5.000000e-01 : f32
    %584 = vector.broadcast %cst_227 : f32 to vector<8x128xf32>
    %585 = arith.mulf %584, %583 : vector<8x128xf32>
    %cst_228 = arith.constant 5.000000e-01 : f32
    %586 = vector.broadcast %cst_228 : f32 to vector<8x128xf32>
    %587 = arith.addf %585, %586 : vector<8x128xf32>
    %588 = vector.extract_strided_slice %579 {offsets = [0, 128], sizes = [8, 128], strides = [1, 1]} : vector<8x512xf32> to vector<8x128xf32>
    %cst_229 = arith.constant 5.000000e-01 : f32
    %589 = vector.broadcast %cst_229 : f32 to vector<8x128xf32>
    %590 = arith.mulf %589, %588 : vector<8x128xf32>
    %591 = math.tanh %590 : vector<8x128xf32>
    %cst_230 = arith.constant 5.000000e-01 : f32
    %592 = vector.broadcast %cst_230 : f32 to vector<8x128xf32>
    %593 = arith.mulf %592, %591 : vector<8x128xf32>
    %cst_231 = arith.constant 5.000000e-01 : f32
    %594 = vector.broadcast %cst_231 : f32 to vector<8x128xf32>
    %595 = arith.addf %593, %594 : vector<8x128xf32>
    %596 = vector.extract_strided_slice %579 {offsets = [0, 256], sizes = [8, 128], strides = [1, 1]} : vector<8x512xf32> to vector<8x128xf32>
    %597 = math.tanh %596 : vector<8x128xf32>
    %598 = vector.extract_strided_slice %579 {offsets = [0, 384], sizes = [8, 128], strides = [1, 1]} : vector<8x512xf32> to vector<8x128xf32>
    %cst_232 = arith.constant 5.000000e-01 : f32
    %599 = vector.broadcast %cst_232 : f32 to vector<8x128xf32>
    %600 = arith.mulf %599, %598 : vector<8x128xf32>
    %601 = math.tanh %600 : vector<8x128xf32>
    %cst_233 = arith.constant 5.000000e-01 : f32
    %602 = vector.broadcast %cst_233 : f32 to vector<8x128xf32>
    %603 = arith.mulf %602, %601 : vector<8x128xf32>
    %cst_234 = arith.constant 5.000000e-01 : f32
    %604 = vector.broadcast %cst_234 : f32 to vector<8x128xf32>
    %605 = arith.addf %603, %604 : vector<8x128xf32>
    %606 = arith.mulf %595, %533 : vector<8x128xf32>
    %607 = arith.mulf %587, %597 : vector<8x128xf32>
    %608 = arith.addf %606, %607 : vector<8x128xf32>
    %609 = math.tanh %608 : vector<8x128xf32>
    %610 = arith.mulf %605, %609 : vector<8x128xf32>
    %c0_235 = arith.constant 0 : index
    %c0_236 = arith.constant 0 : index
    %611 = vector.load %arg8[%c0_235, %c0_236] : memref<128x128xf32, #tpu.memory_space<vmem>>, vector<128x128xf32>
    %cst_237 = arith.constant dense<0.000000e+00> : vector<8x128xf32>
    %612 = tpu.matmul %610, %611, %cst_237 {dimension_numbers = #tpu.dot_dimension_numbers<[1], [0], [0], [1], [0, 0, 1, 1], [], []>} : vector<8x128xf32>, vector<128x128xf32>, vector<8x128xf32> -> vector<8x128xf32>
    %c0_238 = arith.constant 0 : index
    %c0_239 = arith.constant 0 : index
    %613 = vector.load %arg9[%c0_238, %c0_239] : memref<1x128xf32, #tpu.memory_space<vmem>>, vector<1x128xf32>
    %614 = vector.broadcast %613 : vector<1x128xf32> to vector<8x128xf32>
    %615 = arith.addf %612, %614 : vector<8x128xf32>
    %c0_240 = arith.constant 0 : index
    %c0_241 = arith.constant 0 : index
    %616 = vector.load %arg10[%c0_240, %c0_241] : memref<8x128xf32, #tpu.memory_space<vmem>>, vector<8x128xf32>
    tpu.vector_store %arg10[%c0_240, %c0_241], %615 {strides = array<i32>} : memref<8x128xf32, #tpu.memory_space<vmem>>, vector<8x128xf32>,
    return
  }
  func.func @transform_0(%arg0: i32) -> (i32, i32) {
    %c0_i32 = arith.constant 0 : i32
    %c0_i32_0 = arith.constant 0 : i32
    %c0_i32_1 = arith.constant 0 : i32
    return %c0_i32, %c0_i32_0 : i32, i32
  }
  func.func @transform_1(%arg0: i32) -> (i32, i32) {
    %c0_i32 = arith.constant 0 : i32
    %c0_i32_0 = arith.constant 0 : i32
    %c0_i32_1 = arith.constant 0 : i32
    return %c0_i32, %c0_i32_0 : i32, i32
  }
  func.func @transform_2(%arg0: i32) -> (i32, i32) {
    %c0_i32 = arith.constant 0 : i32
    %c0_i32_0 = arith.constant 0 : i32
    %c0_i32_1 = arith.constant 0 : i32
    return %c0_i32, %c0_i32_0 : i32, i32
  }
  func.func @transform_3(%arg0: i32) -> (i32, i32) {
    %c0_i32 = arith.constant 0 : i32
    %c0_i32_0 = arith.constant 0 : i32
    %c0_i32_1 = arith.constant 0 : i32
    return %c0_i32, %c0_i32_0 : i32, i32
  }
  func.func @transform_4(%arg0: i32) -> (i32, i32) {
    %c0_i32 = arith.constant 0 : i32
    %c0_i32_0 = arith.constant 0 : i32
    %c0_i32_1 = arith.constant 0 : i32
    return %c0_i32, %c0_i32_0 : i32, i32
  }
  func.func @transform_5(%arg0: i32) -> (i32, i32) {
    %c0_i32 = arith.constant 0 : i32
    %c0_i32_0 = arith.constant 0 : i32
    %c0_i32_1 = arith.constant 0 : i32
    return %c0_i32, %c0_i32_0 : i32, i32
  }
  func.func @transform_6(%arg0: i32) -> (i32, i32) {
    %c0_i32 = arith.constant 0 : i32
    %c0_i32_0 = arith.constant 0 : i32
    %c0_i32_1 = arith.constant 0 : i32
    return %c0_i32, %c0_i32_0 : i32, i32
  }
  func.func @transform_7(%arg0: i32) -> (i32, i32) {
    %c0_i32 = arith.constant 0 : i32
    %c0_i32_0 = arith.constant 0 : i32
    %c0_i32_1 = arith.constant 0 : i32
    return %c0_i32, %c0_i32_0 : i32, i32
  }
  func.func @transform_8(%arg0: i32) -> (i32, i32) {
    %c0_i32 = arith.constant 0 : i32
    %c0_i32_0 = arith.constant 0 : i32
    %c0_i32_1 = arith.constant 0 : i32
    return %c0_i32, %c0_i32_0 : i32, i32
  }
  func.func @transform_9(%arg0: i32) -> (i32, i32) {
    %c0_i32 = arith.constant 0 : i32
    %c0_i32_0 = arith.constant 0 : i32
    %c0_i32_1 = arith.constant 0 : i32
    return %c0_i32, %c0_i32_0 : i32, i32
  }
}

</mosaic_0001>

<llo_original>
// kernel: tpu_custom_call.1
$region0: #{tpu_custom_call.1}
  #allocation0 [shape = 'u32[]', space=smem, size = 0x4, offset = 0x4, fixed_abs, tag = 'smem constant byte address 0x4 - core index']
  #allocation1 [shape = 'u32[72,128]{1,0:T(1,128)}', space=vmem, size = 0x9000, scoped, tag = 'internal scratch']
  #allocation2 [shape = 'f32[64,512]{1,0:T(8,128)}', space=vmem, size = 0x20000, scoped, tag = 'scratch operand']
  %s0 = inlined_call_operand.vmem [shape: f32[64,14], index: 0, kind: input, shape index: {}]
  %s1 = inlined_call_operand.vmem [shape: f32[14,512], index: 1, kind: input, shape index: {}]
  %s2 = inlined_call_operand.vmem [shape: f32[1,512], index: 2, kind: input, shape index: {}]
  %s3 = inlined_call_operand.hbm [shape: bf16[128,512], index: 3, kind: input, shape index: {}]
  %s4 = inlined_call_operand.hbm [shape: bf16[128,512], index: 4, kind: input, shape index: {}]
  %s5 = inlined_call_operand.hbm [shape: bf16[128,512], index: 5, kind: input, shape index: {}]
  %s6 = inlined_call_operand.vmem [shape: f32[1,512], index: 6, kind: input, shape index: {}]
  %s7 = inlined_call_operand.hbm [shape: f32[128,128], index: 7, kind: input, shape index: {}]
  %s8 = inlined_call_operand.vmem [shape: f32[1,128], index: 8, kind: input, shape index: {}]
  %s9 = inlined_call_operand.hbm [shape: f32[8,128], index: 9, kind: output, shape index: {}]
  %s10 = sld [smem:[#allocation0]]
  $region62: #{tpu_custom_call.1} parent=0
    _
  %s12 = ssub.s32 1, %s10
  %s13 = scalar_select 0, %s12, %s10
  $region1: #{tpu_custom_call.1} parent=0
    #allocation3 [shape = 'u8[131072]{0}', space=vmem, size = 0x20000, scoped, tag = 'input window, operand 3, single buffered']
    #allocation4 [shape = 's32[1]{0}', space=sflag, size = 0x4, scoped, tag = 'scoped memory for tpu_custom_call.1']
    #allocation5 [shape = 's32[1]{0}', space=sflag, size = 0x4, scoped, tag = 'scoped memory for tpu_custom_call.1']
    #allocation6 [shape = 'u8[131072]{0}', space=vmem, size = 0x20000, scoped, tag = 'input window, operand 4, single buffered']
    #allocation7 [shape = 's32[1]{0}', space=sflag, size = 0x4, scoped, tag = 'scoped memory for tpu_custom_call.1']
    #allocation8 [shape = 'u8[131072]{0}', space=vmem, size = 0x20000, scoped, tag = 'input window, operand 5, single buffered']
    #allocation9 [shape = 'u8[65536]{0}', space=vmem, size = 0x10000, scoped, tag = 'input window, operand 7, single buffered']
    #allocation10 [shape = 's32[1]{0}', space=sflag, size = 0x4, scoped, tag = 'scoped memory for tpu_custom_call.1']
    #allocation11 [shape = 'u8[4096]{0}', space=vmem, size = 0x1000, scoped, tag = 'output window, operand 0, single buffered']
    %14 = vsyncpa [#allocation4], 0
    %15 = vsyncpa [#allocation7], 0
    %16 = vsyncpa [#allocation10], 0
    %17 = vsyncpa [#allocation5], 0
    // Predicated region
    $region2: #{tpu_custom_call.1} parent=1 // pred_check
      _
    $region3: #{tpu_custom_call.1} parent=1 // pred_check_branch
      %19 = sbr.rel (0) target = $region5
    $region4: #{tpu_custom_call.1} parent=1 // pred_region
      _
    $region5: #{tpu_custom_call.1} parent=1 // pred_fallthru
      _
    // Predicated region
    $region6: #{tpu_custom_call.1} parent=1 // pred_check
      _
    $region7: #{tpu_custom_call.1} parent=1 // pred_check_branch
      %21 = sbr.rel (0) target = $region9
    $region8: #{tpu_custom_call.1} parent=1 // pred_region
      _
    $region9: #{tpu_custom_call.1} parent=1 // pred_fallthru
      _
    // Predicated region
    $region10: #{tpu_custom_call.1} parent=1 // pred_check
      _
    $region11: #{tpu_custom_call.1} parent=1 // pred_check_branch
      %23 = sbr.rel (0) target = $region13
    $region12: #{tpu_custom_call.1} parent=1 // pred_region
      _
    $region13: #{tpu_custom_call.1} parent=1 // pred_fallthru
      _
    // Predicated region
    $region14: #{tpu_custom_call.1} parent=1 // pred_check
      _
    $region15: #{tpu_custom_call.1} parent=1 // pred_check_branch
      %25 = sbr.rel (0) target = $region17
    $region16: #{tpu_custom_call.1} parent=1 // pred_region
      %27 = vsyncadd [#allocation4], 0
      %s28 = sshll.u32 %s3, 4
      %s29 = int_to_ptr.hbm [resolvable:$true] %s28
      %s30 = sshll.u32 [#allocation3], 4
      %s31 = int_to_ptr.vmem [resolvable:$true] %s30
      %36 = dma.hbm_to_vmem [thread:$0]  %s29, 4096, %s31, [#allocation4], 256, 256, 16
    $region17: #{tpu_custom_call.1} parent=1 // pred_fallthru
      _
    // Predicated region
    $region18: #{tpu_custom_call.1} parent=1 // pred_check
      _
    $region19: #{tpu_custom_call.1} parent=1 // pred_check_branch
      %38 = sbr.rel (0) target = $region21
    $region20: #{tpu_custom_call.1} parent=1 // pred_region
      %40 = vsyncadd [#allocation7], 0
      %s41 = sshll.u32 %s4, 4
      %s42 = int_to_ptr.hbm [resolvable:$true] %s41
      %s43 = sshll.u32 [#allocation6], 4
      %s44 = int_to_ptr.vmem [resolvable:$true] %s43
      %49 = dma.hbm_to_vmem [thread:$0]  %s42, 4096, %s44, [#allocation7], 256, 256, 16
    $region21: #{tpu_custom_call.1} parent=1 // pred_fallthru
      _
    // Predicated region
    $region22: #{tpu_custom_call.1} parent=1 // pred_check
      _
    $region23: #{tpu_custom_call.1} parent=1 // pred_check_branch
      %51 = sbr.rel (0) target = $region25
    $region24: #{tpu_custom_call.1} parent=1 // pred_region
      %53 = vsyncadd [#allocation7], 0
      %s54 = sshll.u32 %s5, 4
      %s55 = int_to_ptr.hbm [resolvable:$true] %s54
      %s56 = sshll.u32 [#allocation8], 4
      %s57 = int_to_ptr.vmem [resolvable:$true] %s56
      %62 = dma.hbm_to_vmem [thread:$0]  %s55, 4096, %s57, [#allocation7], 256, 256, 16
    $region25: #{tpu_custom_call.1} parent=1 // pred_fallthru
      _
    // Predicated region
    $region26: #{tpu_custom_call.1} parent=1 // pred_check
      _
    $region27: #{tpu_custom_call.1} parent=1 // pred_check_branch
      %64 = sbr.rel (0) target = $region29
    $region28: #{tpu_custom_call.1} parent=1 // pred_region
      _
    $region29: #{tpu_custom_call.1} parent=1 // pred_fallthru
      _
    // Predicated region
    $region30: #{tpu_custom_call.1} parent=1 // pred_check
      _
    $region31: #{tpu_custom_call.1} parent=1 // pred_check_branch
      %66 = sbr.rel (0) target = $region33
    $region32: #{tpu_custom_call.1} parent=1 // pred_region
      %68 = vsyncadd [#allocation10], 0
      %s69 = sshll.u32 %s7, 4
      %s70 = int_to_ptr.hbm [resolvable:$true] %s69
      %s71 = sshll.u32 [#allocation9], 4
      %s72 = int_to_ptr.vmem [resolvable:$true] %s71
      %77 = dma.hbm_to_vmem [thread:$0]  %s70, 2048, %s72, [#allocation10], 128, 128, 8
    $region33: #{tpu_custom_call.1} parent=1 // pred_fallthru
      _
    // Predicated region
    $region34: #{tpu_custom_call.1} parent=1 // pred_check
      _
    $region35: #{tpu_custom_call.1} parent=1 // pred_check_branch
      %79 = sbr.rel (0) target = $region37
    $region36: #{tpu_custom_call.1} parent=1 // pred_region
      _
    $region37: #{tpu_custom_call.1} parent=1 // pred_fallthru
      _
    // Predicated region
    $region38: #{tpu_custom_call.1} parent=1 // pred_check
      _
    $region39: #{tpu_custom_call.1} parent=1 // pred_check_branch
      %81 = sbr.rel (0) target = $region41
    $region40: #{tpu_custom_call.1} parent=1 // pred_region
      %83 = dma.done [#allocation4], 4096
    $region41: #{tpu_custom_call.1} parent=1 // pred_fallthru
      _
    // Predicated region
    $region42: #{tpu_custom_call.1} parent=1 // pred_check
      _
    $region43: #{tpu_custom_call.1} parent=1 // pred_check_branch
      %85 = sbr.rel (0) target = $region45
    $region44: #{tpu_custom_call.1} parent=1 // pred_region
      %87 = dma.done [#allocation7], 4096
    $region45: #{tpu_custom_call.1} parent=1 // pred_fallthru
      _
    // Predicated region
    $region46: #{tpu_custom_call.1} parent=1 // pred_check
      _
    $region47: #{tpu_custom_call.1} parent=1 // pred_check_branch
      %89 = sbr.rel (0) target = $region49
    $region48: #{tpu_custom_call.1} parent=1 // pred_region
      %91 = dma.done [#allocation7], 4096
    $region49: #{tpu_custom_call.1} parent=1 // pred_fallthru
      _
    // Predicated region
    $region50: #{tpu_custom_call.1} parent=1 // pred_check
      _
    $region51: #{tpu_custom_call.1} parent=1 // pred_check_branch
      %93 = sbr.rel (0) target = $region53
    $region52: #{tpu_custom_call.1} parent=1 // pred_region
      %95 = dma.done [#allocation10], 2048
    $region53: #{tpu_custom_call.1} parent=1 // pred_fallthru
      _
    %v97 = vld [vmem:[%s0] sm:$0xff]
    %v98 = vld [vmem:[%s0 + $0x8] sm:$0xff]
    %v99 = vld [vmem:[%s0 + $0x10] sm:$0xff]
    %v100 = vld [vmem:[%s0 + $0x18] sm:$0xff]
    %v101 = vld [vmem:[%s0 + $0x20] sm:$0xff]
    %v102 = vld [vmem:[%s0 + $0x28] sm:$0xff]
    %v103 = vld [vmem:[%s0 + $0x30] sm:$0xff]
    %v104 = vld [vmem:[%s0 + $0x38] sm:$0xff]
    %v105 = vld [vmem:[%s1] sm:$0xff]
    %v106 = vld [vmem:[%s1 + $0x8] sm:$0xff]
    %v107 = vld [vmem:[%s1 + $0x10] sm:$0xff]
    %v108 = vld [vmem:[%s1 + $0x18] sm:$0xff]
    %v109 = vld [vmem:[%s1 + $0x20] sm:$0x3f]
    %v110 = vld [vmem:[%s1 + $0x28] sm:$0x3f]
    %v111 = vld [vmem:[%s1 + $0x30] sm:$0x3f]
    %v112 = vld [vmem:[%s1 + $0x38] sm:$0x3f]
    %v113 = vld [vmem:[%s2] sm:$0xf]
    %v115 = vperm.slane %v113, 0
    %v116 = vperm.slane %v113, 1
    %v117 = vperm.slane %v113, 2
    %v118 = vperm.slane %v113, 3
    %vm123 = vcmask 113664
    %v125 = vsel %vm123, %v97, 0
    %v128 = vsel %vm123, %v98, 0
    %v131 = vsel %vm123, %v99, 0
    %v134 = vsel %vm123, %v100, 0
    %v137 = vsel %vm123, %v101, 0
    %v140 = vsel %vm123, %v102, 0
    %v143 = vsel %vm123, %v103, 0
    %v146 = vsel %vm123, %v104, 0
    %vm148 = vcmask 1045504
    %v150 = vsel %vm148, %v109, 0
    %v153 = vsel %vm148, %v110, 0
    %v156 = vsel %vm148, %v111, 0
    %v159 = vsel %vm148, %v112, 0
    %161 = vmatpush.msra.mxu0 0.0
    %162 = vmatpush.msra.mxu0 0.0
    %163 = vmatpush.msra.mxu0 0.0
    %164 = vmatpush.msra.mxu0 0.0
    %165 = vmatpush.msra.mxu0 0.0
    %166 = vmatpush.msra.mxu0 0.0
    %167 = vmatpush.msra.mxu0 0.0
    %168 = vmatpush.msra.mxu0 0.0
    %169 = vmatpush.msra.mxu0 0.0
    %170 = vmatpush.msra.mxu0 0.0
    %171 = vmatpush.msra.mxu0 0.0
    %172 = vmatpush.msra.mxu0 0.0
    %173 = vmatpush.msra.mxu0 0.0
    %174 = vmatpush.msra.mxu0 0.0
    %175 = vmatpush.msra.mxu0 %v150
    %176 = vmatpush.msra.mxu0 %v105
    %177 = vmatmul.f32.gmra.mxu0 %v125
    %v178 = vpop.f32.mrf.mxu0
    %v179 = vadd.f32 %v115, %v178
    %180 = vmatmul.f32.gmra.mxu0 %v128
    %v181 = vpop.f32.mrf.mxu0
    %v182 = vadd.f32 %v115, %v181
    %183 = vmatmul.f32.gmra.mxu0 %v131
    %v184 = vpop.f32.mrf.mxu0
    %v185 = vadd.f32 %v115, %v184
    %186 = vmatmul.f32.gmra.mxu0 %v134
    %v187 = vpop.f32.mrf.mxu0
    %v188 = vadd.f32 %v115, %v187
    %189 = vmatmul.f32.gmra.mxu0 %v137
    %v190 = vpop.f32.mrf.mxu0
    %v191 = vadd.f32 %v115, %v190
    %192 = vmatmul.f32.gmra.mxu0 %v140
    %v193 = vpop.f32.mrf.mxu0
    %v194 = vadd.f32 %v115, %v193
    %195 = vmatmul.f32.gmra.mxu0 %v143
    %v196 = vpop.f32.mrf.mxu0
    %v197 = vadd.f32 %v115, %v196
    %198 = vmatmul.f32.gmra.mxu0 %v146
    %v199 = vpop.f32.mrf.mxu0
    %v200 = vadd.f32 %v115, %v199
    %201 = vdwg.mxu0
    %202 = vmatpush.msra.mxu0 0.0
    %203 = vmatpush.msra.mxu0 0.0
    %204 = vmatpush.msra.mxu0 0.0
    %205 = vmatpush.msra.mxu0 0.0
    %206 = vmatpush.msra.mxu0 0.0
    %207 = vmatpush.msra.mxu0 0.0
    %208 = vmatpush.msra.mxu0 0.0
    %209 = vmatpush.msra.mxu0 0.0
    %210 = vmatpush.msra.mxu0 0.0
    %211 = vmatpush.msra.mxu0 0.0
    %212 = vmatpush.msra.mxu0 0.0
    %213 = vmatpush.msra.mxu0 0.0
    %214 = vmatpush.msra.mxu0 0.0
    %215 = vmatpush.msra.mxu0 0.0
    %216 = vmatpush.msra.mxu0 %v153
    %217 = vmatpush.msra.mxu0 %v106
    %218 = vmatmul.f32.gmra.mxu0 %v125
    %v219 = vpop.f32.mrf.mxu0
    %v220 = vadd.f32 %v116, %v219
    %221 = vmatmul.f32.gmra.mxu0 %v128
    %v222 = vpop.f32.mrf.mxu0
    %v223 = vadd.f32 %v116, %v222
    %224 = vmatmul.f32.gmra.mxu0 %v131
    %v225 = vpop.f32.mrf.mxu0
    %v226 = vadd.f32 %v116, %v225
    %227 = vmatmul.f32.gmra.mxu0 %v134
    %v228 = vpop.f32.mrf.mxu0
    %v229 = vadd.f32 %v116, %v228
    %230 = vmatmul.f32.gmra.mxu0 %v137
    %v231 = vpop.f32.mrf.mxu0
    %v232 = vadd.f32 %v116, %v231
    %233 = vmatmul.f32.gmra.mxu0 %v140
    %v234 = vpop.f32.mrf.mxu0
    %v235 = vadd.f32 %v116, %v234
    %236 = vmatmul.f32.gmra.mxu0 %v143
    %v237 = vpop.f32.mrf.mxu0
    %v238 = vadd.f32 %v116, %v237
    %239 = vmatmul.f32.gmra.mxu0 %v146
    %v240 = vpop.f32.mrf.mxu0
    %v241 = vadd.f32 %v116, %v240
    %242 = vdwg.mxu0
    %243 = vmatpush.msra.mxu0 0.0
    %244 = vmatpush.msra.mxu0 0.0
    %245 = vmatpush.msra.mxu0 0.0
    %246 = vmatpush.msra.mxu0 0.0
    %247 = vmatpush.msra.mxu0 0.0
    %248 = vmatpush.msra.mxu0 0.0
    %249 = vmatpush.msra.mxu0 0.0
    %250 = vmatpush.msra.mxu0 0.0
    %251 = vmatpush.msra.mxu0 0.0
    %252 = vmatpush.msra.mxu0 0.0
    %253 = vmatpush.msra.mxu0 0.0
    %254 = vmatpush.msra.mxu0 0.0
    %255 = vmatpush.msra.mxu0 0.0
    %256 = vmatpush.msra.mxu0 0.0
    %257 = vmatpush.msra.mxu0 %v156
    %258 = vmatpush.msra.mxu0 %v107
    %259 = vmatmul.f32.gmra.mxu0 %v125
    %v260 = vpop.f32.mrf.mxu0
    %v261 = vadd.f32 %v117, %v260
    %262 = vmatmul.f32.gmra.mxu0 %v128
    %v263 = vpop.f32.mrf.mxu0
    %v264 = vadd.f32 %v117, %v263
    %265 = vmatmul.f32.gmra.mxu0 %v131
    %v266 = vpop.f32.mrf.mxu0
    %v267 = vadd.f32 %v117, %v266
    %268 = vmatmul.f32.gmra.mxu0 %v134
    %v269 = vpop.f32.mrf.mxu0
    %v270 = vadd.f32 %v117, %v269
    %271 = vmatmul.f32.gmra.mxu0 %v137
    %v272 = vpop.f32.mrf.mxu0
    %v273 = vadd.f32 %v117, %v272
    %274 = vmatmul.f32.gmra.mxu0 %v140
    %v275 = vpop.f32.mrf.mxu0
    %v276 = vadd.f32 %v117, %v275
    %277 = vmatmul.f32.gmra.mxu0 %v143
    %v278 = vpop.f32.mrf.mxu0
    %v279 = vadd.f32 %v117, %v278
    %280 = vmatmul.f32.gmra.mxu0 %v146
    %v281 = vpop.f32.mrf.mxu0
    %v282 = vadd.f32 %v117, %v281
    %283 = vdwg.mxu0
    %284 = vmatpush.msra.mxu0 0.0
    %285 = vmatpush.msra.mxu0 0.0
    %286 = vmatpush.msra.mxu0 0.0
    %287 = vmatpush.msra.mxu0 0.0
    %288 = vmatpush.msra.mxu0 0.0
    %289 = vmatpush.msra.mxu0 0.0
    %290 = vmatpush.msra.mxu0 0.0
    %291 = vmatpush.msra.mxu0 0.0
    %292 = vmatpush.msra.mxu0 0.0
    %293 = vmatpush.msra.mxu0 0.0
    %294 = vmatpush.msra.mxu0 0.0
    %295 = vmatpush.msra.mxu0 0.0
    %296 = vmatpush.msra.mxu0 0.0
    %297 = vmatpush.msra.mxu0 0.0
    %298 = vmatpush.msra.mxu0 %v159
    %299 = vmatpush.msra.mxu0 %v108
    %300 = vmatmul.f32.gmra.mxu0 %v125
    %v301 = vpop.f32.mrf.mxu0
    %v302 = vadd.f32 %v118, %v301
    %303 = vmatmul.f32.gmra.mxu0 %v128
    %v304 = vpop.f32.mrf.mxu0
    %v305 = vadd.f32 %v118, %v304
    %306 = vmatmul.f32.gmra.mxu0 %v131
    %v307 = vpop.f32.mrf.mxu0
    %v308 = vadd.f32 %v118, %v307
    %309 = vmatmul.f32.gmra.mxu0 %v134
    %v310 = vpop.f32.mrf.mxu0
    %v311 = vadd.f32 %v118, %v310
    %312 = vmatmul.f32.gmra.mxu0 %v137
    %v313 = vpop.f32.mrf.mxu0
    %v314 = vadd.f32 %v118, %v313
    %315 = vmatmul.f32.gmra.mxu0 %v140
    %v316 = vpop.f32.mrf.mxu0
    %v317 = vadd.f32 %v118, %v316
    %318 = vmatmul.f32.gmra.mxu0 %v143
    %v319 = vpop.f32.mrf.mxu0
    %v320 = vadd.f32 %v118, %v319
    %321 = vmatmul.f32.gmra.mxu0 %v146
    %v322 = vpop.f32.mrf.mxu0
    %v323 = vadd.f32 %v118, %v322
    %324 = vdwg.mxu0
    %325 = vst [vmem:[#allocation2] sm:$0xff] %v179
    %326 = vst [vmem:[#allocation2 + $0x8] sm:$0xff] %v220
    %327 = vst [vmem:[#allocation2 + $0x10] sm:$0xff] %v261
    %328 = vst [vmem:[#allocation2 + $0x18] sm:$0xff] %v302
    %329 = vst [vmem:[#allocation2 + $0x20] sm:$0xff] %v182
    %330 = vst [vmem:[#allocation2 + $0x28] sm:$0xff] %v223
    %331 = vst [vmem:[#allocation2 + $0x30] sm:$0xff] %v264
    %332 = vst [vmem:[#allocation2 + $0x38] sm:$0xff] %v305
    %333 = vst [vmem:[#allocation2 + $0x40] sm:$0xff] %v185
    %334 = vst [vmem:[#allocation2 + $0x48] sm:$0xff] %v226
    %335 = vst [vmem:[#allocation2 + $0x50] sm:$0xff] %v267
    %336 = vst [vmem:[#allocation2 + $0x58] sm:$0xff] %v308
    %337 = vst [vmem:[#allocation2 + $0x60] sm:$0xff] %v188
    %338 = vst [vmem:[#allocation2 + $0x68] sm:$0xff] %v229
    %339 = vst [vmem:[#allocation2 + $0x70] sm:$0xff] %v270
    %340 = vst [vmem:[#allocation2 + $0x78] sm:$0xff] %v311
    %341 = vst [vmem:[#allocation2 + $0x80] sm:$0xff] %v191
    %342 = vst [vmem:[#allocation2 + $0x88] sm:$0xff] %v232
    %343 = vst [vmem:[#allocation2 + $0x90] sm:$0xff] %v273
    %344 = vst [vmem:[#allocation2 + $0x98] sm:$0xff] %v314
    %345 = vst [vmem:[#allocation2 + $0xa0] sm:$0xff] %v194
    %346 = vst [vmem:[#allocation2 + $0xa8] sm:$0xff] %v235
    %347 = vst [vmem:[#allocation2 + $0xb0] sm:$0xff] %v276
    %348 = vst [vmem:[#allocation2 + $0xb8] sm:$0xff] %v317
    %349 = vst [vmem:[#allocation2 + $0xc0] sm:$0xff] %v197
    %350 = vst [vmem:[#allocation2 + $0xc8] sm:$0xff] %v238
    %351 = vst [vmem:[#allocation2 + $0xd0] sm:$0xff] %v279
    %352 = vst [vmem:[#allocation2 + $0xd8] sm:$0xff] %v320
    %353 = vst [vmem:[#allocation2 + $0xe0] sm:$0xff] %v200
    %354 = vst [vmem:[#allocation2 + $0xe8] sm:$0xff] %v241
    %355 = vst [vmem:[#allocation2 + $0xf0] sm:$0xff] %v282
    %356 = vst [vmem:[#allocation2 + $0xf8] sm:$0xff] %v323
    %v357 = vld [vmem:[%s6] sm:$0xf]
    %v359 = vperm.slane %v357, 0
    %v360 = vperm.slane %v357, 1
    %v361 = vperm.slane %v357, 2
    %v362 = vperm.slane %v357, 3
    %v367 = vld [vmem:[#allocation3] sm:$0xff]
    %v368 = vld [vmem:[#allocation3 + $0x8] sm:$0xff]
    %v369 = vld [vmem:[#allocation3 + $0x10] sm:$0xff]
    %v370 = vld [vmem:[#allocation3 + $0x18] sm:$0xff]
    %v371 = vld [vmem:[#allocation3 + $0x20] sm:$0xff]
    %v372 = vld [vmem:[#allocation3 + $0x28] sm:$0xff]
    %v373 = vld [vmem:[#allocation3 + $0x30] sm:$0xff]
    %v374 = vld [vmem:[#allocation3 + $0x38] sm:$0xff]
    %v375 = vld [vmem:[#allocation3 + $0x40] sm:$0xff]
    %v376 = vld [vmem:[#allocation3 + $0x48] sm:$0xff]
    %v377 = vld [vmem:[#allocation3 + $0x50] sm:$0xff]
    %v378 = vld [vmem:[#allocation3 + $0x58] sm:$0xff]
    %v379 = vld [vmem:[#allocation3 + $0x60] sm:$0xff]
    %v380 = vld [vmem:[#allocation3 + $0x68] sm:$0xff]
    %v381 = vld [vmem:[#allocation3 + $0x70] sm:$0xff]
    %v382 = vld [vmem:[#allocation3 + $0x78] sm:$0xff]
    %v383 = vld [vmem:[#allocation3 + $0x80] sm:$0xff]
    %v384 = vld [vmem:[#allocation3 + $0x88] sm:$0xff]
    %v385 = vld [vmem:[#allocation3 + $0x90] sm:$0xff]
    %v386 = vld [vmem:[#allocation3 + $0x98] sm:$0xff]
    %v387 = vld [vmem:[#allocation3 + $0xa0] sm:$0xff]
    %v388 = vld [vmem:[#allocation3 + $0xa8] sm:$0xff]
    %v389 = vld [vmem:[#allocation3 + $0xb0] sm:$0xff]
    %v390 = vld [vmem:[#allocation3 + $0xb8] sm:$0xff]
    %v391 = vld [vmem:[#allocation3 + $0xc0] sm:$0xff]
    %v392 = vld [vmem:[#allocation3 + $0xc8] sm:$0xff]
    %v393 = vld [vmem:[#allocation3 + $0xd0] sm:$0xff]
    %v394 = vld [vmem:[#allocation3 + $0xd8] sm:$0xff]
    %v395 = vld [vmem:[#allocation3 + $0xe0] sm:$0xff]
    %v396 = vld [vmem:[#allocation3 + $0xe8] sm:$0xff]
    %v397 = vld [vmem:[#allocation3 + $0xf0] sm:$0xff]
    %v398 = vld [vmem:[#allocation3 + $0xf8] sm:$0xff]
    %v431 = vunpack.c.l.b16 %v367
    %v432 = vunpack.c.h.b16 %v367
    %v433 = vunpack.c.l.b16 %v368
    %v434 = vunpack.c.h.b16 %v368
    %v435 = vunpack.c.l.b16 %v369
    %v436 = vunpack.c.h.b16 %v369
    %v437 = vunpack.c.l.b16 %v370
    %v438 = vunpack.c.h.b16 %v370
    %v439 = vunpack.c.l.b16 %v371
    %v440 = vunpack.c.h.b16 %v371
    %v441 = vunpack.c.l.b16 %v372
    %v442 = vunpack.c.h.b16 %v372
    %v443 = vunpack.c.l.b16 %v373
    %v444 = vunpack.c.h.b16 %v373
    %v445 = vunpack.c.l.b16 %v374
    %v446 = vunpack.c.h.b16 %v374
    %v447 = vunpack.c.l.b16 %v375
    %v448 = vunpack.c.h.b16 %v375
    %v449 = vunpack.c.l.b16 %v376
    %v450 = vunpack.c.h.b16 %v376
    %v451 = vunpack.c.l.b16 %v377
    %v452 = vunpack.c.h.b16 %v377
    %v453 = vunpack.c.l.b16 %v378
    %v454 = vunpack.c.h.b16 %v378
    %v455 = vunpack.c.l.b16 %v379
    %v456 = vunpack.c.h.b16 %v379
    %v457 = vunpack.c.l.b16 %v380
    %v458 = vunpack.c.h.b16 %v380
    %v459 = vunpack.c.l.b16 %v381
    %v460 = vunpack.c.h.b16 %v381
    %v461 = vunpack.c.l.b16 %v382
    %v462 = vunpack.c.h.b16 %v382
    %v463 = vunpack.c.l.b16 %v383
    %v464 = vunpack.c.h.b16 %v383
    %v465 = vunpack.c.l.b16 %v384
    %v466 = vunpack.c.h.b16 %v384
    %v467 = vunpack.c.l.b16 %v385
    %v468 = vunpack.c.h.b16 %v385
    %v469 = vunpack.c.l.b16 %v386
    %v470 = vunpack.c.h.b16 %v386
    %v471 = vunpack.c.l.b16 %v387
    %v472 = vunpack.c.h.b16 %v387
    %v473 = vunpack.c.l.b16 %v388
    %v474 = vunpack.c.h.b16 %v388
    %v475 = vunpack.c.l.b16 %v389
    %v476 = vunpack.c.h.b16 %v389
    %v477 = vunpack.c.l.b16 %v390
    %v478 = vunpack.c.h.b16 %v390
    %v479 = vunpack.c.l.b16 %v391
    %v480 = vunpack.c.h.b16 %v391
    %v481 = vunpack.c.l.b16 %v392
    %v482 = vunpack.c.h.b16 %v392
    %v483 = vunpack.c.l.b16 %v393
    %v484 = vunpack.c.h.b16 %v393
    %v485 = vunpack.c.l.b16 %v394
    %v486 = vunpack.c.h.b16 %v394
    %v487 = vunpack.c.l.b16 %v395
    %v488 = vunpack.c.h.b16 %v395
    %v489 = vunpack.c.l.b16 %v396
    %v490 = vunpack.c.h.b16 %v396
    %v491 = vunpack.c.l.b16 %v397
    %v492 = vunpack.c.h.b16 %v397
    %v493 = vunpack.c.l.b16 %v398
    %v494 = vunpack.c.h.b16 %v398
    %v495 = vpack.c.b16 %v435, %v431
    %v496 = vpack.c.b16 %v436, %v432
    %v497 = vpack.c.b16 %v437, %v433
    %v498 = vpack.c.b16 %v438, %v434
    %v499 = vpack.c.b16 %v443, %v439
    %v500 = vpack.c.b16 %v444, %v440
    %v501 = vpack.c.b16 %v445, %v441
    %v502 = vpack.c.b16 %v446, %v442
    %v503 = vpack.c.b16 %v451, %v447
    %v504 = vpack.c.b16 %v452, %v448
    %v505 = vpack.c.b16 %v453, %v449
    %v506 = vpack.c.b16 %v454, %v450
    %v507 = vpack.c.b16 %v459, %v455
    %v508 = vpack.c.b16 %v460, %v456
    %v509 = vpack.c.b16 %v461, %v457
    %v510 = vpack.c.b16 %v462, %v458
    %v511 = vpack.c.b16 %v467, %v463
    %v512 = vpack.c.b16 %v468, %v464
    %v513 = vpack.c.b16 %v469, %v465
    %v514 = vpack.c.b16 %v470, %v466
    %v515 = vpack.c.b16 %v475, %v471
    %v516 = vpack.c.b16 %v476, %v472
    %v517 = vpack.c.b16 %v477, %v473
    %v518 = vpack.c.b16 %v478, %v474
    %v519 = vpack.c.b16 %v483, %v479
    %v520 = vpack.c.b16 %v484, %v480
    %v521 = vpack.c.b16 %v485, %v481
    %v522 = vpack.c.b16 %v486, %v482
    %v523 = vpack.c.b16 %v491, %v487
    %v524 = vpack.c.b16 %v492, %v488
    %v525 = vpack.c.b16 %v493, %v489
    %v526 = vpack.c.b16 %v494, %v490
    %559 = vmatpush.bf16.msra.mxu0 %v523
    %560 = vmatpush.bf16.msra.mxu0 %v519
    %561 = vmatpush.bf16.msra.mxu0 %v515
    %562 = vmatpush.bf16.msra.mxu0 %v511
    %563 = vmatpush.bf16.msra.mxu0 %v507
    %564 = vmatpush.bf16.msra.mxu0 %v503
    %565 = vmatpush.bf16.msra.mxu0 %v499
    %566 = vmatpush.bf16.msra.mxu0 %v495
    %567 = vmatmul.bf16.gmra.mxu0 0
    %v568 = vpop.f32.mrf.mxu0
    %v569 = vadd.f32 0.0, %v568
    %v570 = vpop.f32.mrf.mxu0
    %571 = vdwg.mxu0
    %572 = vmatpush.bf16.msra.mxu0 %v524
    %573 = vmatpush.bf16.msra.mxu0 %v520
    %574 = vmatpush.bf16.msra.mxu0 %v516
    %575 = vmatpush.bf16.msra.mxu0 %v512
    %576 = vmatpush.bf16.msra.mxu0 %v508
    %577 = vmatpush.bf16.msra.mxu0 %v504
    %578 = vmatpush.bf16.msra.mxu0 %v500
    %579 = vmatpush.bf16.msra.mxu0 %v496
    %580 = vmatmul.bf16.gmra.mxu0 0
    %v581 = vpop.f32.mrf.mxu0
    %v582 = vadd.f32 0.0, %v581
    %v583 = vpop.f32.mrf.mxu0
    %584 = vdwg.mxu0
    %585 = vmatpush.bf16.msra.mxu0 %v525
    %586 = vmatpush.bf16.msra.mxu0 %v521
    %587 = vmatpush.bf16.msra.mxu0 %v517
    %588 = vmatpush.bf16.msra.mxu0 %v513
    %589 = vmatpush.bf16.msra.mxu0 %v509
    %590 = vmatpush.bf16.msra.mxu0 %v505
    %591 = vmatpush.bf16.msra.mxu0 %v501
    %592 = vmatpush.bf16.msra.mxu0 %v497
    %593 = vmatmul.bf16.gmra.mxu0 0
    %v594 = vpop.f32.mrf.mxu0
    %v595 = vadd.f32 0.0, %v594
    %v596 = vpop.f32.mrf.mxu0
    %597 = vdwg.mxu0
    %598 = vmatpush.bf16.msra.mxu0 %v526
    %599 = vmatpush.bf16.msra.mxu0 %v522
    %600 = vmatpush.bf16.msra.mxu0 %v518
    %601 = vmatpush.bf16.msra.mxu0 %v514
    %602 = vmatpush.bf16.msra.mxu0 %v510
    %603 = vmatpush.bf16.msra.mxu0 %v506
    %604 = vmatpush.bf16.msra.mxu0 %v502
    %605 = vmatpush.bf16.msra.mxu0 %v498
    %606 = vmatmul.bf16.gmra.mxu0 0
    %v607 = vpop.f32.mrf.mxu0
    %v608 = vadd.f32 0.0, %v607
    %v609 = vpop.f32.mrf.mxu0
    %610 = vdwg.mxu0
    %v611 = vld [vmem:[#allocation8] sm:$0xff]
    %v612 = vld [vmem:[#allocation8 + $0x8] sm:$0xff]
    %v613 = vld [vmem:[#allocation8 + $0x10] sm:$0xff]
    %v614 = vld [vmem:[#allocation8 + $0x18] sm:$0xff]
    %v615 = vld [vmem:[#allocation8 + $0x20] sm:$0xff]
    %v616 = vld [vmem:[#allocation8 + $0x28] sm:$0xff]
    %v617 = vld [vmem:[#allocation8 + $0x30] sm:$0xff]
    %v618 = vld [vmem:[#allocation8 + $0x38] sm:$0xff]
    %v619 = vld [vmem:[#allocation8 + $0x40] sm:$0xff]
    %v620 = vld [vmem:[#allocation8 + $0x48] sm:$0xff]
    %v621 = vld [vmem:[#allocation8 + $0x50] sm:$0xff]
    %v622 = vld [vmem:[#allocation8 + $0x58] sm:$0xff]
    %v623 = vld [vmem:[#allocation8 + $0x60] sm:$0xff]
    %v624 = vld [vmem:[#allocation8 + $0x68] sm:$0xff]
    %v625 = vld [vmem:[#allocation8 + $0x70] sm:$0xff]
    %v626 = vld [vmem:[#allocation8 + $0x78] sm:$0xff]
    %v627 = vld [vmem:[#allocation8 + $0x80] sm:$0xff]
    %v628 = vld [vmem:[#allocation8 + $0x88] sm:$0xff]
    %v629 = vld [vmem:[#allocation8 + $0x90] sm:$0xff]
    %v630 = vld [vmem:[#allocation8 + $0x98] sm:$0xff]
    %v631 = vld [vmem:[#allocation8 + $0xa0] sm:$0xff]
    %v632 = vld [vmem:[#allocation8 + $0xa8] sm:$0xff]
    %v633 = vld [vmem:[#allocation8 + $0xb0] sm:$0xff]
    %v634 = vld [vmem:[#allocation8 + $0xb8] sm:$0xff]
    %v635 = vld [vmem:[#allocation8 + $0xc0] sm:$0xff]
    %v636 = vld [vmem:[#allocation8 + $0xc8] sm:$0xff]
    %v637 = vld [vmem:[#allocation8 + $0xd0] sm:$0xff]
    %v638 = vld [vmem:[#allocation8 + $0xd8] sm:$0xff]
    %v639 = vld [vmem:[#allocation8 + $0xe0] sm:$0xff]
    %v640 = vld [vmem:[#allocation8 + $0xe8] sm:$0xff]
    %v641 = vld [vmem:[#allocation8 + $0xf0] sm:$0xff]
    %v642 = vld [vmem:[#allocation8 + $0xf8] sm:$0xff]
    %v675 = vunpack.c.l.b16 %v611
    %v676 = vunpack.c.h.b16 %v611
    %v677 = vunpack.c.l.b16 %v612
    %v678 = vunpack.c.h.b16 %v612
    %v679 = vunpack.c.l.b16 %v613
    %v680 = vunpack.c.h.b16 %v613
    %v681 = vunpack.c.l.b16 %v614
    %v682 = vunpack.c.h.b16 %v614
    %v683 = vunpack.c.l.b16 %v615
    %v684 = vunpack.c.h.b16 %v615
    %v685 = vunpack.c.l.b16 %v616
    %v686 = vunpack.c.h.b16 %v616
    %v687 = vunpack.c.l.b16 %v617
    %v688 = vunpack.c.h.b16 %v617
    %v689 = vunpack.c.l.b16 %v618
    %v690 = vunpack.c.h.b16 %v618
    %v691 = vunpack.c.l.b16 %v619
    %v692 = vunpack.c.h.b16 %v619
    %v693 = vunpack.c.l.b16 %v620
    %v694 = vunpack.c.h.b16 %v620
    %v695 = vunpack.c.l.b16 %v621
    %v696 = vunpack.c.h.b16 %v621
    %v697 = vunpack.c.l.b16 %v622
    %v698 = vunpack.c.h.b16 %v622
    %v699 = vunpack.c.l.b16 %v623
    %v700 = vunpack.c.h.b16 %v623
    %v701 = vunpack.c.l.b16 %v624
    %v702 = vunpack.c.h.b16 %v624
    %v703 = vunpack.c.l.b16 %v625
    %v704 = vunpack.c.h.b16 %v625
    %v705 = vunpack.c.l.b16 %v626
    %v706 = vunpack.c.h.b16 %v626
    %v707 = vunpack.c.l.b16 %v627
    %v708 = vunpack.c.h.b16 %v627
    %v709 = vunpack.c.l.b16 %v628
    %v710 = vunpack.c.h.b16 %v628
    %v711 = vunpack.c.l.b16 %v629
    %v712 = vunpack.c.h.b16 %v629
    %v713 = vunpack.c.l.b16 %v630
    %v714 = vunpack.c.h.b16 %v630
    %v715 = vunpack.c.l.b16 %v631
    %v716 = vunpack.c.h.b16 %v631
    %v717 = vunpack.c.l.b16 %v632
    %v718 = vunpack.c.h.b16 %v632
    %v719 = vunpack.c.l.b16 %v633
    %v720 = vunpack.c.h.b16 %v633
    %v721 = vunpack.c.l.b16 %v634
    %v722 = vunpack.c.h.b16 %v634
    %v723 = vunpack.c.l.b16 %v635
    %v724 = vunpack.c.h.b16 %v635
    %v725 = vunpack.c.l.b16 %v636
    %v726 = vunpack.c.h.b16 %v636
    %v727 = vunpack.c.l.b16 %v637
    %v728 = vunpack.c.h.b16 %v637
    %v729 = vunpack.c.l.b16 %v638
    %v730 = vunpack.c.h.b16 %v638
    %v731 = vunpack.c.l.b16 %v639
    %v732 = vunpack.c.h.b16 %v639
    %v733 = vunpack.c.l.b16 %v640
    %v734 = vunpack.c.h.b16 %v640
    %v735 = vunpack.c.l.b16 %v641
    %v736 = vunpack.c.h.b16 %v641
    %v737 = vunpack.c.l.b16 %v642
    %v738 = vunpack.c.h.b16 %v642
    %v739 = vpack.c.b16 %v679, %v675
    %v740 = vpack.c.b16 %v680, %v676
    %v741 = vpack.c.b16 %v681, %v677
    %v742 = vpack.c.b16 %v682, %v678
    %v743 = vpack.c.b16 %v687, %v683
    %v744 = vpack.c.b16 %v688, %v684
    %v745 = vpack.c.b16 %v689, %v685
    %v746 = vpack.c.b16 %v690, %v686
    %v747 = vpack.c.b16 %v695, %v691
    %v748 = vpack.c.b16 %v696, %v692
    %v749 = vpack.c.b16 %v697, %v693
    %v750 = vpack.c.b16 %v698, %v694
    %v751 = vpack.c.b16 %v703, %v699
    %v752 = vpack.c.b16 %v704, %v700
    %v753 = vpack.c.b16 %v705, %v701
    %v754 = vpack.c.b16 %v706, %v702
    %v755 = vpack.c.b16 %v711, %v707
    %v756 = vpack.c.b16 %v712, %v708
    %v757 = vpack.c.b16 %v713, %v709
    %v758 = vpack.c.b16 %v714, %v710
    %v759 = vpack.c.b16 %v719, %v715
    %v760 = vpack.c.b16 %v720, %v716
    %v761 = vpack.c.b16 %v721, %v717
    %v762 = vpack.c.b16 %v722, %v718
    %v763 = vpack.c.b16 %v727, %v723
    %v764 = vpack.c.b16 %v728, %v724
    %v765 = vpack.c.b16 %v729, %v725
    %v766 = vpack.c.b16 %v730, %v726
    %v767 = vpack.c.b16 %v735, %v731
    %v768 = vpack.c.b16 %v736, %v732
    %v769 = vpack.c.b16 %v737, %v733
    %v770 = vpack.c.b16 %v738, %v734
    %803 = vmatpush.bf16.msra.mxu0 %v767
    %804 = vmatpush.bf16.msra.mxu0 %v763
    %805 = vmatpush.bf16.msra.mxu0 %v759
    %806 = vmatpush.bf16.msra.mxu0 %v755
    %807 = vmatpush.bf16.msra.mxu0 %v751
    %808 = vmatpush.bf16.msra.mxu0 %v747
    %809 = vmatpush.bf16.msra.mxu0 %v743
    %810 = vmatpush.bf16.msra.mxu0 %v739
    %811 = vmatmul.bf16.gmra.mxu0 0
    %v812 = vpop.f32.mrf.mxu0
    %v813 = vadd.f32 0.0, %v812
    %v814 = vpop.f32.mrf.mxu0
    %815 = vdwg.mxu0
    %816 = vmatpush.bf16.msra.mxu0 %v768
    %817 = vmatpush.bf16.msra.mxu0 %v764
    %818 = vmatpush.bf16.msra.mxu0 %v760
    %819 = vmatpush.bf16.msra.mxu0 %v756
    %820 = vmatpush.bf16.msra.mxu0 %v752
    %821 = vmatpush.bf16.msra.mxu0 %v748
    %822 = vmatpush.bf16.msra.mxu0 %v744
    %823 = vmatpush.bf16.msra.mxu0 %v740
    %824 = vmatmul.bf16.gmra.mxu0 0
    %v825 = vpop.f32.mrf.mxu0
    %v826 = vadd.f32 0.0, %v825
    %v827 = vpop.f32.mrf.mxu0
    %828 = vdwg.mxu0
    %829 = vmatpush.bf16.msra.mxu0 %v769
    %830 = vmatpush.bf16.msra.mxu0 %v765
    %831 = vmatpush.bf16.msra.mxu0 %v761
    %832 = vmatpush.bf16.msra.mxu0 %v757
    %833 = vmatpush.bf16.msra.mxu0 %v753
    %834 = vmatpush.bf16.msra.mxu0 %v749
    %835 = vmatpush.bf16.msra.mxu0 %v745
    %836 = vmatpush.bf16.msra.mxu0 %v741
    %837 = vmatmul.bf16.gmra.mxu0 0
    %v838 = vpop.f32.mrf.mxu0
    %v839 = vadd.f32 0.0, %v838
    %v840 = vpop.f32.mrf.mxu0
    %841 = vdwg.mxu0
    %842 = vmatpush.bf16.msra.mxu0 %v770
    %843 = vmatpush.bf16.msra.mxu0 %v766
    %844 = vmatpush.bf16.msra.mxu0 %v762
    %845 = vmatpush.bf16.msra.mxu0 %v758
    %846 = vmatpush.bf16.msra.mxu0 %v754
    %847 = vmatpush.bf16.msra.mxu0 %v750
    %848 = vmatpush.bf16.msra.mxu0 %v746
    %849 = vmatpush.bf16.msra.mxu0 %v742
    %850 = vmatmul.bf16.gmra.mxu0 0
    %v851 = vpop.f32.mrf.mxu0
    %v852 = vadd.f32 0.0, %v851
    %v853 = vpop.f32.mrf.mxu0
    %854 = vdwg.mxu0
    %v855 = vld [vmem:[#allocation2] sm:$0xff]
    %v856 = vld [vmem:[#allocation2 + $0x8] sm:$0xff]
    %v857 = vld [vmem:[#allocation2 + $0x10] sm:$0xff]
    %v858 = vld [vmem:[#allocation2 + $0x18] sm:$0xff]
    %v859 = vadd.f32 %v855, %v569
    %v860 = vadd.f32 %v856, %v582
    %v861 = vadd.f32 %v857, %v595
    %v862 = vadd.f32 %v858, %v608
    %v863 = vmul.f32 %v859, 0.5
    %v864 = vtanh.pop %v863
    %v865 = vmul.f32 %v864, 0.5
    %v866 = vadd.f32 %v865, 0.5
    %v867 = vmul.f32 %v860, 0.5
    %v868 = vtanh.pop %v867
    %v869 = vmul.f32 %v868, 0.5
    %v870 = vadd.f32 %v869, 0.5
    %v871 = vtanh.pop %v861
    %v872 = vmul.f32 %v862, 0.5
    %v873 = vtanh.pop %v872
    %v874 = vmul.f32 %v873, 0.5
    %v875 = vadd.f32 %v874, 0.5
    %v876 = vmul.f32 %v870, 0.0
    %v877 = vmul.f32 %v866, %v871
    %v878 = vadd.f32 %v876, %v877
    %v879 = vtanh.pop %v878
    %v880 = vmul.f32 %v875, %v879
    %v881 = vpack.c.bf16 %v880, %v880
    %v882 = vld [vmem:[#allocation6] sm:$0xff]
    %v883 = vld [vmem:[#allocation6 + $0x8] sm:$0xff]
    %v884 = vld [vmem:[#allocation6 + $0x10] sm:$0xff]
    %v885 = vld [vmem:[#allocation6 + $0x18] sm:$0xff]
    %v886 = vld [vmem:[#allocation6 + $0x20] sm:$0xff]
    %v887 = vld [vmem:[#allocation6 + $0x28] sm:$0xff]
    %v888 = vld [vmem:[#allocation6 + $0x30] sm:$0xff]
    %v889 = vld [vmem:[#allocation6 + $0x38] sm:$0xff]
    %v890 = vld [vmem:[#allocation6 + $0x40] sm:$0xff]
    %v891 = vld [vmem:[#allocation6 + $0x48] sm:$0xff]
    %v892 = vld [vmem:[#allocation6 + $0x50] sm:$0xff]
    %v893 = vld [vmem:[#allocation6 + $0x58] sm:$0xff]
    %v894 = vld [vmem:[#allocation6 + $0x60] sm:$0xff]
    %v895 = vld [vmem:[#allocation6 + $0x68] sm:$0xff]
    %v896 = vld [vmem:[#allocation6 + $0x70] sm:$0xff]
    %v897 = vld [vmem:[#allocation6 + $0x78] sm:$0xff]
    %v898 = vld [vmem:[#allocation6 + $0x80] sm:$0xff]
    %v899 = vld [vmem:[#allocation6 + $0x88] sm:$0xff]
    %v900 = vld [vmem:[#allocation6 + $0x90] sm:$0xff]
    %v901 = vld [vmem:[#allocation6 + $0x98] sm:$0xff]
    %v902 = vld [vmem:[#allocation6 + $0xa0] sm:$0xff]
    %v903 = vld [vmem:[#allocation6 + $0xa8] sm:$0xff]
    %v904 = vld [vmem:[#allocation6 + $0xb0] sm:$0xff]
    %v905 = vld [vmem:[#allocation6 + $0xb8] sm:$0xff]
    %v906 = vld [vmem:[#allocation6 + $0xc0] sm:$0xff]
    %v907 = vld [vmem:[#allocation6 + $0xc8] sm:$0xff]
    %v908 = vld [vmem:[#allocation6 + $0xd0] sm:$0xff]
    %v909 = vld [vmem:[#allocation6 + $0xd8] sm:$0xff]
    %v910 = vld [vmem:[#allocation6 + $0xe0] sm:$0xff]
    %v911 = vld [vmem:[#allocation6 + $0xe8] sm:$0xff]
    %v912 = vld [vmem:[#allocation6 + $0xf0] sm:$0xff]
    %v913 = vld [vmem:[#allocation6 + $0xf8] sm:$0xff]
    %v946 = vunpack.c.l.b16 %v882
    %v947 = vunpack.c.h.b16 %v882
    %v948 = vunpack.c.l.b16 %v883
    %v949 = vunpack.c.h.b16 %v883
    %v950 = vunpack.c.l.b16 %v884
    %v951 = vunpack.c.h.b16 %v884
    %v952 = vunpack.c.l.b16 %v885
    %v953 = vunpack.c.h.b16 %v885
    %v954 = vunpack.c.l.b16 %v886
    %v955 = vunpack.c.h.b16 %v886
    %v956 = vunpack.c.l.b16 %v887
    %v957 = vunpack.c.h.b16 %v887
    %v958 = vunpack.c.l.b16 %v888
    %v959 = vunpack.c.h.b16 %v888
    %v960 = vunpack.c.l.b16 %v889
    %v961 = vunpack.c.h.b16 %v889
    %v962 = vunpack.c.l.b16 %v890
    %v963 = vunpack.c.h.b16 %v890
    %v964 = vunpack.c.l.b16 %v891
    %v965 = vunpack.c.h.b16 %v891
    %v966 = vunpack.c.l.b16 %v892
    %v967 = vunpack.c.h.b16 %v892
    %v968 = vunpack.c.l.b16 %v893
    %v969 = vunpack.c.h.b16 %v893
    %v970 = vunpack.c.l.b16 %v894
    %v971 = vunpack.c.h.b16 %v894
    %v972 = vunpack.c.l.b16 %v895
    %v973 = vunpack.c.h.b16 %v895
    %v974 = vunpack.c.l.b16 %v896
    %v975 = vunpack.c.h.b16 %v896
    %v976 = vunpack.c.l.b16 %v897
    %v977 = vunpack.c.h.b16 %v897
    %v978 = vunpack.c.l.b16 %v898
    %v979 = vunpack.c.h.b16 %v898
    %v980 = vunpack.c.l.b16 %v899
    %v981 = vunpack.c.h.b16 %v899
    %v982 = vunpack.c.l.b16 %v900
    %v983 = vunpack.c.h.b16 %v900
    %v984 = vunpack.c.l.b16 %v901
    %v985 = vunpack.c.h.b16 %v901
    %v986 = vunpack.c.l.b16 %v902
    %v987 = vunpack.c.h.b16 %v902
    %v988 = vunpack.c.l.b16 %v903
    %v989 = vunpack.c.h.b16 %v903
    %v990 = vunpack.c.l.b16 %v904
    %v991 = vunpack.c.h.b16 %v904
    %v992 = vunpack.c.l.b16 %v905
    %v993 = vunpack.c.h.b16 %v905
    %v994 = vunpack.c.l.b16 %v906
    %v995 = vunpack.c.h.b16 %v906
    %v996 = vunpack.c.l.b16 %v907
    %v997 = vunpack.c.h.b16 %v907
    %v998 = vunpack.c.l.b16 %v908
    %v999 = vunpack.c.h.b16 %v908
    %v1000 = vunpack.c.l.b16 %v909
    %v1001 = vunpack.c.h.b16 %v909
    %v1002 = vunpack.c.l.b16 %v910
    %v1003 = vunpack.c.h.b16 %v910
    %v1004 = vunpack.c.l.b16 %v911
    %v1005 = vunpack.c.h.b16 %v911
    %v1006 = vunpack.c.l.b16 %v912
    %v1007 = vunpack.c.h.b16 %v912
    %v1008 = vunpack.c.l.b16 %v913
    %v1009 = vunpack.c.h.b16 %v913
    %v1010 = vpack.c.b16 %v950, %v946
    %v1011 = vpack.c.b16 %v951, %v947
    %v1012 = vpack.c.b16 %v952, %v948
    %v1013 = vpack.c.b16 %v953, %v949
    %v1014 = vpack.c.b16 %v958, %v954
    %v1015 = vpack.c.b16 %v959, %v955
    %v1016 = vpack.c.b16 %v960, %v956
    %v1017 = vpack.c.b16 %v961, %v957
    %v1018 = vpack.c.b16 %v966, %v962
    %v1019 = vpack.c.b16 %v967, %v963
    %v1020 = vpack.c.b16 %v968, %v964
    %v1021 = vpack.c.b16 %v969, %v965
    %v1022 = vpack.c.b16 %v974, %v970
    %v1023 = vpack.c.b16 %v975, %v971
    %v1024 = vpack.c.b16 %v976, %v972
    %v1025 = vpack.c.b16 %v977, %v973
    %v1026 = vpack.c.b16 %v982, %v978
    %v1027 = vpack.c.b16 %v983, %v979
    %v1028 = vpack.c.b16 %v984, %v980
    %v1029 = vpack.c.b16 %v985, %v981
    %v1030 = vpack.c.b16 %v990, %v986
    %v1031 = vpack.c.b16 %v991, %v987
    %v1032 = vpack.c.b16 %v992, %v988
    %v1033 = vpack.c.b16 %v993, %v989
    %v1034 = vpack.c.b16 %v998, %v994
    %v1035 = vpack.c.b16 %v999, %v995
    %v1036 = vpack.c.b16 %v1000, %v996
    %v1037 = vpack.c.b16 %v1001, %v997
    %v1038 = vpack.c.b16 %v1006, %v1002
    %v1039 = vpack.c.b16 %v1007, %v1003
    %v1040 = vpack.c.b16 %v1008, %v1004
    %v1041 = vpack.c.b16 %v1009, %v1005
    %1074 = vmatpush.bf16.msra.mxu0 %v1038
    %1075 = vmatpush.bf16.msra.mxu0 %v1034
    %1076 = vmatpush.bf16.msra.mxu0 %v1030
    %1077 = vmatpush.bf16.msra.mxu0 %v1026
    %1078 = vmatpush.bf16.msra.mxu0 %v1022
    %1079 = vmatpush.bf16.msra.mxu0 %v1018
    %1080 = vmatpush.bf16.msra.mxu0 %v1014
    %1081 = vmatpush.bf16.msra.mxu0 %v1010
    %1082 = vmatmul.bf16.gmra.mxu0 %v881
    %v1083 = vpop.f32.mrf.mxu0
    %v1084 = vadd.f32 %v813, %v1083
    %v1085 = vpop.f32.mrf.mxu0
    %1086 = vdwg.mxu0
    %1087 = vmatpush.bf16.msra.mxu0 %v1039
    %1088 = vmatpush.bf16.msra.mxu0 %v1035
    %1089 = vmatpush.bf16.msra.mxu0 %v1031
    %1090 = vmatpush.bf16.msra.mxu0 %v1027
    %1091 = vmatpush.bf16.msra.mxu0 %v1023
    %1092 = vmatpush.bf16.msra.mxu0 %v1019
    %1093 = vmatpush.bf16.msra.mxu0 %v1015
    %1094 = vmatpush.bf16.msra.mxu0 %v1011
    %1095 = vmatmul.bf16.gmra.mxu0 %v881
    %v1096 = vpop.f32.mrf.mxu0
    %v1097 = vadd.f32 %v826, %v1096
    %v1098 = vpop.f32.mrf.mxu0
    %1099 = vdwg.mxu0
    %1100 = vmatpush.bf16.msra.mxu0 %v1040
    %1101 = vmatpush.bf16.msra.mxu0 %v1036
    %1102 = vmatpush.bf16.msra.mxu0 %v1032
    %1103 = vmatpush.bf16.msra.mxu0 %v1028
    %1104 = vmatpush.bf16.msra.mxu0 %v1024
    %1105 = vmatpush.bf16.msra.mxu0 %v1020
    %1106 = vmatpush.bf16.msra.mxu0 %v1016
    %1107 = vmatpush.bf16.msra.mxu0 %v1012
    %1108 = vmatmul.bf16.gmra.mxu0 %v881
    %v1109 = vpop.f32.mrf.mxu0
    %v1110 = vadd.f32 %v839, %v1109
    %v1111 = vpop.f32.mrf.mxu0
    %1112 = vdwg.mxu0
    %1113 = vmatpush.bf16.msra.mxu0 %v1041
    %1114 = vmatpush.bf16.msra.mxu0 %v1037
    %1115 = vmatpush.bf16.msra.mxu0 %v1033
    %1116 = vmatpush.bf16.msra.mxu0 %v1029
    %1117 = vmatpush.bf16.msra.mxu0 %v1025
    %1118 = vmatpush.bf16.msra.mxu0 %v1021
    %1119 = vmatpush.bf16.msra.mxu0 %v1017
    %1120 = vmatpush.bf16.msra.mxu0 %v1013
    %1121 = vmatmul.bf16.gmra.mxu0 %v881
    %v1122 = vpop.f32.mrf.mxu0
    %v1123 = vadd.f32 %v852, %v1122
    %v1124 = vpop.f32.mrf.mxu0
    %1125 = vdwg.mxu0
    %v1126 = vadd.f32 %v1084, %v359
    %v1127 = vadd.f32 %v1097, %v360
    %v1128 = vadd.f32 %v1110, %v361
    %v1129 = vadd.f32 %v1123, %v362
    %v1130 = vmul.f32 %v1126, 0.5
    %v1131 = vtanh.pop %v1130
    %v1132 = vmul.f32 %v1131, 0.5
    %v1133 = vadd.f32 %v1132, 0.5
    %v1134 = vmul.f32 %v1127, 0.5
    %v1135 = vtanh.pop %v1134
    %v1136 = vmul.f32 %v1135, 0.5
    %v1137 = vadd.f32 %v1136, 0.5
    %v1138 = vtanh.pop %v1128
    %v1139 = vmul.f32 %v1129, 0.5
    %v1140 = vtanh.pop %v1139
    %v1141 = vmul.f32 %v1140, 0.5
    %v1142 = vadd.f32 %v1141, 0.5
    %v1143 = vmul.f32 %v1137, 0.0
    %v1144 = vmul.f32 %v1133, %v1138
    %v1145 = vadd.f32 %v1143, %v1144
    %v1146 = vtanh.pop %v1145
    %v1147 = vmul.f32 %v1142, %v1146
    %1148 = vmatpush.bf16.msra.mxu0 %v523
    %1149 = vmatpush.bf16.msra.mxu0 %v519
    %1150 = vmatpush.bf16.msra.mxu0 %v515
    %1151 = vmatpush.bf16.msra.mxu0 %v511
    %1152 = vmatpush.bf16.msra.mxu0 %v507
    %1153 = vmatpush.bf16.msra.mxu0 %v503
    %1154 = vmatpush.bf16.msra.mxu0 %v499
    %1155 = vmatpush.bf16.msra.mxu0 %v495
    %1156 = vmatmul.bf16.gmra.mxu0 %v881
    %v1157 = vpop.f32.mrf.mxu0
    %v1158 = vadd.f32 0.0, %v1157
    %v1159 = vpop.f32.mrf.mxu0
    %1160 = vdwg.mxu0
    %1161 = vmatpush.bf16.msra.mxu0 %v524
    %1162 = vmatpush.bf16.msra.mxu0 %v520
    %1163 = vmatpush.bf16.msra.mxu0 %v516
    %1164 = vmatpush.bf16.msra.mxu0 %v512
    %1165 = vmatpush.bf16.msra.mxu0 %v508
    %1166 = vmatpush.bf16.msra.mxu0 %v504
    %1167 = vmatpush.bf16.msra.mxu0 %v500
    %1168 = vmatpush.bf16.msra.mxu0 %v496
    %1169 = vmatmul.bf16.gmra.mxu0 %v881
    %v1170 = vpop.f32.mrf.mxu0
    %v1171 = vadd.f32 0.0, %v1170
    %v1172 = vpop.f32.mrf.mxu0
    %1173 = vdwg.mxu0
    %1174 = vmatpush.bf16.msra.mxu0 %v525
    %1175 = vmatpush.bf16.msra.mxu0 %v521
    %1176 = vmatpush.bf16.msra.mxu0 %v517
    %1177 = vmatpush.bf16.msra.mxu0 %v513
    %1178 = vmatpush.bf16.msra.mxu0 %v509
    %1179 = vmatpush.bf16.msra.mxu0 %v505
    %1180 = vmatpush.bf16.msra.mxu0 %v501
    %1181 = vmatpush.bf16.msra.mxu0 %v497
    %1182 = vmatmul.bf16.gmra.mxu0 %v881
    %v1183 = vpop.f32.mrf.mxu0
    %v1184 = vadd.f32 0.0, %v1183
    %v1185 = vpop.f32.mrf.mxu0
    %1186 = vdwg.mxu0
    %1187 = vmatpush.bf16.msra.mxu0 %v526
    %1188 = vmatpush.bf16.msra.mxu0 %v522
    %1189 = vmatpush.bf16.msra.mxu0 %v518
    %1190 = vmatpush.bf16.msra.mxu0 %v514
    %1191 = vmatpush.bf16.msra.mxu0 %v510
    %1192 = vmatpush.bf16.msra.mxu0 %v506
    %1193 = vmatpush.bf16.msra.mxu0 %v502
    %1194 = vmatpush.bf16.msra.mxu0 %v498
    %1195 = vmatmul.bf16.gmra.mxu0 %v881
    %v1196 = vpop.f32.mrf.mxu0
    %v1197 = vadd.f32 0.0, %v1196
    %v1198 = vpop.f32.mrf.mxu0
    %1199 = vdwg.mxu0
    %v1200 = vpack.c.bf16 %v1147, %v1147
    %1201 = vmatpush.bf16.msra.mxu0 %v767
    %1202 = vmatpush.bf16.msra.mxu0 %v763
    %1203 = vmatpush.bf16.msra.mxu0 %v759
    %1204 = vmatpush.bf16.msra.mxu0 %v755
    %1205 = vmatpush.bf16.msra.mxu0 %v751
    %1206 = vmatpush.bf16.msra.mxu0 %v747
    %1207 = vmatpush.bf16.msra.mxu0 %v743
    %1208 = vmatpush.bf16.msra.mxu0 %v739
    %1209 = vmatmul.bf16.gmra.mxu0 %v1200
    %v1210 = vpop.f32.mrf.mxu0
    %v1211 = vadd.f32 0.0, %v1210
    %v1212 = vpop.f32.mrf.mxu0
    %1213 = vdwg.mxu0
    %1214 = vmatpush.bf16.msra.mxu0 %v768
    %1215 = vmatpush.bf16.msra.mxu0 %v764
    %1216 = vmatpush.bf16.msra.mxu0 %v760
    %1217 = vmatpush.bf16.msra.mxu0 %v756
    %1218 = vmatpush.bf16.msra.mxu0 %v752
    %1219 = vmatpush.bf16.msra.mxu0 %v748
    %1220 = vmatpush.bf16.msra.mxu0 %v744
    %1221 = vmatpush.bf16.msra.mxu0 %v740
    %1222 = vmatmul.bf16.gmra.mxu0 %v1200
    %v1223 = vpop.f32.mrf.mxu0
    %v1224 = vadd.f32 0.0, %v1223
    %v1225 = vpop.f32.mrf.mxu0
    %1226 = vdwg.mxu0
    %1227 = vmatpush.bf16.msra.mxu0 %v769
    %1228 = vmatpush.bf16.msra.mxu0 %v765
    %1229 = vmatpush.bf16.msra.mxu0 %v761
    %1230 = vmatpush.bf16.msra.mxu0 %v757
    %1231 = vmatpush.bf16.msra.mxu0 %v753
    %1232 = vmatpush.bf16.msra.mxu0 %v749
    %1233 = vmatpush.bf16.msra.mxu0 %v745
    %1234 = vmatpush.bf16.msra.mxu0 %v741
    %1235 = vmatmul.bf16.gmra.mxu0 %v1200
    %v1236 = vpop.f32.mrf.mxu0
    %v1237 = vadd.f32 0.0, %v1236
    %v1238 = vpop.f32.mrf.mxu0
    %1239 = vdwg.mxu0
    %1240 = vmatpush.bf16.msra.mxu0 %v770
    %1241 = vmatpush.bf16.msra.mxu0 %v766
    %1242 = vmatpush.bf16.msra.mxu0 %v762
    %1243 = vmatpush.bf16.msra.mxu0 %v758
    %1244 = vmatpush.bf16.msra.mxu0 %v754
    %1245 = vmatpush.bf16.msra.mxu0 %v750
    %1246 = vmatpush.bf16.msra.mxu0 %v746
    %1247 = vmatpush.bf16.msra.mxu0 %v742
    %1248 = vmatmul.bf16.gmra.mxu0 %v1200
    %v1249 = vpop.f32.mrf.mxu0
    %v1250 = vadd.f32 0.0, %v1249
    %v1251 = vpop.f32.mrf.mxu0
    %1252 = vdwg.mxu0
    %v1253 = vld [vmem:[#allocation2 + $0x20] sm:$0xff]
    %v1254 = vld [vmem:[#allocation2 + $0x28] sm:$0xff]
    %v1255 = vld [vmem:[#allocation2 + $0x30] sm:$0xff]
    %v1256 = vld [vmem:[#allocation2 + $0x38] sm:$0xff]
    %v1257 = vadd.f32 %v1253, %v1158
    %v1258 = vadd.f32 %v1254, %v1171
    %v1259 = vadd.f32 %v1255, %v1184
    %v1260 = vadd.f32 %v1256, %v1197
    %v1261 = vmul.f32 %v1257, 0.5
    %v1262 = vtanh.pop %v1261
    %v1263 = vmul.f32 %v1262, 0.5
    %v1264 = vadd.f32 %v1263, 0.5
    %v1265 = vmul.f32 %v1258, 0.5
    %v1266 = vtanh.pop %v1265
    %v1267 = vmul.f32 %v1266, 0.5
    %v1268 = vadd.f32 %v1267, 0.5
    %v1269 = vtanh.pop %v1259
    %v1270 = vmul.f32 %v1260, 0.5
    %v1271 = vtanh.pop %v1270
    %v1272 = vmul.f32 %v1271, 0.5
    %v1273 = vadd.f32 %v1272, 0.5
    %v1274 = vmul.f32 %v1268, %v878
    %v1275 = vmul.f32 %v1264, %v1269
    %v1276 = vadd.f32 %v1274, %v1275
    %v1277 = vtanh.pop %v1276
    %v1278 = vmul.f32 %v1273, %v1277
    %v1279 = vpack.c.bf16 %v1278, %v1278
    %1280 = vmatpush.bf16.msra.mxu0 %v1038
    %1281 = vmatpush.bf16.msra.mxu0 %v1034
    %1282 = vmatpush.bf16.msra.mxu0 %v1030
    %1283 = vmatpush.bf16.msra.mxu0 %v1026
    %1284 = vmatpush.bf16.msra.mxu0 %v1022
    %1285 = vmatpush.bf16.msra.mxu0 %v1018
    %1286 = vmatpush.bf16.msra.mxu0 %v1014
    %1287 = vmatpush.bf16.msra.mxu0 %v1010
    %1288 = vmatmul.bf16.gmra.mxu0 %v1279
    %v1289 = vpop.f32.mrf.mxu0
    %v1290 = vadd.f32 %v1211, %v1289
    %v1291 = vpop.f32.mrf.mxu0
    %1292 = vdwg.mxu0
    %1293 = vmatpush.bf16.msra.mxu0 %v1039
    %1294 = vmatpush.bf16.msra.mxu0 %v1035
    %1295 = vmatpush.bf16.msra.mxu0 %v1031
    %1296 = vmatpush.bf16.msra.mxu0 %v1027
    %1297 = vmatpush.bf16.msra.mxu0 %v1023
    %1298 = vmatpush.bf16.msra.mxu0 %v1019
    %1299 = vmatpush.bf16.msra.mxu0 %v1015
    %1300 = vmatpush.bf16.msra.mxu0 %v1011
    %1301 = vmatmul.bf16.gmra.mxu0 %v1279
    %v1302 = vpop.f32.mrf.mxu0
    %v1303 = vadd.f32 %v1224, %v1302
    %v1304 = vpop.f32.mrf.mxu0
    %1305 = vdwg.mxu0
    %1306 = vmatpush.bf16.msra.mxu0 %v1040
    %1307 = vmatpush.bf16.msra.mxu0 %v1036
    %1308 = vmatpush.bf16.msra.mxu0 %v1032
    %1309 = vmatpush.bf16.msra.mxu0 %v1028
    %1310 = vmatpush.bf16.msra.mxu0 %v1024
    %1311 = vmatpush.bf16.msra.mxu0 %v1020
    %1312 = vmatpush.bf16.msra.mxu0 %v1016
    %1313 = vmatpush.bf16.msra.mxu0 %v1012
    %1314 = vmatmul.bf16.gmra.mxu0 %v1279
    %v1315 = vpop.f32.mrf.mxu0
    %v1316 = vadd.f32 %v1237, %v1315
    %v1317 = vpop.f32.mrf.mxu0
    %1318 = vdwg.mxu0
    %1319 = vmatpush.bf16.msra.mxu0 %v1041
    %1320 = vmatpush.bf16.msra.mxu0 %v1037
    %1321 = vmatpush.bf16.msra.mxu0 %v1033
    %1322 = vmatpush.bf16.msra.mxu0 %v1029
    %1323 = vmatpush.bf16.msra.mxu0 %v1025
    %1324 = vmatpush.bf16.msra.mxu0 %v1021
    %1325 = vmatpush.bf16.msra.mxu0 %v1017
    %1326 = vmatpush.bf16.msra.mxu0 %v1013
    %1327 = vmatmul.bf16.gmra.mxu0 %v1279
    %v1328 = vpop.f32.mrf.mxu0
    %v1329 = vadd.f32 %v1250, %v1328
    %v1330 = vpop.f32.mrf.mxu0
    %1331 = vdwg.mxu0
    %v1332 = vadd.f32 %v1290, %v359
    %v1333 = vadd.f32 %v1303, %v360
    %v1334 = vadd.f32 %v1316, %v361
    %v1335 = vadd.f32 %v1329, %v362
    %v1336 = vmul.f32 %v1332, 0.5
    %v1337 = vtanh.pop %v1336
    %v1338 = vmul.f32 %v1337, 0.5
    %v1339 = vadd.f32 %v1338, 0.5
    %v1340 = vmul.f32 %v1333, 0.5
    %v1341 = vtanh.pop %v1340
    %v1342 = vmul.f32 %v1341, 0.5
    %v1343 = vadd.f32 %v1342, 0.5
    %v1344 = vtanh.pop %v1334
    %v1345 = vmul.f32 %v1335, 0.5
    %v1346 = vtanh.pop %v1345
    %v1347 = vmul.f32 %v1346, 0.5
    %v1348 = vadd.f32 %v1347, 0.5
    %v1349 = vmul.f32 %v1343, %v1145
    %v1350 = vmul.f32 %v1339, %v1344
    %v1351 = vadd.f32 %v1349, %v1350
    %v1352 = vtanh.pop %v1351
    %v1353 = vmul.f32 %v1348, %v1352
    %1354 = vmatpush.bf16.msra.mxu0 %v523
    %1355 = vmatpush.bf16.msra.mxu0 %v519
    %1356 = vmatpush.bf16.msra.mxu0 %v515
    %1357 = vmatpush.bf16.msra.mxu0 %v511
    %1358 = vmatpush.bf16.msra.mxu0 %v507
    %1359 = vmatpush.bf16.msra.mxu0 %v503
    %1360 = vmatpush.bf16.msra.mxu0 %v499
    %1361 = vmatpush.bf16.msra.mxu0 %v495
    %1362 = vmatmul.bf16.gmra.mxu0 %v1279
    %v1363 = vpop.f32.mrf.mxu0
    %v1364 = vadd.f32 0.0, %v1363
    %v1365 = vpop.f32.mrf.mxu0
    %1366 = vdwg.mxu0
    %1367 = vmatpush.bf16.msra.mxu0 %v524
    %1368 = vmatpush.bf16.msra.mxu0 %v520
    %1369 = vmatpush.bf16.msra.mxu0 %v516
    %1370 = vmatpush.bf16.msra.mxu0 %v512
    %1371 = vmatpush.bf16.msra.mxu0 %v508
    %1372 = vmatpush.bf16.msra.mxu0 %v504
    %1373 = vmatpush.bf16.msra.mxu0 %v500
    %1374 = vmatpush.bf16.msra.mxu0 %v496
    %1375 = vmatmul.bf16.gmra.mxu0 %v1279
    %v1376 = vpop.f32.mrf.mxu0
    %v1377 = vadd.f32 0.0, %v1376
    %v1378 = vpop.f32.mrf.mxu0
    %1379 = vdwg.mxu0
    %1380 = vmatpush.bf16.msra.mxu0 %v525
    %1381 = vmatpush.bf16.msra.mxu0 %v521
    %1382 = vmatpush.bf16.msra.mxu0 %v517
    %1383 = vmatpush.bf16.msra.mxu0 %v513
    %1384 = vmatpush.bf16.msra.mxu0 %v509
    %1385 = vmatpush.bf16.msra.mxu0 %v505
    %1386 = vmatpush.bf16.msra.mxu0 %v501
    %1387 = vmatpush.bf16.msra.mxu0 %v497
    %1388 = vmatmul.bf16.gmra.mxu0 %v1279
    %v1389 = vpop.f32.mrf.mxu0
    %v1390 = vadd.f32 0.0, %v1389
    %v1391 = vpop.f32.mrf.mxu0
    %1392 = vdwg.mxu0
    %1393 = vmatpush.bf16.msra.mxu0 %v526
    %1394 = vmatpush.bf16.msra.mxu0 %v522
    %1395 = vmatpush.bf16.msra.mxu0 %v518
    %1396 = vmatpush.bf16.msra.mxu0 %v514
    %1397 = vmatpush.bf16.msra.mxu0 %v510
    %1398 = vmatpush.bf16.msra.mxu0 %v506
    %1399 = vmatpush.bf16.msra.mxu0 %v502
    %1400 = vmatpush.bf16.msra.mxu0 %v498
    %1401 = vmatmul.bf16.gmra.mxu0 %v1279
    %v1402 = vpop.f32.mrf.mxu0
    %v1403 = vadd.f32 0.0, %v1402
    %v1404 = vpop.f32.mrf.mxu0
    %1405 = vdwg.mxu0
    %v1406 = vpack.c.bf16 %v1353, %v1353
    %1407 = vmatpush.bf16.msra.mxu0 %v767
    %1408 = vmatpush.bf16.msra.mxu0 %v763
    %1409 = vmatpush.bf16.msra.mxu0 %v759
    %1410 = vmatpush.bf16.msra.mxu0 %v755
    %1411 = vmatpush.bf16.msra.mxu0 %v751
    %1412 = vmatpush.bf16.msra.mxu0 %v747
    %1413 = vmatpush.bf16.msra.mxu0 %v743
    %1414 = vmatpush.bf16.msra.mxu0 %v739
    %1415 = vmatmul.bf16.gmra.mxu0 %v1406
    %v1416 = vpop.f32.mrf.mxu0
    %v1417 = vadd.f32 0.0, %v1416
    %v1418 = vpop.f32.mrf.mxu0
    %1419 = vdwg.mxu0
    %1420 = vmatpush.bf16.msra.mxu0 %v768
    %1421 = vmatpush.bf16.msra.mxu0 %v764
    %1422 = vmatpush.bf16.msra.mxu0 %v760
    %1423 = vmatpush.bf16.msra.mxu0 %v756
    %1424 = vmatpush.bf16.msra.mxu0 %v752
    %1425 = vmatpush.bf16.msra.mxu0 %v748
    %1426 = vmatpush.bf16.msra.mxu0 %v744
    %1427 = vmatpush.bf16.msra.mxu0 %v740
    %1428 = vmatmul.bf16.gmra.mxu0 %v1406
    %v1429 = vpop.f32.mrf.mxu0
    %v1430 = vadd.f32 0.0, %v1429
    %v1431 = vpop.f32.mrf.mxu0
    %1432 = vdwg.mxu0
    %1433 = vmatpush.bf16.msra.mxu0 %v769
    %1434 = vmatpush.bf16.msra.mxu0 %v765
    %1435 = vmatpush.bf16.msra.mxu0 %v761
    %1436 = vmatpush.bf16.msra.mxu0 %v757
    %1437 = vmatpush.bf16.msra.mxu0 %v753
    %1438 = vmatpush.bf16.msra.mxu0 %v749
    %1439 = vmatpush.bf16.msra.mxu0 %v745
    %1440 = vmatpush.bf16.msra.mxu0 %v741
    %1441 = vmatmul.bf16.gmra.mxu0 %v1406
    %v1442 = vpop.f32.mrf.mxu0
    %v1443 = vadd.f32 0.0, %v1442
    %v1444 = vpop.f32.mrf.mxu0
    %1445 = vdwg.mxu0
    %1446 = vmatpush.bf16.msra.mxu0 %v770
    %1447 = vmatpush.bf16.msra.mxu0 %v766
    %1448 = vmatpush.bf16.msra.mxu0 %v762
    %1449 = vmatpush.bf16.msra.mxu0 %v758
    %1450 = vmatpush.bf16.msra.mxu0 %v754
    %1451 = vmatpush.bf16.msra.mxu0 %v750
    %1452 = vmatpush.bf16.msra.mxu0 %v746
    %1453 = vmatpush.bf16.msra.mxu0 %v742
    %1454 = vmatmul.bf16.gmra.mxu0 %v1406
    %v1455 = vpop.f32.mrf.mxu0
    %v1456 = vadd.f32 0.0, %v1455
    %v1457 = vpop.f32.mrf.mxu0
    %1458 = vdwg.mxu0
    %v1459 = vld [vmem:[#allocation2 + $0x40] sm:$0xff]
    %v1460 = vld [vmem:[#allocation2 + $0x48] sm:$0xff]
    %v1461 = vld [vmem:[#allocation2 + $0x50] sm:$0xff]
    %v1462 = vld [vmem:[#allocation2 + $0x58] sm:$0xff]
    %v1463 = vadd.f32 %v1459, %v1364
    %v1464 = vadd.f32 %v1460, %v1377
    %v1465 = vadd.f32 %v1461, %v1390
    %v1466 = vadd.f32 %v1462, %v1403
    %v1467 = vmul.f32 %v1463, 0.5
    %v1468 = vtanh.pop %v1467
    %v1469 = vmul.f32 %v1468, 0.5
    %v1470 = vadd.f32 %v1469, 0.5
    %v1471 = vmul.f32 %v1464, 0.5
    %v1472 = vtanh.pop %v1471
    %v1473 = vmul.f32 %v1472, 0.5
    %v1474 = vadd.f32 %v1473, 0.5
    %v1475 = vtanh.pop %v1465
    %v1476 = vmul.f32 %v1466, 0.5
    %v1477 = vtanh.pop %v1476
    %v1478 = vmul.f32 %v1477, 0.5
    %v1479 = vadd.f32 %v1478, 0.5
    %v1480 = vmul.f32 %v1474, %v1276
    %v1481 = vmul.f32 %v1470, %v1475
    %v1482 = vadd.f32 %v1480, %v1481
    %v1483 = vtanh.pop %v1482
    %v1484 = vmul.f32 %v1479, %v1483
    %v1485 = vpack.c.bf16 %v1484, %v1484
    %1486 = vmatpush.bf16.msra.mxu0 %v1038
    %1487 = vmatpush.bf16.msra.mxu0 %v1034
    %1488 = vmatpush.bf16.msra.mxu0 %v1030
    %1489 = vmatpush.bf16.msra.mxu0 %v1026
    %1490 = vmatpush.bf16.msra.mxu0 %v1022
    %1491 = vmatpush.bf16.msra.mxu0 %v1018
    %1492 = vmatpush.bf16.msra.mxu0 %v1014
    %1493 = vmatpush.bf16.msra.mxu0 %v1010
    %1494 = vmatmul.bf16.gmra.mxu0 %v1485
    %v1495 = vpop.f32.mrf.mxu0
    %v1496 = vadd.f32 %v1417, %v1495
    %v1497 = vpop.f32.mrf.mxu0
    %1498 = vdwg.mxu0
    %1499 = vmatpush.bf16.msra.mxu0 %v1039
    %1500 = vmatpush.bf16.msra.mxu0 %v1035
    %1501 = vmatpush.bf16.msra.mxu0 %v1031
    %1502 = vmatpush.bf16.msra.mxu0 %v1027
    %1503 = vmatpush.bf16.msra.mxu0 %v1023
    %1504 = vmatpush.bf16.msra.mxu0 %v1019
    %1505 = vmatpush.bf16.msra.mxu0 %v1015
    %1506 = vmatpush.bf16.msra.mxu0 %v1011
    %1507 = vmatmul.bf16.gmra.mxu0 %v1485
    %v1508 = vpop.f32.mrf.mxu0
    %v1509 = vadd.f32 %v1430, %v1508
    %v1510 = vpop.f32.mrf.mxu0
    %1511 = vdwg.mxu0
    %1512 = vmatpush.bf16.msra.mxu0 %v1040
    %1513 = vmatpush.bf16.msra.mxu0 %v1036
    %1514 = vmatpush.bf16.msra.mxu0 %v1032
    %1515 = vmatpush.bf16.msra.mxu0 %v1028
    %1516 = vmatpush.bf16.msra.mxu0 %v1024
    %1517 = vmatpush.bf16.msra.mxu0 %v1020
    %1518 = vmatpush.bf16.msra.mxu0 %v1016
    %1519 = vmatpush.bf16.msra.mxu0 %v1012
    %1520 = vmatmul.bf16.gmra.mxu0 %v1485
    %v1521 = vpop.f32.mrf.mxu0
    %v1522 = vadd.f32 %v1443, %v1521
    %v1523 = vpop.f32.mrf.mxu0
    %1524 = vdwg.mxu0
    %1525 = vmatpush.bf16.msra.mxu0 %v1041
    %1526 = vmatpush.bf16.msra.mxu0 %v1037
    %1527 = vmatpush.bf16.msra.mxu0 %v1033
    %1528 = vmatpush.bf16.msra.mxu0 %v1029
    %1529 = vmatpush.bf16.msra.mxu0 %v1025
    %1530 = vmatpush.bf16.msra.mxu0 %v1021
    %1531 = vmatpush.bf16.msra.mxu0 %v1017
    %1532 = vmatpush.bf16.msra.mxu0 %v1013
    %1533 = vmatmul.bf16.gmra.mxu0 %v1485
    %v1534 = vpop.f32.mrf.mxu0
    %v1535 = vadd.f32 %v1456, %v1534
    %v1536 = vpop.f32.mrf.mxu0
    %1537 = vdwg.mxu0
    %v1538 = vadd.f32 %v1496, %v359
    %v1539 = vadd.f32 %v1509, %v360
    %v1540 = vadd.f32 %v1522, %v361
    %v1541 = vadd.f32 %v1535, %v362
    %v1542 = vmul.f32 %v1538, 0.5
    %v1543 = vtanh.pop %v1542
    %v1544 = vmul.f32 %v1543, 0.5
    %v1545 = vadd.f32 %v1544, 0.5
    %v1546 = vmul.f32 %v1539, 0.5
    %v1547 = vtanh.pop %v1546
    %v1548 = vmul.f32 %v1547, 0.5
    %v1549 = vadd.f32 %v1548, 0.5
    %v1550 = vtanh.pop %v1540
    %v1551 = vmul.f32 %v1541, 0.5
    %v1552 = vtanh.pop %v1551
    %v1553 = vmul.f32 %v1552, 0.5
    %v1554 = vadd.f32 %v1553, 0.5
    %v1555 = vmul.f32 %v1549, %v1351
    %v1556 = vmul.f32 %v1545, %v1550
    %v1557 = vadd.f32 %v1555, %v1556
    %v1558 = vtanh.pop %v1557
    %v1559 = vmul.f32 %v1554, %v1558
    %1560 = vmatpush.bf16.msra.mxu0 %v523
    %1561 = vmatpush.bf16.msra.mxu0 %v519
    %1562 = vmatpush.bf16.msra.mxu0 %v515
    %1563 = vmatpush.bf16.msra.mxu0 %v511
    %1564 = vmatpush.bf16.msra.mxu0 %v507
    %1565 = vmatpush.bf16.msra.mxu0 %v503
    %1566 = vmatpush.bf16.msra.mxu0 %v499
    %1567 = vmatpush.bf16.msra.mxu0 %v495
    %1568 = vmatmul.bf16.gmra.mxu0 %v1485
    %v1569 = vpop.f32.mrf.mxu0
    %v1570 = vadd.f32 0.0, %v1569
    %v1571 = vpop.f32.mrf.mxu0
    %1572 = vdwg.mxu0
    %1573 = vmatpush.bf16.msra.mxu0 %v524
    %1574 = vmatpush.bf16.msra.mxu0 %v520
    %1575 = vmatpush.bf16.msra.mxu0 %v516
    %1576 = vmatpush.bf16.msra.mxu0 %v512
    %1577 = vmatpush.bf16.msra.mxu0 %v508
    %1578 = vmatpush.bf16.msra.mxu0 %v504
    %1579 = vmatpush.bf16.msra.mxu0 %v500
    %1580 = vmatpush.bf16.msra.mxu0 %v496
    %1581 = vmatmul.bf16.gmra.mxu0 %v1485
    %v1582 = vpop.f32.mrf.mxu0
    %v1583 = vadd.f32 0.0, %v1582
    %v1584 = vpop.f32.mrf.mxu0
    %1585 = vdwg.mxu0
    %1586 = vmatpush.bf16.msra.mxu0 %v525
    %1587 = vmatpush.bf16.msra.mxu0 %v521
    %1588 = vmatpush.bf16.msra.mxu0 %v517
    %1589 = vmatpush.bf16.msra.mxu0 %v513
    %1590 = vmatpush.bf16.msra.mxu0 %v509
    %1591 = vmatpush.bf16.msra.mxu0 %v505
    %1592 = vmatpush.bf16.msra.mxu0 %v501
    %1593 = vmatpush.bf16.msra.mxu0 %v497
    %1594 = vmatmul.bf16.gmra.mxu0 %v1485
    %v1595 = vpop.f32.mrf.mxu0
    %v1596 = vadd.f32 0.0, %v1595
    %v1597 = vpop.f32.mrf.mxu0
    %1598 = vdwg.mxu0
    %1599 = vmatpush.bf16.msra.mxu0 %v526
    %1600 = vmatpush.bf16.msra.mxu0 %v522
    %1601 = vmatpush.bf16.msra.mxu0 %v518
    %1602 = vmatpush.bf16.msra.mxu0 %v514
    %1603 = vmatpush.bf16.msra.mxu0 %v510
    %1604 = vmatpush.bf16.msra.mxu0 %v506
    %1605 = vmatpush.bf16.msra.mxu0 %v502
    %1606 = vmatpush.bf16.msra.mxu0 %v498
    %1607 = vmatmul.bf16.gmra.mxu0 %v1485
    %v1608 = vpop.f32.mrf.mxu0
    %v1609 = vadd.f32 0.0, %v1608
    %v1610 = vpop.f32.mrf.mxu0
    %1611 = vdwg.mxu0
    %v1612 = vpack.c.bf16 %v1559, %v1559
    %1613 = vmatpush.bf16.msra.mxu0 %v767
    %1614 = vmatpush.bf16.msra.mxu0 %v763
    %1615 = vmatpush.bf16.msra.mxu0 %v759
    %1616 = vmatpush.bf16.msra.mxu0 %v755
    %1617 = vmatpush.bf16.msra.mxu0 %v751
    %1618 = vmatpush.bf16.msra.mxu0 %v747
    %1619 = vmatpush.bf16.msra.mxu0 %v743
    %1620 = vmatpush.bf16.msra.mxu0 %v739
    %1621 = vmatmul.bf16.gmra.mxu0 %v1612
    %v1622 = vpop.f32.mrf.mxu0
    %v1623 = vadd.f32 0.0, %v1622
    %v1624 = vpop.f32.mrf.mxu0
    %1625 = vdwg.mxu0
    %1626 = vmatpush.bf16.msra.mxu0 %v768
    %1627 = vmatpush.bf16.msra.mxu0 %v764
    %1628 = vmatpush.bf16.msra.mxu0 %v760
    %1629 = vmatpush.bf16.msra.mxu0 %v756
    %1630 = vmatpush.bf16.msra.mxu0 %v752
    %1631 = vmatpush.bf16.msra.mxu0 %v748
    %1632 = vmatpush.bf16.msra.mxu0 %v744
    %1633 = vmatpush.bf16.msra.mxu0 %v740
    %1634 = vmatmul.bf16.gmra.mxu0 %v1612
    %v1635 = vpop.f32.mrf.mxu0
    %v1636 = vadd.f32 0.0, %v1635
    %v1637 = vpop.f32.mrf.mxu0
    %1638 = vdwg.mxu0
    %1639 = vmatpush.bf16.msra.mxu0 %v769
    %1640 = vmatpush.bf16.msra.mxu0 %v765
    %1641 = vmatpush.bf16.msra.mxu0 %v761
    %1642 = vmatpush.bf16.msra.mxu0 %v757
    %1643 = vmatpush.bf16.msra.mxu0 %v753
    %1644 = vmatpush.bf16.msra.mxu0 %v749
    %1645 = vmatpush.bf16.msra.mxu0 %v745
    %1646 = vmatpush.bf16.msra.mxu0 %v741
    %1647 = vmatmul.bf16.gmra.mxu0 %v1612
    %v1648 = vpop.f32.mrf.mxu0
    %v1649 = vadd.f32 0.0, %v1648
    %v1650 = vpop.f32.mrf.mxu0
    %1651 = vdwg.mxu0
    %1652 = vmatpush.bf16.msra.mxu0 %v770
    %1653 = vmatpush.bf16.msra.mxu0 %v766
    %1654 = vmatpush.bf16.msra.mxu0 %v762
    %1655 = vmatpush.bf16.msra.mxu0 %v758
    %1656 = vmatpush.bf16.msra.mxu0 %v754
    %1657 = vmatpush.bf16.msra.mxu0 %v750
    %1658 = vmatpush.bf16.msra.mxu0 %v746
    %1659 = vmatpush.bf16.msra.mxu0 %v742
    %1660 = vmatmul.bf16.gmra.mxu0 %v1612
    %v1661 = vpop.f32.mrf.mxu0
    %v1662 = vadd.f32 0.0, %v1661
    %v1663 = vpop.f32.mrf.mxu0
    %1664 = vdwg.mxu0
    %v1665 = vld [vmem:[#allocation2 + $0x60] sm:$0xff]
    %v1666 = vld [vmem:[#allocation2 + $0x68] sm:$0xff]
    %v1667 = vld [vmem:[#allocation2 + $0x70] sm:$0xff]
    %v1668 = vld [vmem:[#allocation2 + $0x78] sm:$0xff]
    %v1669 = vadd.f32 %v1665, %v1570
    %v1670 = vadd.f32 %v1666, %v1583
    %v1671 = vadd.f32 %v1667, %v1596
    %v1672 = vadd.f32 %v1668, %v1609
    %v1673 = vmul.f32 %v1669, 0.5
    %v1674 = vtanh.pop %v1673
    %v1675 = vmul.f32 %v1674, 0.5
    %v1676 = vadd.f32 %v1675, 0.5
    %v1677 = vmul.f32 %v1670, 0.5
    %v1678 = vtanh.pop %v1677
    %v1679 = vmul.f32 %v1678, 0.5
    %v1680 = vadd.f32 %v1679, 0.5
    %v1681 = vtanh.pop %v1671
    %v1682 = vmul.f32 %v1672, 0.5
    %v1683 = vtanh.pop %v1682
    %v1684 = vmul.f32 %v1683, 0.5
    %v1685 = vadd.f32 %v1684, 0.5
    %v1686 = vmul.f32 %v1680, %v1482
    %v1687 = vmul.f32 %v1676, %v1681
    %v1688 = vadd.f32 %v1686, %v1687
    %v1689 = vtanh.pop %v1688
    %v1690 = vmul.f32 %v1685, %v1689
    %v1691 = vpack.c.bf16 %v1690, %v1690
    %1692 = vmatpush.bf16.msra.mxu0 %v1038
    %1693 = vmatpush.bf16.msra.mxu0 %v1034
    %1694 = vmatpush.bf16.msra.mxu0 %v1030
    %1695 = vmatpush.bf16.msra.mxu0 %v1026
    %1696 = vmatpush.bf16.msra.mxu0 %v1022
    %1697 = vmatpush.bf16.msra.mxu0 %v1018
    %1698 = vmatpush.bf16.msra.mxu0 %v1014
    %1699 = vmatpush.bf16.msra.mxu0 %v1010
    %1700 = vmatmul.bf16.gmra.mxu0 %v1691
    %v1701 = vpop.f32.mrf.mxu0
    %v1702 = vadd.f32 %v1623, %v1701
    %v1703 = vpop.f32.mrf.mxu0
    %1704 = vdwg.mxu0
    %1705 = vmatpush.bf16.msra.mxu0 %v1039
    %1706 = vmatpush.bf16.msra.mxu0 %v1035
    %1707 = vmatpush.bf16.msra.mxu0 %v1031
    %1708 = vmatpush.bf16.msra.mxu0 %v1027
    %1709 = vmatpush.bf16.msra.mxu0 %v1023
    %1710 = vmatpush.bf16.msra.mxu0 %v1019
    %1711 = vmatpush.bf16.msra.mxu0 %v1015
    %1712 = vmatpush.bf16.msra.mxu0 %v1011
    %1713 = vmatmul.bf16.gmra.mxu0 %v1691
    %v1714 = vpop.f32.mrf.mxu0
    %v1715 = vadd.f32 %v1636, %v1714
    %v1716 = vpop.f32.mrf.mxu0
    %1717 = vdwg.mxu0
    %1718 = vmatpush.bf16.msra.mxu0 %v1040
    %1719 = vmatpush.bf16.msra.mxu0 %v1036
    %1720 = vmatpush.bf16.msra.mxu0 %v1032
    %1721 = vmatpush.bf16.msra.mxu0 %v1028
    %1722 = vmatpush.bf16.msra.mxu0 %v1024
    %1723 = vmatpush.bf16.msra.mxu0 %v1020
    %1724 = vmatpush.bf16.msra.mxu0 %v1016
    %1725 = vmatpush.bf16.msra.mxu0 %v1012
    %1726 = vmatmul.bf16.gmra.mxu0 %v1691
    %v1727 = vpop.f32.mrf.mxu0
    %v1728 = vadd.f32 %v1649, %v1727
    %v1729 = vpop.f32.mrf.mxu0
    %1730 = vdwg.mxu0
    %1731 = vmatpush.bf16.msra.mxu0 %v1041
    %1732 = vmatpush.bf16.msra.mxu0 %v1037
    %1733 = vmatpush.bf16.msra.mxu0 %v1033
    %1734 = vmatpush.bf16.msra.mxu0 %v1029
    %1735 = vmatpush.bf16.msra.mxu0 %v1025
    %1736 = vmatpush.bf16.msra.mxu0 %v1021
    %1737 = vmatpush.bf16.msra.mxu0 %v1017
    %1738 = vmatpush.bf16.msra.mxu0 %v1013
    %1739 = vmatmul.bf16.gmra.mxu0 %v1691
    %v1740 = vpop.f32.mrf.mxu0
    %v1741 = vadd.f32 %v1662, %v1740
    %v1742 = vpop.f32.mrf.mxu0
    %1743 = vdwg.mxu0
    %v1744 = vadd.f32 %v1702, %v359
    %v1745 = vadd.f32 %v1715, %v360
    %v1746 = vadd.f32 %v1728, %v361
    %v1747 = vadd.f32 %v1741, %v362
    %v1748 = vmul.f32 %v1744, 0.5
    %v1749 = vtanh.pop %v1748
    %v1750 = vmul.f32 %v1749, 0.5
    %v1751 = vadd.f32 %v1750, 0.5
    %v1752 = vmul.f32 %v1745, 0.5
    %v1753 = vtanh.pop %v1752
    %v1754 = vmul.f32 %v1753, 0.5
    %v1755 = vadd.f32 %v1754, 0.5
    %v1756 = vtanh.pop %v1746
    %v1757 = vmul.f32 %v1747, 0.5
    %v1758 = vtanh.pop %v1757
    %v1759 = vmul.f32 %v1758, 0.5
    %v1760 = vadd.f32 %v1759, 0.5
    %v1761 = vmul.f32 %v1755, %v1557
    %v1762 = vmul.f32 %v1751, %v1756
    %v1763 = vadd.f32 %v1761, %v1762
    %v1764 = vtanh.pop %v1763
    %v1765 = vmul.f32 %v1760, %v1764
    %1766 = vmatpush.bf16.msra.mxu0 %v523
    %1767 = vmatpush.bf16.msra.mxu0 %v519
    %1768 = vmatpush.bf16.msra.mxu0 %v515
    %1769 = vmatpush.bf16.msra.mxu0 %v511
    %1770 = vmatpush.bf16.msra.mxu0 %v507
    %1771 = vmatpush.bf16.msra.mxu0 %v503
    %1772 = vmatpush.bf16.msra.mxu0 %v499
    %1773 = vmatpush.bf16.msra.mxu0 %v495
    %1774 = vmatmul.bf16.gmra.mxu0 %v1691
    %v1775 = vpop.f32.mrf.mxu0
    %v1776 = vadd.f32 0.0, %v1775
    %v1777 = vpop.f32.mrf.mxu0
    %1778 = vdwg.mxu0
    %1779 = vmatpush.bf16.msra.mxu0 %v524
    %1780 = vmatpush.bf16.msra.mxu0 %v520
    %1781 = vmatpush.bf16.msra.mxu0 %v516
    %1782 = vmatpush.bf16.msra.mxu0 %v512
    %1783 = vmatpush.bf16.msra.mxu0 %v508
    %1784 = vmatpush.bf16.msra.mxu0 %v504
    %1785 = vmatpush.bf16.msra.mxu0 %v500
    %1786 = vmatpush.bf16.msra.mxu0 %v496
    %1787 = vmatmul.bf16.gmra.mxu0 %v1691
    %v1788 = vpop.f32.mrf.mxu0
    %v1789 = vadd.f32 0.0, %v1788
    %v1790 = vpop.f32.mrf.mxu0
    %1791 = vdwg.mxu0
    %1792 = vmatpush.bf16.msra.mxu0 %v525
    %1793 = vmatpush.bf16.msra.mxu0 %v521
    %1794 = vmatpush.bf16.msra.mxu0 %v517
    %1795 = vmatpush.bf16.msra.mxu0 %v513
    %1796 = vmatpush.bf16.msra.mxu0 %v509
    %1797 = vmatpush.bf16.msra.mxu0 %v505
    %1798 = vmatpush.bf16.msra.mxu0 %v501
    %1799 = vmatpush.bf16.msra.mxu0 %v497
    %1800 = vmatmul.bf16.gmra.mxu0 %v1691
    %v1801 = vpop.f32.mrf.mxu0
    %v1802 = vadd.f32 0.0, %v1801
    %v1803 = vpop.f32.mrf.mxu0
    %1804 = vdwg.mxu0
    %1805 = vmatpush.bf16.msra.mxu0 %v526
    %1806 = vmatpush.bf16.msra.mxu0 %v522
    %1807 = vmatpush.bf16.msra.mxu0 %v518
    %1808 = vmatpush.bf16.msra.mxu0 %v514
    %1809 = vmatpush.bf16.msra.mxu0 %v510
    %1810 = vmatpush.bf16.msra.mxu0 %v506
    %1811 = vmatpush.bf16.msra.mxu0 %v502
    %1812 = vmatpush.bf16.msra.mxu0 %v498
    %1813 = vmatmul.bf16.gmra.mxu0 %v1691
    %v1814 = vpop.f32.mrf.mxu0
    %v1815 = vadd.f32 0.0, %v1814
    %v1816 = vpop.f32.mrf.mxu0
    %1817 = vdwg.mxu0
    %v1818 = vpack.c.bf16 %v1765, %v1765
    %1819 = vmatpush.bf16.msra.mxu0 %v767
    %1820 = vmatpush.bf16.msra.mxu0 %v763
    %1821 = vmatpush.bf16.msra.mxu0 %v759
    %1822 = vmatpush.bf16.msra.mxu0 %v755
    %1823 = vmatpush.bf16.msra.mxu0 %v751
    %1824 = vmatpush.bf16.msra.mxu0 %v747
    %1825 = vmatpush.bf16.msra.mxu0 %v743
    %1826 = vmatpush.bf16.msra.mxu0 %v739
    %1827 = vmatmul.bf16.gmra.mxu0 %v1818
    %v1828 = vpop.f32.mrf.mxu0
    %v1829 = vadd.f32 0.0, %v1828
    %v1830 = vpop.f32.mrf.mxu0
    %1831 = vdwg.mxu0
    %1832 = vmatpush.bf16.msra.mxu0 %v768
    %1833 = vmatpush.bf16.msra.mxu0 %v764
    %1834 = vmatpush.bf16.msra.mxu0 %v760
    %1835 = vmatpush.bf16.msra.mxu0 %v756
    %1836 = vmatpush.bf16.msra.mxu0 %v752
    %1837 = vmatpush.bf16.msra.mxu0 %v748
    %1838 = vmatpush.bf16.msra.mxu0 %v744
    %1839 = vmatpush.bf16.msra.mxu0 %v740
    %1840 = vmatmul.bf16.gmra.mxu0 %v1818
    %v1841 = vpop.f32.mrf.mxu0
    %v1842 = vadd.f32 0.0, %v1841
    %v1843 = vpop.f32.mrf.mxu0
    %1844 = vdwg.mxu0
    %1845 = vmatpush.bf16.msra.mxu0 %v769
    %1846 = vmatpush.bf16.msra.mxu0 %v765
    %1847 = vmatpush.bf16.msra.mxu0 %v761
    %1848 = vmatpush.bf16.msra.mxu0 %v757
    %1849 = vmatpush.bf16.msra.mxu0 %v753
    %1850 = vmatpush.bf16.msra.mxu0 %v749
    %1851 = vmatpush.bf16.msra.mxu0 %v745
    %1852 = vmatpush.bf16.msra.mxu0 %v741
    %1853 = vmatmul.bf16.gmra.mxu0 %v1818
    %v1854 = vpop.f32.mrf.mxu0
    %v1855 = vadd.f32 0.0, %v1854
    %v1856 = vpop.f32.mrf.mxu0
    %1857 = vdwg.mxu0
    %1858 = vmatpush.bf16.msra.mxu0 %v770
    %1859 = vmatpush.bf16.msra.mxu0 %v766
    %1860 = vmatpush.bf16.msra.mxu0 %v762
    %1861 = vmatpush.bf16.msra.mxu0 %v758
    %1862 = vmatpush.bf16.msra.mxu0 %v754
    %1863 = vmatpush.bf16.msra.mxu0 %v750
    %1864 = vmatpush.bf16.msra.mxu0 %v746
    %1865 = vmatpush.bf16.msra.mxu0 %v742
    %1866 = vmatmul.bf16.gmra.mxu0 %v1818
    %v1867 = vpop.f32.mrf.mxu0
    %v1868 = vadd.f32 0.0, %v1867
    %v1869 = vpop.f32.mrf.mxu0
    %1870 = vdwg.mxu0
    %v1871 = vld [vmem:[#allocation2 + $0x80] sm:$0xff]
    %v1872 = vld [vmem:[#allocation2 + $0x88] sm:$0xff]
    %v1873 = vld [vmem:[#allocation2 + $0x90] sm:$0xff]
    %v1874 = vld [vmem:[#allocation2 + $0x98] sm:$0xff]
    %v1875 = vadd.f32 %v1871, %v1776
    %v1876 = vadd.f32 %v1872, %v1789
    %v1877 = vadd.f32 %v1873, %v1802
    %v1878 = vadd.f32 %v1874, %v1815
    %v1879 = vmul.f32 %v1875, 0.5
    %v1880 = vtanh.pop %v1879
    %v1881 = vmul.f32 %v1880, 0.5
    %v1882 = vadd.f32 %v1881, 0.5
    %v1883 = vmul.f32 %v1876, 0.5
    %v1884 = vtanh.pop %v1883
    %v1885 = vmul.f32 %v1884, 0.5
    %v1886 = vadd.f32 %v1885, 0.5
    %v1887 = vtanh.pop %v1877
    %v1888 = vmul.f32 %v1878, 0.5
    %v1889 = vtanh.pop %v1888
    %v1890 = vmul.f32 %v1889, 0.5
    %v1891 = vadd.f32 %v1890, 0.5
    %v1892 = vmul.f32 %v1886, %v1688
    %v1893 = vmul.f32 %v1882, %v1887
    %v1894 = vadd.f32 %v1892, %v1893
    %v1895 = vtanh.pop %v1894
    %v1896 = vmul.f32 %v1891, %v1895
    %v1897 = vpack.c.bf16 %v1896, %v1896
    %1898 = vmatpush.bf16.msra.mxu0 %v1038
    %1899 = vmatpush.bf16.msra.mxu0 %v1034
    %1900 = vmatpush.bf16.msra.mxu0 %v1030
    %1901 = vmatpush.bf16.msra.mxu0 %v1026
    %1902 = vmatpush.bf16.msra.mxu0 %v1022
    %1903 = vmatpush.bf16.msra.mxu0 %v1018
    %1904 = vmatpush.bf16.msra.mxu0 %v1014
    %1905 = vmatpush.bf16.msra.mxu0 %v1010
    %1906 = vmatmul.bf16.gmra.mxu0 %v1897
    %v1907 = vpop.f32.mrf.mxu0
    %v1908 = vadd.f32 %v1829, %v1907
    %v1909 = vpop.f32.mrf.mxu0
    %1910 = vdwg.mxu0
    %1911 = vmatpush.bf16.msra.mxu0 %v1039
    %1912 = vmatpush.bf16.msra.mxu0 %v1035
    %1913 = vmatpush.bf16.msra.mxu0 %v1031
    %1914 = vmatpush.bf16.msra.mxu0 %v1027
    %1915 = vmatpush.bf16.msra.mxu0 %v1023
    %1916 = vmatpush.bf16.msra.mxu0 %v1019
    %1917 = vmatpush.bf16.msra.mxu0 %v1015
    %1918 = vmatpush.bf16.msra.mxu0 %v1011
    %1919 = vmatmul.bf16.gmra.mxu0 %v1897
    %v1920 = vpop.f32.mrf.mxu0
    %v1921 = vadd.f32 %v1842, %v1920
    %v1922 = vpop.f32.mrf.mxu0
    %1923 = vdwg.mxu0
    %1924 = vmatpush.bf16.msra.mxu0 %v1040
    %1925 = vmatpush.bf16.msra.mxu0 %v1036
    %1926 = vmatpush.bf16.msra.mxu0 %v1032
    %1927 = vmatpush.bf16.msra.mxu0 %v1028
    %1928 = vmatpush.bf16.msra.mxu0 %v1024
    %1929 = vmatpush.bf16.msra.mxu0 %v1020
    %1930 = vmatpush.bf16.msra.mxu0 %v1016
    %1931 = vmatpush.bf16.msra.mxu0 %v1012
    %1932 = vmatmul.bf16.gmra.mxu0 %v1897
    %v1933 = vpop.f32.mrf.mxu0
    %v1934 = vadd.f32 %v1855, %v1933
    %v1935 = vpop.f32.mrf.mxu0
    %1936 = vdwg.mxu0
    %1937 = vmatpush.bf16.msra.mxu0 %v1041
    %1938 = vmatpush.bf16.msra.mxu0 %v1037
    %1939 = vmatpush.bf16.msra.mxu0 %v1033
    %1940 = vmatpush.bf16.msra.mxu0 %v1029
    %1941 = vmatpush.bf16.msra.mxu0 %v1025
    %1942 = vmatpush.bf16.msra.mxu0 %v1021
    %1943 = vmatpush.bf16.msra.mxu0 %v1017
    %1944 = vmatpush.bf16.msra.mxu0 %v1013
    %1945 = vmatmul.bf16.gmra.mxu0 %v1897
    %v1946 = vpop.f32.mrf.mxu0
    %v1947 = vadd.f32 %v1868, %v1946
    %v1948 = vpop.f32.mrf.mxu0
    %1949 = vdwg.mxu0
    %v1950 = vadd.f32 %v1908, %v359
    %v1951 = vadd.f32 %v1921, %v360
    %v1952 = vadd.f32 %v1934, %v361
    %v1953 = vadd.f32 %v1947, %v362
    %v1954 = vmul.f32 %v1950, 0.5
    %v1955 = vtanh.pop %v1954
    %v1956 = vmul.f32 %v1955, 0.5
    %v1957 = vadd.f32 %v1956, 0.5
    %v1958 = vmul.f32 %v1951, 0.5
    %v1959 = vtanh.pop %v1958
    %v1960 = vmul.f32 %v1959, 0.5
    %v1961 = vadd.f32 %v1960, 0.5
    %v1962 = vtanh.pop %v1952
    %v1963 = vmul.f32 %v1953, 0.5
    %v1964 = vtanh.pop %v1963
    %v1965 = vmul.f32 %v1964, 0.5
    %v1966 = vadd.f32 %v1965, 0.5
    %v1967 = vmul.f32 %v1961, %v1763
    %v1968 = vmul.f32 %v1957, %v1962
    %v1969 = vadd.f32 %v1967, %v1968
    %v1970 = vtanh.pop %v1969
    %v1971 = vmul.f32 %v1966, %v1970
    %1972 = vmatpush.bf16.msra.mxu0 %v523
    %1973 = vmatpush.bf16.msra.mxu0 %v519
    %1974 = vmatpush.bf16.msra.mxu0 %v515
    %1975 = vmatpush.bf16.msra.mxu0 %v511
    %1976 = vmatpush.bf16.msra.mxu0 %v507
    %1977 = vmatpush.bf16.msra.mxu0 %v503
    %1978 = vmatpush.bf16.msra.mxu0 %v499
    %1979 = vmatpush.bf16.msra.mxu0 %v495
    %1980 = vmatmul.bf16.gmra.mxu0 %v1897
    %v1981 = vpop.f32.mrf.mxu0
    %v1982 = vadd.f32 0.0, %v1981
    %v1983 = vpop.f32.mrf.mxu0
    %1984 = vdwg.mxu0
    %1985 = vmatpush.bf16.msra.mxu0 %v524
    %1986 = vmatpush.bf16.msra.mxu0 %v520
    %1987 = vmatpush.bf16.msra.mxu0 %v516
    %1988 = vmatpush.bf16.msra.mxu0 %v512
    %1989 = vmatpush.bf16.msra.mxu0 %v508
    %1990 = vmatpush.bf16.msra.mxu0 %v504
    %1991 = vmatpush.bf16.msra.mxu0 %v500
    %1992 = vmatpush.bf16.msra.mxu0 %v496
    %1993 = vmatmul.bf16.gmra.mxu0 %v1897
    %v1994 = vpop.f32.mrf.mxu0
    %v1995 = vadd.f32 0.0, %v1994
    %v1996 = vpop.f32.mrf.mxu0
    %1997 = vdwg.mxu0
    %1998 = vmatpush.bf16.msra.mxu0 %v525
    %1999 = vmatpush.bf16.msra.mxu0 %v521
    %2000 = vmatpush.bf16.msra.mxu0 %v517
    %2001 = vmatpush.bf16.msra.mxu0 %v513
    %2002 = vmatpush.bf16.msra.mxu0 %v509
    %2003 = vmatpush.bf16.msra.mxu0 %v505
    %2004 = vmatpush.bf16.msra.mxu0 %v501
    %2005 = vmatpush.bf16.msra.mxu0 %v497
    %2006 = vmatmul.bf16.gmra.mxu0 %v1897
    %v2007 = vpop.f32.mrf.mxu0
    %v2008 = vadd.f32 0.0, %v2007
    %v2009 = vpop.f32.mrf.mxu0
    %2010 = vdwg.mxu0
    %2011 = vmatpush.bf16.msra.mxu0 %v526
    %2012 = vmatpush.bf16.msra.mxu0 %v522
    %2013 = vmatpush.bf16.msra.mxu0 %v518
    %2014 = vmatpush.bf16.msra.mxu0 %v514
    %2015 = vmatpush.bf16.msra.mxu0 %v510
    %2016 = vmatpush.bf16.msra.mxu0 %v506
    %2017 = vmatpush.bf16.msra.mxu0 %v502
    %2018 = vmatpush.bf16.msra.mxu0 %v498
    %2019 = vmatmul.bf16.gmra.mxu0 %v1897
    %v2020 = vpop.f32.mrf.mxu0
    %v2021 = vadd.f32 0.0, %v2020
    %v2022 = vpop.f32.mrf.mxu0
    %2023 = vdwg.mxu0
    %v2024 = vpack.c.bf16 %v1971, %v1971
    %2025 = vmatpush.bf16.msra.mxu0 %v767
    %2026 = vmatpush.bf16.msra.mxu0 %v763
    %2027 = vmatpush.bf16.msra.mxu0 %v759
    %2028 = vmatpush.bf16.msra.mxu0 %v755
    %2029 = vmatpush.bf16.msra.mxu0 %v751
    %2030 = vmatpush.bf16.msra.mxu0 %v747
    %2031 = vmatpush.bf16.msra.mxu0 %v743
    %2032 = vmatpush.bf16.msra.mxu0 %v739
    %2033 = vmatmul.bf16.gmra.mxu0 %v2024
    %v2034 = vpop.f32.mrf.mxu0
    %v2035 = vadd.f32 0.0, %v2034
    %v2036 = vpop.f32.mrf.mxu0
    %2037 = vdwg.mxu0
    %2038 = vmatpush.bf16.msra.mxu0 %v768
    %2039 = vmatpush.bf16.msra.mxu0 %v764
    %2040 = vmatpush.bf16.msra.mxu0 %v760
    %2041 = vmatpush.bf16.msra.mxu0 %v756
    %2042 = vmatpush.bf16.msra.mxu0 %v752
    %2043 = vmatpush.bf16.msra.mxu0 %v748
    %2044 = vmatpush.bf16.msra.mxu0 %v744
    %2045 = vmatpush.bf16.msra.mxu0 %v740
    %2046 = vmatmul.bf16.gmra.mxu0 %v2024
    %v2047 = vpop.f32.mrf.mxu0
    %v2048 = vadd.f32 0.0, %v2047
    %v2049 = vpop.f32.mrf.mxu0
    %2050 = vdwg.mxu0
    %2051 = vmatpush.bf16.msra.mxu0 %v769
    %2052 = vmatpush.bf16.msra.mxu0 %v765
    %2053 = vmatpush.bf16.msra.mxu0 %v761
    %2054 = vmatpush.bf16.msra.mxu0 %v757
    %2055 = vmatpush.bf16.msra.mxu0 %v753
    %2056 = vmatpush.bf16.msra.mxu0 %v749
    %2057 = vmatpush.bf16.msra.mxu0 %v745
    %2058 = vmatpush.bf16.msra.mxu0 %v741
    %2059 = vmatmul.bf16.gmra.mxu0 %v2024
    %v2060 = vpop.f32.mrf.mxu0
    %v2061 = vadd.f32 0.0, %v2060
    %v2062 = vpop.f32.mrf.mxu0
    %2063 = vdwg.mxu0
    %2064 = vmatpush.bf16.msra.mxu0 %v770
    %2065 = vmatpush.bf16.msra.mxu0 %v766
    %2066 = vmatpush.bf16.msra.mxu0 %v762
    %2067 = vmatpush.bf16.msra.mxu0 %v758
    %2068 = vmatpush.bf16.msra.mxu0 %v754
    %2069 = vmatpush.bf16.msra.mxu0 %v750
    %2070 = vmatpush.bf16.msra.mxu0 %v746
    %2071 = vmatpush.bf16.msra.mxu0 %v742
    %2072 = vmatmul.bf16.gmra.mxu0 %v2024
    %v2073 = vpop.f32.mrf.mxu0
    %v2074 = vadd.f32 0.0, %v2073
    %v2075 = vpop.f32.mrf.mxu0
    %2076 = vdwg.mxu0
    %v2077 = vld [vmem:[#allocation2 + $0xa0] sm:$0xff]
    %v2078 = vld [vmem:[#allocation2 + $0xa8] sm:$0xff]
    %v2079 = vld [vmem:[#allocation2 + $0xb0] sm:$0xff]
    %v2080 = vld [vmem:[#allocation2 + $0xb8] sm:$0xff]
    %v2081 = vadd.f32 %v2077, %v1982
    %v2082 = vadd.f32 %v2078, %v1995
    %v2083 = vadd.f32 %v2079, %v2008
    %v2084 = vadd.f32 %v2080, %v2021
    %v2085 = vmul.f32 %v2081, 0.5
    %v2086 = vtanh.pop %v2085
    %v2087 = vmul.f32 %v2086, 0.5
    %v2088 = vadd.f32 %v2087, 0.5
    %v2089 = vmul.f32 %v2082, 0.5
    %v2090 = vtanh.pop %v2089
    %v2091 = vmul.f32 %v2090, 0.5
    %v2092 = vadd.f32 %v2091, 0.5
    %v2093 = vtanh.pop %v2083
    %v2094 = vmul.f32 %v2084, 0.5
    %v2095 = vtanh.pop %v2094
    %v2096 = vmul.f32 %v2095, 0.5
    %v2097 = vadd.f32 %v2096, 0.5
    %v2098 = vmul.f32 %v2092, %v1894
    %v2099 = vmul.f32 %v2088, %v2093
    %v2100 = vadd.f32 %v2098, %v2099
    %v2101 = vtanh.pop %v2100
    %v2102 = vmul.f32 %v2097, %v2101
    %v2103 = vpack.c.bf16 %v2102, %v2102
    %2104 = vmatpush.bf16.msra.mxu0 %v1038
    %2105 = vmatpush.bf16.msra.mxu0 %v1034
    %2106 = vmatpush.bf16.msra.mxu0 %v1030
    %2107 = vmatpush.bf16.msra.mxu0 %v1026
    %2108 = vmatpush.bf16.msra.mxu0 %v1022
    %2109 = vmatpush.bf16.msra.mxu0 %v1018
    %2110 = vmatpush.bf16.msra.mxu0 %v1014
    %2111 = vmatpush.bf16.msra.mxu0 %v1010
    %2112 = vmatmul.bf16.gmra.mxu0 %v2103
    %v2113 = vpop.f32.mrf.mxu0
    %v2114 = vadd.f32 %v2035, %v2113
    %v2115 = vpop.f32.mrf.mxu0
    %2116 = vdwg.mxu0
    %2117 = vmatpush.bf16.msra.mxu0 %v1039
    %2118 = vmatpush.bf16.msra.mxu0 %v1035
    %2119 = vmatpush.bf16.msra.mxu0 %v1031
    %2120 = vmatpush.bf16.msra.mxu0 %v1027
    %2121 = vmatpush.bf16.msra.mxu0 %v1023
    %2122 = vmatpush.bf16.msra.mxu0 %v1019
    %2123 = vmatpush.bf16.msra.mxu0 %v1015
    %2124 = vmatpush.bf16.msra.mxu0 %v1011
    %2125 = vmatmul.bf16.gmra.mxu0 %v2103
    %v2126 = vpop.f32.mrf.mxu0
    %v2127 = vadd.f32 %v2048, %v2126
    %v2128 = vpop.f32.mrf.mxu0
    %2129 = vdwg.mxu0
    %2130 = vmatpush.bf16.msra.mxu0 %v1040
    %2131 = vmatpush.bf16.msra.mxu0 %v1036
    %2132 = vmatpush.bf16.msra.mxu0 %v1032
    %2133 = vmatpush.bf16.msra.mxu0 %v1028
    %2134 = vmatpush.bf16.msra.mxu0 %v1024
    %2135 = vmatpush.bf16.msra.mxu0 %v1020
    %2136 = vmatpush.bf16.msra.mxu0 %v1016
    %2137 = vmatpush.bf16.msra.mxu0 %v1012
    %2138 = vmatmul.bf16.gmra.mxu0 %v2103
    %v2139 = vpop.f32.mrf.mxu0
    %v2140 = vadd.f32 %v2061, %v2139
    %v2141 = vpop.f32.mrf.mxu0
    %2142 = vdwg.mxu0
    %2143 = vmatpush.bf16.msra.mxu0 %v1041
    %2144 = vmatpush.bf16.msra.mxu0 %v1037
    %2145 = vmatpush.bf16.msra.mxu0 %v1033
    %2146 = vmatpush.bf16.msra.mxu0 %v1029
    %2147 = vmatpush.bf16.msra.mxu0 %v1025
    %2148 = vmatpush.bf16.msra.mxu0 %v1021
    %2149 = vmatpush.bf16.msra.mxu0 %v1017
    %2150 = vmatpush.bf16.msra.mxu0 %v1013
    %2151 = vmatmul.bf16.gmra.mxu0 %v2103
    %v2152 = vpop.f32.mrf.mxu0
    %v2153 = vadd.f32 %v2074, %v2152
    %v2154 = vpop.f32.mrf.mxu0
    %2155 = vdwg.mxu0
    %v2156 = vadd.f32 %v2114, %v359
    %v2157 = vadd.f32 %v2127, %v360
    %v2158 = vadd.f32 %v2140, %v361
    %v2159 = vadd.f32 %v2153, %v362
    %v2160 = vmul.f32 %v2156, 0.5
    %v2161 = vtanh.pop %v2160
    %v2162 = vmul.f32 %v2161, 0.5
    %v2163 = vadd.f32 %v2162, 0.5
    %v2164 = vmul.f32 %v2157, 0.5
    %v2165 = vtanh.pop %v2164
    %v2166 = vmul.f32 %v2165, 0.5
    %v2167 = vadd.f32 %v2166, 0.5
    %v2168 = vtanh.pop %v2158
    %v2169 = vmul.f32 %v2159, 0.5
    %v2170 = vtanh.pop %v2169
    %v2171 = vmul.f32 %v2170, 0.5
    %v2172 = vadd.f32 %v2171, 0.5
    %v2173 = vmul.f32 %v2167, %v1969
    %v2174 = vmul.f32 %v2163, %v2168
    %v2175 = vadd.f32 %v2173, %v2174
    %v2176 = vtanh.pop %v2175
    %v2177 = vmul.f32 %v2172, %v2176
    %2178 = vmatpush.bf16.msra.mxu0 %v523
    %2179 = vmatpush.bf16.msra.mxu0 %v519
    %2180 = vmatpush.bf16.msra.mxu0 %v515
    %2181 = vmatpush.bf16.msra.mxu0 %v511
    %2182 = vmatpush.bf16.msra.mxu0 %v507
    %2183 = vmatpush.bf16.msra.mxu0 %v503
    %2184 = vmatpush.bf16.msra.mxu0 %v499
    %2185 = vmatpush.bf16.msra.mxu0 %v495
    %2186 = vmatmul.bf16.gmra.mxu0 %v2103
    %v2187 = vpop.f32.mrf.mxu0
    %v2188 = vadd.f32 0.0, %v2187
    %v2189 = vpop.f32.mrf.mxu0
    %2190 = vdwg.mxu0
    %2191 = vmatpush.bf16.msra.mxu0 %v524
    %2192 = vmatpush.bf16.msra.mxu0 %v520
    %2193 = vmatpush.bf16.msra.mxu0 %v516
    %2194 = vmatpush.bf16.msra.mxu0 %v512
    %2195 = vmatpush.bf16.msra.mxu0 %v508
    %2196 = vmatpush.bf16.msra.mxu0 %v504
    %2197 = vmatpush.bf16.msra.mxu0 %v500
    %2198 = vmatpush.bf16.msra.mxu0 %v496
    %2199 = vmatmul.bf16.gmra.mxu0 %v2103
    %v2200 = vpop.f32.mrf.mxu0
    %v2201 = vadd.f32 0.0, %v2200
    %v2202 = vpop.f32.mrf.mxu0
    %2203 = vdwg.mxu0
    %2204 = vmatpush.bf16.msra.mxu0 %v525
    %2205 = vmatpush.bf16.msra.mxu0 %v521
    %2206 = vmatpush.bf16.msra.mxu0 %v517
    %2207 = vmatpush.bf16.msra.mxu0 %v513
    %2208 = vmatpush.bf16.msra.mxu0 %v509
    %2209 = vmatpush.bf16.msra.mxu0 %v505
    %2210 = vmatpush.bf16.msra.mxu0 %v501
    %2211 = vmatpush.bf16.msra.mxu0 %v497
    %2212 = vmatmul.bf16.gmra.mxu0 %v2103
    %v2213 = vpop.f32.mrf.mxu0
    %v2214 = vadd.f32 0.0, %v2213
    %v2215 = vpop.f32.mrf.mxu0
    %2216 = vdwg.mxu0
    %2217 = vmatpush.bf16.msra.mxu0 %v526
    %2218 = vmatpush.bf16.msra.mxu0 %v522
    %2219 = vmatpush.bf16.msra.mxu0 %v518
    %2220 = vmatpush.bf16.msra.mxu0 %v514
    %2221 = vmatpush.bf16.msra.mxu0 %v510
    %2222 = vmatpush.bf16.msra.mxu0 %v506
    %2223 = vmatpush.bf16.msra.mxu0 %v502
    %2224 = vmatpush.bf16.msra.mxu0 %v498
    %2225 = vmatmul.bf16.gmra.mxu0 %v2103
    %v2226 = vpop.f32.mrf.mxu0
    %v2227 = vadd.f32 0.0, %v2226
    %v2228 = vpop.f32.mrf.mxu0
    %2229 = vdwg.mxu0
    %v2230 = vpack.c.bf16 %v2177, %v2177
    %2231 = vmatpush.bf16.msra.mxu0 %v767
    %2232 = vmatpush.bf16.msra.mxu0 %v763
    %2233 = vmatpush.bf16.msra.mxu0 %v759
    %2234 = vmatpush.bf16.msra.mxu0 %v755
    %2235 = vmatpush.bf16.msra.mxu0 %v751
    %2236 = vmatpush.bf16.msra.mxu0 %v747
    %2237 = vmatpush.bf16.msra.mxu0 %v743
    %2238 = vmatpush.bf16.msra.mxu0 %v739
    %2239 = vmatmul.bf16.gmra.mxu0 %v2230
    %v2240 = vpop.f32.mrf.mxu0
    %v2241 = vadd.f32 0.0, %v2240
    %v2242 = vpop.f32.mrf.mxu0
    %2243 = vdwg.mxu0
    %2244 = vmatpush.bf16.msra.mxu0 %v768
    %2245 = vmatpush.bf16.msra.mxu0 %v764
    %2246 = vmatpush.bf16.msra.mxu0 %v760
    %2247 = vmatpush.bf16.msra.mxu0 %v756
    %2248 = vmatpush.bf16.msra.mxu0 %v752
    %2249 = vmatpush.bf16.msra.mxu0 %v748
    %2250 = vmatpush.bf16.msra.mxu0 %v744
    %2251 = vmatpush.bf16.msra.mxu0 %v740
    %2252 = vmatmul.bf16.gmra.mxu0 %v2230
    %v2253 = vpop.f32.mrf.mxu0
    %v2254 = vadd.f32 0.0, %v2253
    %v2255 = vpop.f32.mrf.mxu0
    %2256 = vdwg.mxu0
    %2257 = vmatpush.bf16.msra.mxu0 %v769
    %2258 = vmatpush.bf16.msra.mxu0 %v765
    %2259 = vmatpush.bf16.msra.mxu0 %v761
    %2260 = vmatpush.bf16.msra.mxu0 %v757
    %2261 = vmatpush.bf16.msra.mxu0 %v753
    %2262 = vmatpush.bf16.msra.mxu0 %v749
    %2263 = vmatpush.bf16.msra.mxu0 %v745
    %2264 = vmatpush.bf16.msra.mxu0 %v741
    %2265 = vmatmul.bf16.gmra.mxu0 %v2230
    %v2266 = vpop.f32.mrf.mxu0
    %v2267 = vadd.f32 0.0, %v2266
    %v2268 = vpop.f32.mrf.mxu0
    %2269 = vdwg.mxu0
    %2270 = vmatpush.bf16.msra.mxu0 %v770
    %2271 = vmatpush.bf16.msra.mxu0 %v766
    %2272 = vmatpush.bf16.msra.mxu0 %v762
    %2273 = vmatpush.bf16.msra.mxu0 %v758
    %2274 = vmatpush.bf16.msra.mxu0 %v754
    %2275 = vmatpush.bf16.msra.mxu0 %v750
    %2276 = vmatpush.bf16.msra.mxu0 %v746
    %2277 = vmatpush.bf16.msra.mxu0 %v742
    %2278 = vmatmul.bf16.gmra.mxu0 %v2230
    %v2279 = vpop.f32.mrf.mxu0
    %v2280 = vadd.f32 0.0, %v2279
    %v2281 = vpop.f32.mrf.mxu0
    %2282 = vdwg.mxu0
    %v2283 = vld [vmem:[#allocation2 + $0xc0] sm:$0xff]
    %v2284 = vld [vmem:[#allocation2 + $0xc8] sm:$0xff]
    %v2285 = vld [vmem:[#allocation2 + $0xd0] sm:$0xff]
    %v2286 = vld [vmem:[#allocation2 + $0xd8] sm:$0xff]
    %v2287 = vadd.f32 %v2283, %v2188
    %v2288 = vadd.f32 %v2284, %v2201
    %v2289 = vadd.f32 %v2285, %v2214
    %v2290 = vadd.f32 %v2286, %v2227
    %v2291 = vmul.f32 %v2287, 0.5
    %v2292 = vtanh.pop %v2291
    %v2293 = vmul.f32 %v2292, 0.5
    %v2294 = vadd.f32 %v2293, 0.5
    %v2295 = vmul.f32 %v2288, 0.5
    %v2296 = vtanh.pop %v2295
    %v2297 = vmul.f32 %v2296, 0.5
    %v2298 = vadd.f32 %v2297, 0.5
    %v2299 = vtanh.pop %v2289
    %v2300 = vmul.f32 %v2290, 0.5
    %v2301 = vtanh.pop %v2300
    %v2302 = vmul.f32 %v2301, 0.5
    %v2303 = vadd.f32 %v2302, 0.5
    %v2304 = vmul.f32 %v2298, %v2100
    %v2305 = vmul.f32 %v2294, %v2299
    %v2306 = vadd.f32 %v2304, %v2305
    %v2307 = vtanh.pop %v2306
    %v2308 = vmul.f32 %v2303, %v2307
    %v2309 = vpack.c.bf16 %v2308, %v2308
    %2310 = vmatpush.bf16.msra.mxu0 %v1038
    %2311 = vmatpush.bf16.msra.mxu0 %v1034
    %2312 = vmatpush.bf16.msra.mxu0 %v1030
    %2313 = vmatpush.bf16.msra.mxu0 %v1026
    %2314 = vmatpush.bf16.msra.mxu0 %v1022
    %2315 = vmatpush.bf16.msra.mxu0 %v1018
    %2316 = vmatpush.bf16.msra.mxu0 %v1014
    %2317 = vmatpush.bf16.msra.mxu0 %v1010
    %2318 = vmatmul.bf16.gmra.mxu0 %v2309
    %v2319 = vpop.f32.mrf.mxu0
    %v2320 = vadd.f32 %v2241, %v2319
    %v2321 = vpop.f32.mrf.mxu0
    %2322 = vdwg.mxu0
    %2323 = vmatpush.bf16.msra.mxu0 %v1039
    %2324 = vmatpush.bf16.msra.mxu0 %v1035
    %2325 = vmatpush.bf16.msra.mxu0 %v1031
    %2326 = vmatpush.bf16.msra.mxu0 %v1027
    %2327 = vmatpush.bf16.msra.mxu0 %v1023
    %2328 = vmatpush.bf16.msra.mxu0 %v1019
    %2329 = vmatpush.bf16.msra.mxu0 %v1015
    %2330 = vmatpush.bf16.msra.mxu0 %v1011
    %2331 = vmatmul.bf16.gmra.mxu0 %v2309
    %v2332 = vpop.f32.mrf.mxu0
    %v2333 = vadd.f32 %v2254, %v2332
    %v2334 = vpop.f32.mrf.mxu0
    %2335 = vdwg.mxu0
    %2336 = vmatpush.bf16.msra.mxu0 %v1040
    %2337 = vmatpush.bf16.msra.mxu0 %v1036
    %2338 = vmatpush.bf16.msra.mxu0 %v1032
    %2339 = vmatpush.bf16.msra.mxu0 %v1028
    %2340 = vmatpush.bf16.msra.mxu0 %v1024
    %2341 = vmatpush.bf16.msra.mxu0 %v1020
    %2342 = vmatpush.bf16.msra.mxu0 %v1016
    %2343 = vmatpush.bf16.msra.mxu0 %v1012
    %2344 = vmatmul.bf16.gmra.mxu0 %v2309
    %v2345 = vpop.f32.mrf.mxu0
    %v2346 = vadd.f32 %v2267, %v2345
    %v2347 = vpop.f32.mrf.mxu0
    %2348 = vdwg.mxu0
    %2349 = vmatpush.bf16.msra.mxu0 %v1041
    %2350 = vmatpush.bf16.msra.mxu0 %v1037
    %2351 = vmatpush.bf16.msra.mxu0 %v1033
    %2352 = vmatpush.bf16.msra.mxu0 %v1029
    %2353 = vmatpush.bf16.msra.mxu0 %v1025
    %2354 = vmatpush.bf16.msra.mxu0 %v1021
    %2355 = vmatpush.bf16.msra.mxu0 %v1017
    %2356 = vmatpush.bf16.msra.mxu0 %v1013
    %2357 = vmatmul.bf16.gmra.mxu0 %v2309
    %v2358 = vpop.f32.mrf.mxu0
    %v2359 = vadd.f32 %v2280, %v2358
    %v2360 = vpop.f32.mrf.mxu0
    %2361 = vdwg.mxu0
    %v2362 = vadd.f32 %v2320, %v359
    %v2363 = vadd.f32 %v2333, %v360
    %v2364 = vadd.f32 %v2346, %v361
    %v2365 = vadd.f32 %v2359, %v362
    %v2366 = vmul.f32 %v2362, 0.5
    %v2367 = vtanh.pop %v2366
    %v2368 = vmul.f32 %v2367, 0.5
    %v2369 = vadd.f32 %v2368, 0.5
    %v2370 = vmul.f32 %v2363, 0.5
    %v2371 = vtanh.pop %v2370
    %v2372 = vmul.f32 %v2371, 0.5
    %v2373 = vadd.f32 %v2372, 0.5
    %v2374 = vtanh.pop %v2364
    %v2375 = vmul.f32 %v2365, 0.5
    %v2376 = vtanh.pop %v2375
    %v2377 = vmul.f32 %v2376, 0.5
    %v2378 = vadd.f32 %v2377, 0.5
    %v2379 = vmul.f32 %v2373, %v2175
    %v2380 = vmul.f32 %v2369, %v2374
    %v2381 = vadd.f32 %v2379, %v2380
    %v2382 = vtanh.pop %v2381
    %v2383 = vmul.f32 %v2378, %v2382
    %2384 = vmatpush.bf16.msra.mxu0 %v523
    %2385 = vmatpush.bf16.msra.mxu0 %v519
    %2386 = vmatpush.bf16.msra.mxu0 %v515
    %2387 = vmatpush.bf16.msra.mxu0 %v511
    %2388 = vmatpush.bf16.msra.mxu0 %v507
    %2389 = vmatpush.bf16.msra.mxu0 %v503
    %2390 = vmatpush.bf16.msra.mxu0 %v499
    %2391 = vmatpush.bf16.msra.mxu0 %v495
    %2392 = vmatmul.bf16.gmra.mxu0 %v2309
    %v2393 = vpop.f32.mrf.mxu0
    %v2394 = vadd.f32 0.0, %v2393
    %v2395 = vpop.f32.mrf.mxu0
    %2396 = vdwg.mxu0
    %2397 = vmatpush.bf16.msra.mxu0 %v524
    %2398 = vmatpush.bf16.msra.mxu0 %v520
    %2399 = vmatpush.bf16.msra.mxu0 %v516
    %2400 = vmatpush.bf16.msra.mxu0 %v512
    %2401 = vmatpush.bf16.msra.mxu0 %v508
    %2402 = vmatpush.bf16.msra.mxu0 %v504
    %2403 = vmatpush.bf16.msra.mxu0 %v500
    %2404 = vmatpush.bf16.msra.mxu0 %v496
    %2405 = vmatmul.bf16.gmra.mxu0 %v2309
    %v2406 = vpop.f32.mrf.mxu0
    %v2407 = vadd.f32 0.0, %v2406
    %v2408 = vpop.f32.mrf.mxu0
    %2409 = vdwg.mxu0
    %2410 = vmatpush.bf16.msra.mxu0 %v525
    %2411 = vmatpush.bf16.msra.mxu0 %v521
    %2412 = vmatpush.bf16.msra.mxu0 %v517
    %2413 = vmatpush.bf16.msra.mxu0 %v513
    %2414 = vmatpush.bf16.msra.mxu0 %v509
    %2415 = vmatpush.bf16.msra.mxu0 %v505
    %2416 = vmatpush.bf16.msra.mxu0 %v501
    %2417 = vmatpush.bf16.msra.mxu0 %v497
    %2418 = vmatmul.bf16.gmra.mxu0 %v2309
    %v2419 = vpop.f32.mrf.mxu0
    %v2420 = vadd.f32 0.0, %v2419
    %v2421 = vpop.f32.mrf.mxu0
    %2422 = vdwg.mxu0
    %2423 = vmatpush.bf16.msra.mxu0 %v526
    %2424 = vmatpush.bf16.msra.mxu0 %v522
    %2425 = vmatpush.bf16.msra.mxu0 %v518
    %2426 = vmatpush.bf16.msra.mxu0 %v514
    %2427 = vmatpush.bf16.msra.mxu0 %v510
    %2428 = vmatpush.bf16.msra.mxu0 %v506
    %2429 = vmatpush.bf16.msra.mxu0 %v502
    %2430 = vmatpush.bf16.msra.mxu0 %v498
    %2431 = vmatmul.bf16.gmra.mxu0 %v2309
    %v2432 = vpop.f32.mrf.mxu0
    %v2433 = vadd.f32 0.0, %v2432
    %v2434 = vpop.f32.mrf.mxu0
    %2435 = vdwg.mxu0
    %v2436 = vpack.c.bf16 %v2383, %v2383
    %2437 = vmatpush.bf16.msra.mxu0 %v767
    %2438 = vmatpush.bf16.msra.mxu0 %v763
    %2439 = vmatpush.bf16.msra.mxu0 %v759
    %2440 = vmatpush.bf16.msra.mxu0 %v755
    %2441 = vmatpush.bf16.msra.mxu0 %v751
    %2442 = vmatpush.bf16.msra.mxu0 %v747
    %2443 = vmatpush.bf16.msra.mxu0 %v743
    %2444 = vmatpush.bf16.msra.mxu0 %v739
    %2445 = vmatmul.bf16.gmra.mxu0 %v2436
    %v2446 = vpop.f32.mrf.mxu0
    %v2447 = vadd.f32 0.0, %v2446
    %v2448 = vpop.f32.mrf.mxu0
    %2449 = vdwg.mxu0
    %2450 = vmatpush.bf16.msra.mxu0 %v768
    %2451 = vmatpush.bf16.msra.mxu0 %v764
    %2452 = vmatpush.bf16.msra.mxu0 %v760
    %2453 = vmatpush.bf16.msra.mxu0 %v756
    %2454 = vmatpush.bf16.msra.mxu0 %v752
    %2455 = vmatpush.bf16.msra.mxu0 %v748
    %2456 = vmatpush.bf16.msra.mxu0 %v744
    %2457 = vmatpush.bf16.msra.mxu0 %v740
    %2458 = vmatmul.bf16.gmra.mxu0 %v2436
    %v2459 = vpop.f32.mrf.mxu0
    %v2460 = vadd.f32 0.0, %v2459
    %v2461 = vpop.f32.mrf.mxu0
    %2462 = vdwg.mxu0
    %2463 = vmatpush.bf16.msra.mxu0 %v769
    %2464 = vmatpush.bf16.msra.mxu0 %v765
    %2465 = vmatpush.bf16.msra.mxu0 %v761
    %2466 = vmatpush.bf16.msra.mxu0 %v757
    %2467 = vmatpush.bf16.msra.mxu0 %v753
    %2468 = vmatpush.bf16.msra.mxu0 %v749
    %2469 = vmatpush.bf16.msra.mxu0 %v745
    %2470 = vmatpush.bf16.msra.mxu0 %v741
    %2471 = vmatmul.bf16.gmra.mxu0 %v2436
    %v2472 = vpop.f32.mrf.mxu0
    %v2473 = vadd.f32 0.0, %v2472
    %v2474 = vpop.f32.mrf.mxu0
    %2475 = vdwg.mxu0
    %2476 = vmatpush.bf16.msra.mxu0 %v770
    %2477 = vmatpush.bf16.msra.mxu0 %v766
    %2478 = vmatpush.bf16.msra.mxu0 %v762
    %2479 = vmatpush.bf16.msra.mxu0 %v758
    %2480 = vmatpush.bf16.msra.mxu0 %v754
    %2481 = vmatpush.bf16.msra.mxu0 %v750
    %2482 = vmatpush.bf16.msra.mxu0 %v746
    %2483 = vmatpush.bf16.msra.mxu0 %v742
    %2484 = vmatmul.bf16.gmra.mxu0 %v2436
    %v2485 = vpop.f32.mrf.mxu0
    %v2486 = vadd.f32 0.0, %v2485
    %v2487 = vpop.f32.mrf.mxu0
    %2488 = vdwg.mxu0
    %v2489 = vld [vmem:[#allocation2 + $0xe0] sm:$0xff]
    %v2490 = vld [vmem:[#allocation2 + $0xe8] sm:$0xff]
    %v2491 = vld [vmem:[#allocation2 + $0xf0] sm:$0xff]
    %v2492 = vld [vmem:[#allocation2 + $0xf8] sm:$0xff]
    %v2493 = vadd.f32 %v2489, %v2394
    %v2494 = vadd.f32 %v2490, %v2407
    %v2495 = vadd.f32 %v2491, %v2420
    %v2496 = vadd.f32 %v2492, %v2433
    %v2497 = vmul.f32 %v2493, 0.5
    %v2498 = vtanh.pop %v2497
    %v2499 = vmul.f32 %v2498, 0.5
    %v2500 = vadd.f32 %v2499, 0.5
    %v2501 = vmul.f32 %v2494, 0.5
    %v2502 = vtanh.pop %v2501
    %v2503 = vmul.f32 %v2502, 0.5
    %v2504 = vadd.f32 %v2503, 0.5
    %v2505 = vtanh.pop %v2495
    %v2506 = vmul.f32 %v2496, 0.5
    %v2507 = vtanh.pop %v2506
    %v2508 = vmul.f32 %v2507, 0.5
    %v2509 = vadd.f32 %v2508, 0.5
    %v2510 = vmul.f32 %v2504, %v2306
    %v2511 = vmul.f32 %v2500, %v2505
    %v2512 = vadd.f32 %v2510, %v2511
    %v2513 = vtanh.pop %v2512
    %v2514 = vmul.f32 %v2509, %v2513
    %v2515 = vpack.c.bf16 %v2514, %v2514
    %2516 = vmatpush.bf16.msra.mxu0 %v1038
    %2517 = vmatpush.bf16.msra.mxu0 %v1034
    %2518 = vmatpush.bf16.msra.mxu0 %v1030
    %2519 = vmatpush.bf16.msra.mxu0 %v1026
    %2520 = vmatpush.bf16.msra.mxu0 %v1022
    %2521 = vmatpush.bf16.msra.mxu0 %v1018
    %2522 = vmatpush.bf16.msra.mxu0 %v1014
    %2523 = vmatpush.bf16.msra.mxu0 %v1010
    %2524 = vmatmul.bf16.gmra.mxu0 %v2515
    %v2525 = vpop.f32.mrf.mxu0
    %v2526 = vadd.f32 %v2447, %v2525
    %v2527 = vpop.f32.mrf.mxu0
    %2528 = vdwg.mxu0
    %2529 = vmatpush.bf16.msra.mxu0 %v1039
    %2530 = vmatpush.bf16.msra.mxu0 %v1035
    %2531 = vmatpush.bf16.msra.mxu0 %v1031
    %2532 = vmatpush.bf16.msra.mxu0 %v1027
    %2533 = vmatpush.bf16.msra.mxu0 %v1023
    %2534 = vmatpush.bf16.msra.mxu0 %v1019
    %2535 = vmatpush.bf16.msra.mxu0 %v1015
    %2536 = vmatpush.bf16.msra.mxu0 %v1011
    %2537 = vmatmul.bf16.gmra.mxu0 %v2515
    %v2538 = vpop.f32.mrf.mxu0
    %v2539 = vadd.f32 %v2460, %v2538
    %v2540 = vpop.f32.mrf.mxu0
    %2541 = vdwg.mxu0
    %2542 = vmatpush.bf16.msra.mxu0 %v1040
    %2543 = vmatpush.bf16.msra.mxu0 %v1036
    %2544 = vmatpush.bf16.msra.mxu0 %v1032
    %2545 = vmatpush.bf16.msra.mxu0 %v1028
    %2546 = vmatpush.bf16.msra.mxu0 %v1024
    %2547 = vmatpush.bf16.msra.mxu0 %v1020
    %2548 = vmatpush.bf16.msra.mxu0 %v1016
    %2549 = vmatpush.bf16.msra.mxu0 %v1012
    %2550 = vmatmul.bf16.gmra.mxu0 %v2515
    %v2551 = vpop.f32.mrf.mxu0
    %v2552 = vadd.f32 %v2473, %v2551
    %v2553 = vpop.f32.mrf.mxu0
    %2554 = vdwg.mxu0
    %2555 = vmatpush.bf16.msra.mxu0 %v1041
    %2556 = vmatpush.bf16.msra.mxu0 %v1037
    %2557 = vmatpush.bf16.msra.mxu0 %v1033
    %2558 = vmatpush.bf16.msra.mxu0 %v1029
    %2559 = vmatpush.bf16.msra.mxu0 %v1025
    %2560 = vmatpush.bf16.msra.mxu0 %v1021
    %2561 = vmatpush.bf16.msra.mxu0 %v1017
    %2562 = vmatpush.bf16.msra.mxu0 %v1013
    %2563 = vmatmul.bf16.gmra.mxu0 %v2515
    %v2564 = vpop.f32.mrf.mxu0
    %v2565 = vadd.f32 %v2486, %v2564
    %v2566 = vpop.f32.mrf.mxu0
    %2567 = vdwg.mxu0
    %v2568 = vadd.f32 %v2526, %v359
    %v2569 = vadd.f32 %v2539, %v360
    %v2570 = vadd.f32 %v2552, %v361
    %v2571 = vadd.f32 %v2565, %v362
    %v2572 = vmul.f32 %v2568, 0.5
    %v2573 = vtanh.pop %v2572
    %v2574 = vmul.f32 %v2573, 0.5
    %v2575 = vadd.f32 %v2574, 0.5
    %v2576 = vmul.f32 %v2569, 0.5
    %v2577 = vtanh.pop %v2576
    %v2578 = vmul.f32 %v2577, 0.5
    %v2579 = vadd.f32 %v2578, 0.5
    %v2580 = vtanh.pop %v2570
    %v2581 = vmul.f32 %v2571, 0.5
    %v2582 = vtanh.pop %v2581
    %v2583 = vmul.f32 %v2582, 0.5
    %v2584 = vadd.f32 %v2583, 0.5
    %v2585 = vmul.f32 %v2579, %v2381
    %v2586 = vmul.f32 %v2575, %v2580
    %v2587 = vadd.f32 %v2585, %v2586
    %v2588 = vtanh.pop %v2587
    %v2589 = vmul.f32 %v2584, %v2588
    %v2590 = vld [vmem:[#allocation9] sm:$0xff]
    %v2591 = vld [vmem:[#allocation9 + $0x8] sm:$0xff]
    %v2592 = vld [vmem:[#allocation9 + $0x10] sm:$0xff]
    %v2593 = vld [vmem:[#allocation9 + $0x18] sm:$0xff]
    %v2594 = vld [vmem:[#allocation9 + $0x20] sm:$0xff]
    %v2595 = vld [vmem:[#allocation9 + $0x28] sm:$0xff]
    %v2596 = vld [vmem:[#allocation9 + $0x30] sm:$0xff]
    %v2597 = vld [vmem:[#allocation9 + $0x38] sm:$0xff]
    %v2598 = vld [vmem:[#allocation9 + $0x40] sm:$0xff]
    %v2599 = vld [vmem:[#allocation9 + $0x48] sm:$0xff]
    %v2600 = vld [vmem:[#allocation9 + $0x50] sm:$0xff]
    %v2601 = vld [vmem:[#allocation9 + $0x58] sm:$0xff]
    %v2602 = vld [vmem:[#allocation9 + $0x60] sm:$0xff]
    %v2603 = vld [vmem:[#allocation9 + $0x68] sm:$0xff]
    %v2604 = vld [vmem:[#allocation9 + $0x70] sm:$0xff]
    %v2605 = vld [vmem:[#allocation9 + $0x78] sm:$0xff]
    %v2606 = vld [vmem:[%s8] sm:$0x1]
    %v2608 = vperm.slane %v2606, 0
    %2610 = vmatpush.msra.mxu0 %v2605
    %2611 = vmatpush.msra.mxu0 %v2604
    %2612 = vmatpush.msra.mxu0 %v2603
    %2613 = vmatpush.msra.mxu0 %v2602
    %2614 = vmatpush.msra.mxu0 %v2601
    %2615 = vmatpush.msra.mxu0 %v2600
    %2616 = vmatpush.msra.mxu0 %v2599
    %2617 = vmatpush.msra.mxu0 %v2598
    %2618 = vmatpush.msra.mxu0 %v2597
    %2619 = vmatpush.msra.mxu0 %v2596
    %2620 = vmatpush.msra.mxu0 %v2595
    %2621 = vmatpush.msra.mxu0 %v2594
    %2622 = vmatpush.msra.mxu0 %v2593
    %2623 = vmatpush.msra.mxu0 %v2592
    %2624 = vmatpush.msra.mxu0 %v2591
    %2625 = vmatpush.msra.mxu0 %v2590
    %2626 = vmatmul.f32.gmra.mxu0 %v2589
    %v2627 = vpop.f32.mrf.mxu0
    %v2628 = vadd.f32 %v2608, %v2627
    %2629 = vdwg.mxu0
    %2630 = vst [vmem:[#allocation11] sm:$0xff] %v2628
    // Predicated region
    $region54: #{tpu_custom_call.1} parent=1 // pred_check
      _
    $region55: #{tpu_custom_call.1} parent=1 // pred_check_branch
      %2632 = sbr.rel (0) target = $region57
    $region56: #{tpu_custom_call.1} parent=1 // pred_region
      %2634 = vsyncadd [#allocation5], 0
      %s2636 = sshll.u32 [#allocation11], 4
      %s2637 = int_to_ptr.vmem [resolvable:$true] %s2636
      %s2638 = sshll.u32 %s9, 4
      %s2639 = int_to_ptr.hbm [resolvable:$true] %s2638
      %2641 = dma.vmem_to_hbm [thread:$0]  %s2637, 128, %s2639, [#allocation5]
    $region57: #{tpu_custom_call.1} parent=1 // pred_fallthru
      _
    // Predicated region
    $region58: #{tpu_custom_call.1} parent=1 // pred_check
      _
    $region59: #{tpu_custom_call.1} parent=1 // pred_check_branch
      %2643 = sbr.rel (0) target = $region61
    $region60: #{tpu_custom_call.1} parent=1 // pred_region
      %2645 = dma.done [#allocation5], 128
    $region61: #{tpu_custom_call.1} parent=1 // pred_fallthru
      _
    %2646 = vsyncpa [#allocation4], 1
    %2647 = vsyncpa [#allocation7], 1
    %2648 = vsyncpa [#allocation10], 1
    %2649 = vsyncpa [#allocation5], 1

</llo_original>
